<compile_context>
chip_gen: v6e
topology: v6e:2x2x1
jax: 0.10.0
libtpu: 0.0.40
codegen_flags: <defaults>
</compile_context>

<pallas_src>
import jax
import jax.numpy as jnp
from jax.experimental import pallas as pl
from jax.experimental.pallas import tpu as pltpu

f32 = jnp.float32
bf16 = jnp.bfloat16


# ------------------------- hardware-aware tiling helpers ---------------------
def _tpu_vmem_bytes():
    try:
        return int(pltpu.get_tpu_info().vmem_capacity_bytes)
    except Exception:
        return 64 * 1024 * 1024  # conservative (v7x-sized) fallback


def _largest_divisor(n, pref, multiple_of=1):
    """Largest d <= pref with n % d == 0 and d % multiple_of == 0; else n."""
    for d in range(min(pref, n), 0, -1):
        if n % d == 0 and d % multiple_of == 0:
            return d
    return n


# ----------------------------- Phase 1: input projection ---------------------
def input_proj_kernel(x_ref, we_ref, wih_ref, b_ref, out_ref, e_acc):
    k = pl.program_id(1)  # V-contraction tile index

    @pl.when(k == 0)
    def _():
        e_acc[...] = jnp.zeros_like(e_acc)

    # (tm, tkv) @ (tkv, E_pad) -> accumulate the embedding in f32.
    e_acc[...] += jnp.dot(x_ref[...].astype(bf16), we_ref[...],
                          preferred_element_type=f32)

    @pl.when(k == pl.num_programs(1) - 1)
    def _():
        # (tm, E_pad) @ (E_pad, 4H) + fused bias -> gate pre-activations.
        out_ref[...] = (jnp.dot(e_acc[...].astype(bf16), wih_ref[...],
                                preferred_element_type=f32) + b_ref[...])


# ----------------------------- Phase 2: LSTM recurrence ----------------------
def lstm_kernel(xp_ref, whh_ref, h0_ref, c0_ref,
                h_all_ref, h_out_ref, c_out_ref,
                h_sc, c_sc, hchunk_sc):
    t = pl.program_id(1)
    H = h_sc.shape[1]
    TB = xp_ref.shape[1]

    @pl.when(t == 0)
    def _():
        h_sc[...] = h0_ref[...]
        c_sc[...] = c0_ref[...]

    h = h_sc[...]                       # (BB, H) f32 state, kept live for the chunk
    c = c_sc[...]
    whh = whh_ref[...]                  # (H, 4H) bf16, hoisted out of the loop

    for tau in range(TB):               # fully unrolled (TB small & static)
        # bf16 operands on the MXU, f32 accumulation; xp already holds both biases.
        gates = xp_ref[:, tau, :] + jnp.dot(h.astype(bf16), whh,
                                            preferred_element_type=f32)  # (BB, 4H)
        # Gate columns were pre-permuted in the wrapper to [i, f, o | g]:
        # one sigmoid over a contiguous (BB, 3H) slab + two tanh issues.
        s = jax.nn.sigmoid(gates[:, :3 * H])
        g = jnp.tanh(gates[:, 3 * H:])
        c = s[:, H:2 * H] * c + s[:, :H] * g          # f = s[:,H:2H], i = s[:,:H]
        h = s[:, 2 * H:3 * H] * jnp.tanh(c)           # o = s[:,2H:3H]
        hchunk_sc[:, tau, :] = h                      # f32 staging in VMEM

    h_sc[...] = h                       # carry to the next time chunk
    c_sc[...] = c
    # One dense, lane-aligned bf16 store per chunk (halves HBM writeback).
    h_all_ref[...] = hchunk_sc[...].astype(h_all_ref.dtype)

    @pl.when(t == pl.num_programs(1) - 1)
    def _():
        h_out_ref[...] = h
        c_out_ref[...] = c


# ----------------------------- Phase 3: output projection --------------------
def output_proj_kernel(h_ref, w_ref, b_ref, out_ref):
    out_ref[...] = (jnp.dot(h_ref[...], w_ref[...],
                            preferred_element_type=f32)
                    + b_ref[...]).astype(out_ref.dtype)


# ----------------------------- wrapper ---------------------------------------
def rnnlm_forward(x, state, params, *, time_block=32, logits_dtype=jnp.bfloat16):
    """x: (B, T, V) float32; state = (h0, c0), each (num_layers=1, B, H)."""
    B, T, V = x.shape
    h0, c0 = state
    H = h0.shape[-1]
    E = params["w_embed"].shape[0]

    # Generation-aware VMEM budget / tile preferences.
    vmem_phys = _tpu_vmem_bytes()
    vmem_limit = min(int(vmem_phys * 3 // 4), 100 * 1024 * 1024)
    big_vmem = vmem_phys >= 100 * 1024 * 1024          # v5e / v6e (128 MiB)
    row_pref = 512 if big_vmem else 256
    voc_pref = 1024 if big_vmem else 512
    kv_pref = 1024 if big_vmem else 512

    # Permute gate blocks [i, f, g, o] -> [i, f, o, g] once (exact re-indexing).
    def reorder(w):
        i, f, g, o = jnp.split(w, 4, axis=0)
        return jnp.concatenate([i, f, o, g], axis=0)

    w_ih = reorder(params["w_ih"])                      # (4H, E)
    w_hh = reorder(params["w_hh"])                      # (4H, H)
    b_fused = reorder(params["b_ih"] + params["b_hh"])  # (4H,)

    # Zero-pad E to a multiple of 128 (MXU lane width) — exact, better MXU fill.
    E_pad = ((E + 127) // 128) * 128
    we_T = params["w_embed"].T.astype(bf16)             # (V, E)
    wih_T = w_ih.T.astype(bf16)                         # (E, 4H)
    if E_pad != E:
        we_T = jnp.pad(we_T, ((0, 0), (0, E_pad - E)))
        wih_T = jnp.pad(wih_T, ((0, E_pad - E), (0, 0)))
    whh_T = w_hh.T.astype(bf16)                         # (H, 4H) bf16 on the MXU
    b = b_fused.astype(f32).reshape(1, 4 * H)
    wout_T = params["w_out"].T.astype(bf16)              # (H, V)
    bout = params["b_out"].astype(f32).reshape(1, V)

    M = B * T
    x2d = x.reshape(M, V)                               # batch-major, free reshape

    # ---- Phase 1: batched input projection, V-contraction tiled ----
    tm = _largest_divisor(M, row_pref, multiple_of=8)
    tkv = _largest_divisor(V, kv_pref, multiple_of=128)
    x_proj = pl.pallas_call(
        input_proj_kernel,
        out_shape=jax.ShapeDtypeStruct((M, 4 * H), f32),
        grid_spec=pltpu.PrefetchScalarGridSpec(
            num_scalar_prefetch=0,
            grid=(M // tm, V // tkv),
            in_specs=[
                pl.BlockSpec((tm, tkv), lambda i, k: (i, k)),
                pl.BlockSpec((tkv, E_pad), lambda i, k: (k, 0)),
                pl.BlockSpec((E_pad, 4 * H), lambda i, k: (0, 0)),
                pl.BlockSpec((1, 4 * H), lambda i, k: (0, 0)),
            ],
            out_specs=pl.BlockSpec((tm, 4 * H), lambda i, k: (i, 0)),
            scratch_shapes=[pltpu.VMEM((tm, E_pad), f32)],
        ),
        compiler_params=pltpu.CompilerParams(
            dimension_semantics=("parallel", "arbitrary"),
            vmem_limit_bytes=vmem_limit),
    )(x2d, we_T, wih_T, b)
    x_proj = x_proj.reshape(B, T, 4 * H)                # batch-major, no transpose

    # ---- Phase 2: sequential LSTM over time chunks (batch split on v7x) ----
    # TB is either a multiple of 16 (bf16 sublane packing) or equals T.
    TB = _largest_divisor(T, time_block, multiple_of=16)
    nb = 2 if (B % 16 == 0) else 1        # v7x: both TCs when the slice tiles cleanly
    BB = B // nb
    h_all, h_f, c_f = pl.pallas_call(
        lstm_kernel,
        out_shape=(
            jax.ShapeDtypeStruct((B, T, H), bf16),      # bf16 activations to HBM
            jax.ShapeDtypeStruct((B, H), f32),
            jax.ShapeDtypeStruct((B, H), f32),
        ),
        grid_spec=pltpu.PrefetchScalarGridSpec(
            num_scalar_prefetch=0,
            grid=(nb, T // TB),
            in_specs=[
                pl.BlockSpec((BB, TB, 4 * H), lambda b, t: (b, t, 0)),
                pl.BlockSpec((H, 4 * H), lambda b, t: (0, 0)),
                pl.BlockSpec((BB, H), lambda b, t: (b, 0)),
                pl.BlockSpec((BB, H), lambda b, t: (b, 0)),
            ],
            out_specs=[
                pl.BlockSpec((BB, TB, H), lambda b, t: (b, t, 0)),
                pl.BlockSpec((BB, H), lambda b, t: (b, 0)),
                pl.BlockSpec((BB, H), lambda b, t: (b, 0)),
            ],
            scratch_shapes=[pltpu.VMEM((BB, H), f32),
                            pltpu.VMEM((BB, H), f32),
                            pltpu.VMEM((BB, TB, H), f32)],
        ),
        compiler_params=pltpu.CompilerParams(
            dimension_semantics=("parallel", "arbitrary"),
            vmem_limit_bytes=vmem_limit),
    )(x_proj, whh_T, h0[0].astype(f32), c0[0].astype(f32))

    # ---- Phase 3: vocab projection; vocab OUTER so W_out tile stays resident ----
    h2d = h_all.reshape(M, H)                           # bf16 rows, free reshape
    tm2 = _largest_divisor(M, row_pref, multiple_of=16)
    tn = _largest_divisor(V, voc_pref, multiple_of=128)
    out = pl.pallas_call(
        output_proj_kernel,
        out_shape=jax.ShapeDtypeStruct((M, V), logits_dtype),
        grid_spec=pltpu.PrefetchScalarGridSpec(
            num_scalar_prefetch=0,
            grid=(V // tn, M // tm2),                   # vocab outer, rows inner
            in_specs=[
                pl.BlockSpec((tm2, H), lambda j, i: (i, 0)),
                pl.BlockSpec((H, tn), lambda j, i: (0, j)),   # constant across i
                pl.BlockSpec((1, tn), lambda j, i: (0, j)),
            ],
            out_specs=pl.BlockSpec((tm2, tn), lambda j, i: (i, j)),
        ),
        compiler_params=pltpu.CompilerParams(
            dimension_semantics=("parallel", "parallel"),
            vmem_limit_bytes=vmem_limit),
    )(h2d, wout_T, bout)

    return out, (h_f[None], c_f[None])


# ----------------------------- pure-JAX reference ----------------------------
def rnnlm_reference(x, state, params):
    """Pure-JAX f32 reference matching the PyTorch module semantics."""
    B, T, V = x.shape
    h, c = state[0][0], state[1][0]
    H = h.shape[-1]
    e = x @ params["w_embed"].T                          # (B, T, E)
    outs = []
    for t in range(T):
        gates = (e[:, t] @ params["w_ih"].T + params["b_ih"]
                 + h @ params["w_hh"].T + params["b_hh"])
        i = jax.nn.sigmoid(gates[:, 0 * H:1 * H])
        f = jax.nn.sigmoid(gates[:, 1 * H:2 * H])
        g = jnp.tanh(gates[:, 2 * H:3 * H])
        o = jax.nn.sigmoid(gates[:, 3 * H:4 * H])
        c = f * c + i * g
        h = o * jnp.tanh(c)
        outs.append(h)
    out = jnp.stack(outs, axis=1).reshape(B * T, H)
    out = out @ params["w_out"].T + params["b_out"]
    return out, (h[None], c[None])


if __name__ == "__main__":
    # Small but TPU-friendly shapes (lane-aligned H and V).
    B, T = 2, 16
    vocab_size, embed_size, hidden_size = 128, 64, 128

    key = jax.random.PRNGKey(0)
    ks = jax.random.split(key, 9)
    s = 0.1
    params = {
        "w_embed": s * jax.random.normal(ks[0], (embed_size, vocab_size), jnp.float32),
        "w_ih":    s * jax.random.normal(ks[1], (4 * hidden_size, embed_size), jnp.float32),
        "w_hh":    s * jax.random.normal(ks[2], (4 * hidden_size, hidden_size), jnp.float32),
        "b_ih":    s * jax.random.normal(ks[3], (4 * hidden_size,), jnp.float32),
        "b_hh":    s * jax.random.normal(ks[4], (4 * hidden_size,), jnp.float32),
        "w_out":   s * jax.random.normal(ks[5], (vocab_size, hidden_size), jnp.float32),
        "b_out":   s * jax.random.normal(ks[6], (vocab_size,), jnp.float32),
    }

    x = jax.random.normal(ks[7], (B, T, vocab_size), jnp.float32)
    h0 = jnp.zeros((1, B, hidden_size), jnp.float32)
    c0 = jnp.zeros((1, B, hidden_size), jnp.float32)

    fwd = jax.jit(rnnlm_forward)
    out, (h, c) = fwd(x, (h0, c0), params)
    jax.block_until_ready((out, h, c))

    out_ref, (h_ref, c_ref) = rnnlm_reference(x, (h0, c0), params)
    assert out.shape == (B * T, vocab_size)
    assert h.shape == (1, B, hidden_size) and c.shape == (1, B, hidden_size)
    # Tolerances account for bf16 operands on the MXU matmuls (f32 accumulation),
    # the bf16 recurrent operands (f32 state) and the bf16 logits/activations.
    assert jnp.allclose(out.astype(jnp.float32), out_ref, atol=5e-2, rtol=5e-2)
    assert jnp.allclose(h, h_ref, atol=5e-2, rtol=5e-2)
    assert jnp.allclose(c, c_ref, atol=5e-2, rtol=5e-2)

    print("KERNEL_OK")
</pallas_src>

<mosaic_0001>
module attributes {stable_mosaic.version = 11 : i64} {
  func.func @input_proj_kernel(%arg0: i32, %arg1: i32, %arg2: memref<32x128xf32, #tpu.memory_space<vmem>>, %arg3: memref<128x128xbf16, #tpu.memory_space<vmem>>, %arg4: memref<128x512xbf16, #tpu.memory_space<vmem>>, %arg5: memref<1x512xf32, #tpu.memory_space<vmem>>, %arg6: memref<32x512xf32, #tpu.memory_space<vmem>>, %arg7: memref<32x128xf32, #tpu.memory_space<vmem>>) attributes {dimension_semantics = [#tpu.dimension_semantics<parallel>, #tpu.dimension_semantics<arbitrary>], iteration_bounds = array<i64: 1, 1>, scalar_prefetch = 0 : i64, scratch_operands = 1 : i64, tpu.core_type = #tpu.core_type<tc>, window_params = [{transform_indices = @transform_0, window_bounds = array<i64: 32, 128>}, {transform_indices = @transform_1, window_bounds = array<i64: 128, 128>}, {pipeline_mode = #tpu.pipeline_mode<synchronous>, transform_indices = @transform_2, window_bounds = array<i64: 128, 512>}, {pipeline_mode = #tpu.pipeline_mode<synchronous>, transform_indices = @transform_3, window_bounds = array<i64: 1, 512>}, {transform_indices = @transform_4, window_bounds = array<i64: 32, 512>}]} {
    %c0_i32 = arith.constant 0 : i32
    %0 = arith.cmpi eq, %arg1, %c0_i32 : i32
    %1 = arith.extui %0 : i1 to i32
    %c0_i32_0 = arith.constant 0 : i32
    %2 = arith.cmpi ne, %1, %c0_i32_0 : i32
    scf.if %2 {
      %cst_10 = arith.constant 0.000000e+00 : f32
      %13 = vector.broadcast %cst_10 : f32 to vector<32x128xf32>
      %c0_11 = arith.constant 0 : index
      %c0_12 = arith.constant 0 : index
      %14 = vector.load %arg7[%c0_11, %c0_12] : memref<32x128xf32, #tpu.memory_space<vmem>>, vector<32x128xf32>
      tpu.vector_store %arg7[%c0_11, %c0_12], %13 {strides = array<i32>} : memref<32x128xf32, #tpu.memory_space<vmem>>, vector<32x128xf32>,
    } else {
    }
    %c0 = arith.constant 0 : index
    %c0_1 = arith.constant 0 : index
    %3 = vector.load %arg7[%c0, %c0_1] : memref<32x128xf32, #tpu.memory_space<vmem>>, vector<32x128xf32>
    %c0_2 = arith.constant 0 : index
    %c0_3 = arith.constant 0 : index
    %4 = vector.load %arg2[%c0_2, %c0_3] : memref<32x128xf32, #tpu.memory_space<vmem>>, vector<32x128xf32>
    %5 = arith.truncf %4 : vector<32x128xf32> to vector<32x128xbf16>
    %c0_4 = arith.constant 0 : index
    %c0_5 = arith.constant 0 : index
    %6 = vector.load %arg3[%c0_4, %c0_5] : memref<128x128xbf16, #tpu.memory_space<vmem>>, vector<128x128xbf16>
    %cst = arith.constant dense<0.000000e+00> : vector<32x128xf32>
    %7 = tpu.matmul %5, %6, %cst {dimension_numbers = #tpu.dot_dimension_numbers<[1], [0], [0], [1], [0, 0, 1, 1], [], []>} : vector<32x128xbf16>, vector<128x128xbf16>, vector<32x128xf32> -> vector<32x128xf32>
    %8 = arith.addf %3, %7 : vector<32x128xf32>
    %c0_6 = arith.constant 0 : index
    %c0_7 = arith.constant 0 : index
    %9 = vector.load %arg7[%c0_6, %c0_7] : memref<32x128xf32, #tpu.memory_space<vmem>>, vector<32x128xf32>
    tpu.vector_store %arg7[%c0_6, %c0_7], %8 {strides = array<i32>} : memref<32x128xf32, #tpu.memory_space<vmem>>, vector<32x128xf32>,
    %c0_i32_8 = arith.constant 0 : i32
    %10 = arith.cmpi eq, %arg1, %c0_i32_8 : i32
    %11 = arith.extui %10 : i1 to i32
    %c0_i32_9 = arith.constant 0 : i32
    %12 = arith.cmpi ne, %11, %c0_i32_9 : i32
    scf.if %12 {
      %c0_10 = arith.constant 0 : index
      %c0_11 = arith.constant 0 : index
      %13 = vector.load %arg7[%c0_10, %c0_11] : memref<32x128xf32, #tpu.memory_space<vmem>>, vector<32x128xf32>
      %14 = arith.truncf %13 : vector<32x128xf32> to vector<32x128xbf16>
      %c0_12 = arith.constant 0 : index
      %c0_13 = arith.constant 0 : index
      %15 = vector.load %arg4[%c0_12, %c0_13] : memref<128x512xbf16, #tpu.memory_space<vmem>>, vector<128x512xbf16>
      %cst_14 = arith.constant dense<0.000000e+00> : vector<32x512xf32>
      %16 = tpu.matmul %14, %15, %cst_14 {dimension_numbers = #tpu.dot_dimension_numbers<[1], [0], [0], [1], [0, 0, 1, 1], [], []>} : vector<32x128xbf16>, vector<128x512xbf16>, vector<32x512xf32> -> vector<32x512xf32>
      %c0_15 = arith.constant 0 : index
      %c0_16 = arith.constant 0 : index
      %17 = vector.load %arg5[%c0_15, %c0_16] : memref<1x512xf32, #tpu.memory_space<vmem>>, vector<1x512xf32>
      %18 = vector.broadcast %17 : vector<1x512xf32> to vector<32x512xf32>
      %19 = arith.addf %16, %18 : vector<32x512xf32>
      %c0_17 = arith.constant 0 : index
      %c0_18 = arith.constant 0 : index
      %20 = vector.load %arg6[%c0_17, %c0_18] : memref<32x512xf32, #tpu.memory_space<vmem>>, vector<32x512xf32>
      tpu.vector_store %arg6[%c0_17, %c0_18], %19 {strides = array<i32>} : memref<32x512xf32, #tpu.memory_space<vmem>>, vector<32x512xf32>,
    } else {
    }
    return
  }
  func.func @transform_0(%arg0: i32, %arg1: i32) -> (i32, i32) {
    %c0_i32 = arith.constant 0 : i32
    return %arg0, %arg1 : i32, i32
  }
  func.func @transform_1(%arg0: i32, %arg1: i32) -> (i32, i32) {
    %c0_i32 = arith.constant 0 : i32
    %c0_i32_0 = arith.constant 0 : i32
    return %arg1, %c0_i32 : i32, i32
  }
  func.func @transform_2(%arg0: i32, %arg1: i32) -> (i32, i32) {
    %c0_i32 = arith.constant 0 : i32
    %c0_i32_0 = arith.constant 0 : i32
    %c0_i32_1 = arith.constant 0 : i32
    return %c0_i32, %c0_i32_0 : i32, i32
  }
  func.func @transform_3(%arg0: i32, %arg1: i32) -> (i32, i32) {
    %c0_i32 = arith.constant 0 : i32
    %c0_i32_0 = arith.constant 0 : i32
    %c0_i32_1 = arith.constant 0 : i32
    return %c0_i32, %c0_i32_0 : i32, i32
  }
  func.func @transform_4(%arg0: i32, %arg1: i32) -> (i32, i32) {
    %c0_i32 = arith.constant 0 : i32
    %c0_i32_0 = arith.constant 0 : i32
    return %arg0, %c0_i32 : i32, i32
  }
}

module attributes {stable_mosaic.version = 11 : i64} {
  func.func @output_proj_kernel(%arg0: i32, %arg1: i32, %arg2: memref<32x128xbf16, #tpu.memory_space<vmem>>, %arg3: memref<128x128xbf16, #tpu.memory_space<vmem>>, %arg4: memref<1x128xf32, #tpu.memory_space<vmem>>, %arg5: memref<32x128xbf16, #tpu.memory_space<vmem>>) attributes {dimension_semantics = [#tpu.dimension_semantics<parallel>, #tpu.dimension_semantics<parallel>], iteration_bounds = array<i64: 1, 1>, scalar_prefetch = 0 : i64, scratch_operands = 0 : i64, tpu.core_type = #tpu.core_type<tc>, window_params = [{transform_indices = @transform_0, window_bounds = array<i64: 32, 128>}, {transform_indices = @transform_1, window_bounds = array<i64: 128, 128>}, {transform_indices = @transform_2, window_bounds = array<i64: 1, 128>}, {transform_indices = @transform_3, window_bounds = array<i64: 32, 128>}]} {
    %c0 = arith.constant 0 : index
    %c0_0 = arith.constant 0 : index
    %0 = vector.load %arg2[%c0, %c0_0] : memref<32x128xbf16, #tpu.memory_space<vmem>>, vector<32x128xbf16>
    %c0_1 = arith.constant 0 : index
    %c0_2 = arith.constant 0 : index
    %1 = vector.load %arg3[%c0_1, %c0_2] : memref<128x128xbf16, #tpu.memory_space<vmem>>, vector<128x128xbf16>
    %cst = arith.constant dense<0.000000e+00> : vector<32x128xf32>
    %2 = tpu.matmul %0, %1, %cst {dimension_numbers = #tpu.dot_dimension_numbers<[1], [0], [0], [1], [0, 0, 1, 1], [], []>} : vector<32x128xbf16>, vector<128x128xbf16>, vector<32x128xf32> -> vector<32x128xf32>
    %c0_3 = arith.constant 0 : index
    %c0_4 = arith.constant 0 : index
    %3 = vector.load %arg4[%c0_3, %c0_4] : memref<1x128xf32, #tpu.memory_space<vmem>>, vector<1x128xf32>
    %4 = vector.broadcast %3 : vector<1x128xf32> to vector<32x128xf32>
    %5 = arith.addf %2, %4 : vector<32x128xf32>
    %6 = arith.truncf %5 : vector<32x128xf32> to vector<32x128xbf16>
    %c0_5 = arith.constant 0 : index
    %c0_6 = arith.constant 0 : index
    %7 = vector.load %arg5[%c0_5, %c0_6] : memref<32x128xbf16, #tpu.memory_space<vmem>>, vector<32x128xbf16>
    tpu.vector_store %arg5[%c0_5, %c0_6], %6 {strides = array<i32>} : memref<32x128xbf16, #tpu.memory_space<vmem>>, vector<32x128xbf16>,
    return
  }
  func.func @transform_0(%arg0: i32, %arg1: i32) -> (i32, i32) {
    %c0_i32 = arith.constant 0 : i32
    %c0_i32_0 = arith.constant 0 : i32
    return %arg1, %c0_i32 : i32, i32
  }
  func.func @transform_1(%arg0: i32, %arg1: i32) -> (i32, i32) {
    %c0_i32 = arith.constant 0 : i32
    %c0_i32_0 = arith.constant 0 : i32
    return %c0_i32, %arg0 : i32, i32
  }
  func.func @transform_2(%arg0: i32, %arg1: i32) -> (i32, i32) {
    %c0_i32 = arith.constant 0 : i32
    %c0_i32_0 = arith.constant 0 : i32
    return %c0_i32, %arg0 : i32, i32
  }
  func.func @transform_3(%arg0: i32, %arg1: i32) -> (i32, i32) {
    %c0_i32 = arith.constant 0 : i32
    return %arg1, %arg0 : i32, i32
  }
}

module attributes {stable_mosaic.version = 11 : i64} {
  func.func @lstm_kernel(%arg0: i32, %arg1: i32, %arg2: memref<2x16x512xf32, #tpu.memory_space<vmem>>, %arg3: memref<128x512xbf16, #tpu.memory_space<vmem>>, %arg4: memref<2x128xf32, #tpu.memory_space<vmem>>, %arg5: memref<2x128xf32, #tpu.memory_space<vmem>>, %arg6: memref<2x16x128xbf16, #tpu.memory_space<vmem>>, %arg7: memref<2x128xf32, #tpu.memory_space<vmem>>, %arg8: memref<2x128xf32, #tpu.memory_space<vmem>>, %arg9: memref<2x128xf32, #tpu.memory_space<vmem>>, %arg10: memref<2x128xf32, #tpu.memory_space<vmem>>, %arg11: memref<2x16x128xf32, #tpu.memory_space<vmem>>) attributes {dimension_semantics = [#tpu.dimension_semantics<parallel>, #tpu.dimension_semantics<arbitrary>], iteration_bounds = array<i64: 1, 1>, scalar_prefetch = 0 : i64, scratch_operands = 3 : i64, tpu.core_type = #tpu.core_type<tc>, window_params = [{transform_indices = @transform_0, window_bounds = array<i64: 2, 16, 512>}, {pipeline_mode = #tpu.pipeline_mode<synchronous>, transform_indices = @transform_1, window_bounds = array<i64: 128, 512>}, {transform_indices = @transform_2, window_bounds = array<i64: 2, 128>}, {transform_indices = @transform_3, window_bounds = array<i64: 2, 128>}, {transform_indices = @transform_4, window_bounds = array<i64: 2, 16, 128>}, {transform_indices = @transform_5, window_bounds = array<i64: 2, 128>}, {transform_indices = @transform_6, window_bounds = array<i64: 2, 128>}]} {
    %c0_i32 = arith.constant 0 : i32
    %0 = arith.cmpi eq, %arg1, %c0_i32 : i32
    %1 = arith.extui %0 : i1 to i32
    %c0_i32_0 = arith.constant 0 : i32
    %2 = arith.cmpi ne, %1, %c0_i32_0 : i32
    scf.if %2 {
      %c0_130 = arith.constant 0 : index
      %c0_131 = arith.constant 0 : index
      %398 = vector.load %arg4[%c0_130, %c0_131] : memref<2x128xf32, #tpu.memory_space<vmem>>, vector<2x128xf32>
      %c0_132 = arith.constant 0 : index
      %c0_133 = arith.constant 0 : index
      %399 = vector.load %arg9[%c0_132, %c0_133] : memref<2x128xf32, #tpu.memory_space<vmem>>, vector<2x128xf32>
      tpu.vector_store %arg9[%c0_132, %c0_133], %398 {strides = array<i32>} : memref<2x128xf32, #tpu.memory_space<vmem>>, vector<2x128xf32>,
      %c0_134 = arith.constant 0 : index
      %c0_135 = arith.constant 0 : index
      %400 = vector.load %arg5[%c0_134, %c0_135] : memref<2x128xf32, #tpu.memory_space<vmem>>, vector<2x128xf32>
      %c0_136 = arith.constant 0 : index
      %c0_137 = arith.constant 0 : index
      %401 = vector.load %arg10[%c0_136, %c0_137] : memref<2x128xf32, #tpu.memory_space<vmem>>, vector<2x128xf32>
      tpu.vector_store %arg10[%c0_136, %c0_137], %400 {strides = array<i32>} : memref<2x128xf32, #tpu.memory_space<vmem>>, vector<2x128xf32>,
    } else {
    }
    %c0 = arith.constant 0 : index
    %c0_1 = arith.constant 0 : index
    %3 = vector.load %arg9[%c0, %c0_1] : memref<2x128xf32, #tpu.memory_space<vmem>>, vector<2x128xf32>
    %c0_2 = arith.constant 0 : index
    %c0_3 = arith.constant 0 : index
    %4 = vector.load %arg10[%c0_2, %c0_3] : memref<2x128xf32, #tpu.memory_space<vmem>>, vector<2x128xf32>
    %c0_4 = arith.constant 0 : index
    %c0_5 = arith.constant 0 : index
    %5 = vector.load %arg3[%c0_4, %c0_5] : memref<128x512xbf16, #tpu.memory_space<vmem>>, vector<128x512xbf16>
    %c0_6 = arith.constant 0 : index
    %c0_7 = arith.constant 0 : index
    %c0_8 = arith.constant 0 : index
    %6 = vector.load %arg2[%c0_6, %c0_7, %c0_8] : memref<2x16x512xf32, #tpu.memory_space<vmem>>, vector<2x1x512xf32>
    %7 = vector.shape_cast %6 : vector<2x1x512xf32> to vector<2x512xf32>
    %8 = arith.truncf %3 : vector<2x128xf32> to vector<2x128xbf16>
    %cst = arith.constant dense<0.000000e+00> : vector<2x512xf32>
    %9 = tpu.matmul %8, %5, %cst {dimension_numbers = #tpu.dot_dimension_numbers<[1], [0], [0], [1], [0, 0, 1, 1], [], []>} : vector<2x128xbf16>, vector<128x512xbf16>, vector<2x512xf32> -> vector<2x512xf32>
    %10 = arith.addf %7, %9 : vector<2x512xf32>
    %11 = vector.extract_strided_slice %10 {offsets = [0, 0], sizes = [2, 384], strides = [1, 1]} : vector<2x512xf32> to vector<2x384xf32>
    %12 = arith.negf %11 : vector<2x384xf32>
    %13 = math.exp %12 : vector<2x384xf32>
    %cst_9 = arith.constant 1.000000e+00 : f32
    %14 = vector.broadcast %cst_9 : f32 to vector<2x384xf32>
    %15 = arith.addf %14, %13 : vector<2x384xf32>
    %16 = arith.divf %14, %15 : vector<2x384xf32>
    %17 = vector.extract_strided_slice %10 {offsets = [0, 384], sizes = [2, 128], strides = [1, 1]} : vector<2x512xf32> to vector<2x128xf32>
    %18 = math.tanh %17 : vector<2x128xf32>
    %19 = vector.extract_strided_slice %16 {offsets = [0, 128], sizes = [2, 128], strides = [1, 1]} : vector<2x384xf32> to vector<2x128xf32>
    %20 = arith.mulf %19, %4 : vector<2x128xf32>
    %21 = vector.extract_strided_slice %16 {offsets = [0, 0], sizes = [2, 128], strides = [1, 1]} : vector<2x384xf32> to vector<2x128xf32>
    %22 = arith.mulf %21, %18 : vector<2x128xf32>
    %23 = arith.addf %20, %22 : vector<2x128xf32>
    %24 = vector.extract_strided_slice %16 {offsets = [0, 256], sizes = [2, 128], strides = [1, 1]} : vector<2x384xf32> to vector<2x128xf32>
    %25 = math.tanh %23 : vector<2x128xf32>
    %26 = arith.mulf %24, %25 : vector<2x128xf32>
    %c0_10 = arith.constant 0 : index
    %c0_11 = arith.constant 0 : index
    %c0_12 = arith.constant 0 : index
    %27 = vector.load %arg11[%c0_10, %c0_11, %c0_12] : memref<2x16x128xf32, #tpu.memory_space<vmem>>, vector<2x1x128xf32>
    %28 = vector.shape_cast %27 : vector<2x1x128xf32> to vector<2x128xf32>
    %29 = vector.shape_cast %26 : vector<2x128xf32> to vector<2x1x128xf32>
    tpu.vector_store %arg11[%c0_10, %c0_11, %c0_12], %29 {strides = array<i32>} : memref<2x16x128xf32, #tpu.memory_space<vmem>>, vector<2x1x128xf32>,
    %c0_13 = arith.constant 0 : index
    %c1 = arith.constant 1 : index
    %c0_14 = arith.constant 0 : index
    %30 = vector.load %arg2[%c0_13, %c1, %c0_14] : memref<2x16x512xf32, #tpu.memory_space<vmem>>, vector<2x1x512xf32>
    %31 = vector.shape_cast %30 : vector<2x1x512xf32> to vector<2x512xf32>
    %32 = arith.truncf %26 : vector<2x128xf32> to vector<2x128xbf16>
    %cst_15 = arith.constant dense<0.000000e+00> : vector<2x512xf32>
    %33 = tpu.matmul %32, %5, %cst_15 {dimension_numbers = #tpu.dot_dimension_numbers<[1], [0], [0], [1], [0, 0, 1, 1], [], []>} : vector<2x128xbf16>, vector<128x512xbf16>, vector<2x512xf32> -> vector<2x512xf32>
    %34 = arith.addf %31, %33 : vector<2x512xf32>
    %35 = vector.extract_strided_slice %34 {offsets = [0, 0], sizes = [2, 384], strides = [1, 1]} : vector<2x512xf32> to vector<2x384xf32>
    %36 = arith.negf %35 : vector<2x384xf32>
    %37 = math.exp %36 : vector<2x384xf32>
    %cst_16 = arith.constant 1.000000e+00 : f32
    %38 = vector.broadcast %cst_16 : f32 to vector<2x384xf32>
    %39 = arith.addf %38, %37 : vector<2x384xf32>
    %40 = arith.divf %38, %39 : vector<2x384xf32>
    %41 = vector.extract_strided_slice %34 {offsets = [0, 384], sizes = [2, 128], strides = [1, 1]} : vector<2x512xf32> to vector<2x128xf32>
    %42 = math.tanh %41 : vector<2x128xf32>
    %43 = vector.extract_strided_slice %40 {offsets = [0, 128], sizes = [2, 128], strides = [1, 1]} : vector<2x384xf32> to vector<2x128xf32>
    %44 = arith.mulf %43, %23 : vector<2x128xf32>
    %45 = vector.extract_strided_slice %40 {offsets = [0, 0], sizes = [2, 128], strides = [1, 1]} : vector<2x384xf32> to vector<2x128xf32>
    %46 = arith.mulf %45, %42 : vector<2x128xf32>
    %47 = arith.addf %44, %46 : vector<2x128xf32>
    %48 = vector.extract_strided_slice %40 {offsets = [0, 256], sizes = [2, 128], strides = [1, 1]} : vector<2x384xf32> to vector<2x128xf32>
    %49 = math.tanh %47 : vector<2x128xf32>
    %50 = arith.mulf %48, %49 : vector<2x128xf32>
    %c0_17 = arith.constant 0 : index
    %c1_18 = arith.constant 1 : index
    %c0_19 = arith.constant 0 : index
    %51 = vector.load %arg11[%c0_17, %c1_18, %c0_19] : memref<2x16x128xf32, #tpu.memory_space<vmem>>, vector<2x1x128xf32>
    %52 = vector.shape_cast %51 : vector<2x1x128xf32> to vector<2x128xf32>
    %53 = vector.shape_cast %50 : vector<2x128xf32> to vector<2x1x128xf32>
    tpu.vector_store %arg11[%c0_17, %c1_18, %c0_19], %53 {strides = array<i32>} : memref<2x16x128xf32, #tpu.memory_space<vmem>>, vector<2x1x128xf32>,
    %c0_20 = arith.constant 0 : index
    %c2 = arith.constant 2 : index
    %c0_21 = arith.constant 0 : index
    %54 = vector.load %arg2[%c0_20, %c2, %c0_21] : memref<2x16x512xf32, #tpu.memory_space<vmem>>, vector<2x1x512xf32>
    %55 = vector.shape_cast %54 : vector<2x1x512xf32> to vector<2x512xf32>
    %56 = arith.truncf %50 : vector<2x128xf32> to vector<2x128xbf16>
    %cst_22 = arith.constant dense<0.000000e+00> : vector<2x512xf32>
    %57 = tpu.matmul %56, %5, %cst_22 {dimension_numbers = #tpu.dot_dimension_numbers<[1], [0], [0], [1], [0, 0, 1, 1], [], []>} : vector<2x128xbf16>, vector<128x512xbf16>, vector<2x512xf32> -> vector<2x512xf32>
    %58 = arith.addf %55, %57 : vector<2x512xf32>
    %59 = vector.extract_strided_slice %58 {offsets = [0, 0], sizes = [2, 384], strides = [1, 1]} : vector<2x512xf32> to vector<2x384xf32>
    %60 = arith.negf %59 : vector<2x384xf32>
    %61 = math.exp %60 : vector<2x384xf32>
    %cst_23 = arith.constant 1.000000e+00 : f32
    %62 = vector.broadcast %cst_23 : f32 to vector<2x384xf32>
    %63 = arith.addf %62, %61 : vector<2x384xf32>
    %64 = arith.divf %62, %63 : vector<2x384xf32>
    %65 = vector.extract_strided_slice %58 {offsets = [0, 384], sizes = [2, 128], strides = [1, 1]} : vector<2x512xf32> to vector<2x128xf32>
    %66 = math.tanh %65 : vector<2x128xf32>
    %67 = vector.extract_strided_slice %64 {offsets = [0, 128], sizes = [2, 128], strides = [1, 1]} : vector<2x384xf32> to vector<2x128xf32>
    %68 = arith.mulf %67, %47 : vector<2x128xf32>
    %69 = vector.extract_strided_slice %64 {offsets = [0, 0], sizes = [2, 128], strides = [1, 1]} : vector<2x384xf32> to vector<2x128xf32>
    %70 = arith.mulf %69, %66 : vector<2x128xf32>
    %71 = arith.addf %68, %70 : vector<2x128xf32>
    %72 = vector.extract_strided_slice %64 {offsets = [0, 256], sizes = [2, 128], strides = [1, 1]} : vector<2x384xf32> to vector<2x128xf32>
    %73 = math.tanh %71 : vector<2x128xf32>
    %74 = arith.mulf %72, %73 : vector<2x128xf32>
    %c0_24 = arith.constant 0 : index
    %c2_25 = arith.constant 2 : index
    %c0_26 = arith.constant 0 : index
    %75 = vector.load %arg11[%c0_24, %c2_25, %c0_26] : memref<2x16x128xf32, #tpu.memory_space<vmem>>, vector<2x1x128xf32>
    %76 = vector.shape_cast %75 : vector<2x1x128xf32> to vector<2x128xf32>
    %77 = vector.shape_cast %74 : vector<2x128xf32> to vector<2x1x128xf32>
    tpu.vector_store %arg11[%c0_24, %c2_25, %c0_26], %77 {strides = array<i32>} : memref<2x16x128xf32, #tpu.memory_space<vmem>>, vector<2x1x128xf32>,
    %c0_27 = arith.constant 0 : index
    %c3 = arith.constant 3 : index
    %c0_28 = arith.constant 0 : index
    %78 = vector.load %arg2[%c0_27, %c3, %c0_28] : memref<2x16x512xf32, #tpu.memory_space<vmem>>, vector<2x1x512xf32>
    %79 = vector.shape_cast %78 : vector<2x1x512xf32> to vector<2x512xf32>
    %80 = arith.truncf %74 : vector<2x128xf32> to vector<2x128xbf16>
    %cst_29 = arith.constant dense<0.000000e+00> : vector<2x512xf32>
    %81 = tpu.matmul %80, %5, %cst_29 {dimension_numbers = #tpu.dot_dimension_numbers<[1], [0], [0], [1], [0, 0, 1, 1], [], []>} : vector<2x128xbf16>, vector<128x512xbf16>, vector<2x512xf32> -> vector<2x512xf32>
    %82 = arith.addf %79, %81 : vector<2x512xf32>
    %83 = vector.extract_strided_slice %82 {offsets = [0, 0], sizes = [2, 384], strides = [1, 1]} : vector<2x512xf32> to vector<2x384xf32>
    %84 = arith.negf %83 : vector<2x384xf32>
    %85 = math.exp %84 : vector<2x384xf32>
    %cst_30 = arith.constant 1.000000e+00 : f32
    %86 = vector.broadcast %cst_30 : f32 to vector<2x384xf32>
    %87 = arith.addf %86, %85 : vector<2x384xf32>
    %88 = arith.divf %86, %87 : vector<2x384xf32>
    %89 = vector.extract_strided_slice %82 {offsets = [0, 384], sizes = [2, 128], strides = [1, 1]} : vector<2x512xf32> to vector<2x128xf32>
    %90 = math.tanh %89 : vector<2x128xf32>
    %91 = vector.extract_strided_slice %88 {offsets = [0, 128], sizes = [2, 128], strides = [1, 1]} : vector<2x384xf32> to vector<2x128xf32>
    %92 = arith.mulf %91, %71 : vector<2x128xf32>
    %93 = vector.extract_strided_slice %88 {offsets = [0, 0], sizes = [2, 128], strides = [1, 1]} : vector<2x384xf32> to vector<2x128xf32>
    %94 = arith.mulf %93, %90 : vector<2x128xf32>
    %95 = arith.addf %92, %94 : vector<2x128xf32>
    %96 = vector.extract_strided_slice %88 {offsets = [0, 256], sizes = [2, 128], strides = [1, 1]} : vector<2x384xf32> to vector<2x128xf32>
    %97 = math.tanh %95 : vector<2x128xf32>
    %98 = arith.mulf %96, %97 : vector<2x128xf32>
    %c0_31 = arith.constant 0 : index
    %c3_32 = arith.constant 3 : index
    %c0_33 = arith.constant 0 : index
    %99 = vector.load %arg11[%c0_31, %c3_32, %c0_33] : memref<2x16x128xf32, #tpu.memory_space<vmem>>, vector<2x1x128xf32>
    %100 = vector.shape_cast %99 : vector<2x1x128xf32> to vector<2x128xf32>
    %101 = vector.shape_cast %98 : vector<2x128xf32> to vector<2x1x128xf32>
    tpu.vector_store %arg11[%c0_31, %c3_32, %c0_33], %101 {strides = array<i32>} : memref<2x16x128xf32, #tpu.memory_space<vmem>>, vector<2x1x128xf32>,
    %c0_34 = arith.constant 0 : index
    %c4 = arith.constant 4 : index
    %c0_35 = arith.constant 0 : index
    %102 = vector.load %arg2[%c0_34, %c4, %c0_35] : memref<2x16x512xf32, #tpu.memory_space<vmem>>, vector<2x1x512xf32>
    %103 = vector.shape_cast %102 : vector<2x1x512xf32> to vector<2x512xf32>
    %104 = arith.truncf %98 : vector<2x128xf32> to vector<2x128xbf16>
    %cst_36 = arith.constant dense<0.000000e+00> : vector<2x512xf32>
    %105 = tpu.matmul %104, %5, %cst_36 {dimension_numbers = #tpu.dot_dimension_numbers<[1], [0], [0], [1], [0, 0, 1, 1], [], []>} : vector<2x128xbf16>, vector<128x512xbf16>, vector<2x512xf32> -> vector<2x512xf32>
    %106 = arith.addf %103, %105 : vector<2x512xf32>
    %107 = vector.extract_strided_slice %106 {offsets = [0, 0], sizes = [2, 384], strides = [1, 1]} : vector<2x512xf32> to vector<2x384xf32>
    %108 = arith.negf %107 : vector<2x384xf32>
    %109 = math.exp %108 : vector<2x384xf32>
    %cst_37 = arith.constant 1.000000e+00 : f32
    %110 = vector.broadcast %cst_37 : f32 to vector<2x384xf32>
    %111 = arith.addf %110, %109 : vector<2x384xf32>
    %112 = arith.divf %110, %111 : vector<2x384xf32>
    %113 = vector.extract_strided_slice %106 {offsets = [0, 384], sizes = [2, 128], strides = [1, 1]} : vector<2x512xf32> to vector<2x128xf32>
    %114 = math.tanh %113 : vector<2x128xf32>
    %115 = vector.extract_strided_slice %112 {offsets = [0, 128], sizes = [2, 128], strides = [1, 1]} : vector<2x384xf32> to vector<2x128xf32>
    %116 = arith.mulf %115, %95 : vector<2x128xf32>
    %117 = vector.extract_strided_slice %112 {offsets = [0, 0], sizes = [2, 128], strides = [1, 1]} : vector<2x384xf32> to vector<2x128xf32>
    %118 = arith.mulf %117, %114 : vector<2x128xf32>
    %119 = arith.addf %116, %118 : vector<2x128xf32>
    %120 = vector.extract_strided_slice %112 {offsets = [0, 256], sizes = [2, 128], strides = [1, 1]} : vector<2x384xf32> to vector<2x128xf32>
    %121 = math.tanh %119 : vector<2x128xf32>
    %122 = arith.mulf %120, %121 : vector<2x128xf32>
    %c0_38 = arith.constant 0 : index
    %c4_39 = arith.constant 4 : index
    %c0_40 = arith.constant 0 : index
    %123 = vector.load %arg11[%c0_38, %c4_39, %c0_40] : memref<2x16x128xf32, #tpu.memory_space<vmem>>, vector<2x1x128xf32>
    %124 = vector.shape_cast %123 : vector<2x1x128xf32> to vector<2x128xf32>
    %125 = vector.shape_cast %122 : vector<2x128xf32> to vector<2x1x128xf32>
    tpu.vector_store %arg11[%c0_38, %c4_39, %c0_40], %125 {strides = array<i32>} : memref<2x16x128xf32, #tpu.memory_space<vmem>>, vector<2x1x128xf32>,
    %c0_41 = arith.constant 0 : index
    %c5 = arith.constant 5 : index
    %c0_42 = arith.constant 0 : index
    %126 = vector.load %arg2[%c0_41, %c5, %c0_42] : memref<2x16x512xf32, #tpu.memory_space<vmem>>, vector<2x1x512xf32>
    %127 = vector.shape_cast %126 : vector<2x1x512xf32> to vector<2x512xf32>
    %128 = arith.truncf %122 : vector<2x128xf32> to vector<2x128xbf16>
    %cst_43 = arith.constant dense<0.000000e+00> : vector<2x512xf32>
    %129 = tpu.matmul %128, %5, %cst_43 {dimension_numbers = #tpu.dot_dimension_numbers<[1], [0], [0], [1], [0, 0, 1, 1], [], []>} : vector<2x128xbf16>, vector<128x512xbf16>, vector<2x512xf32> -> vector<2x512xf32>
    %130 = arith.addf %127, %129 : vector<2x512xf32>
    %131 = vector.extract_strided_slice %130 {offsets = [0, 0], sizes = [2, 384], strides = [1, 1]} : vector<2x512xf32> to vector<2x384xf32>
    %132 = arith.negf %131 : vector<2x384xf32>
    %133 = math.exp %132 : vector<2x384xf32>
    %cst_44 = arith.constant 1.000000e+00 : f32
    %134 = vector.broadcast %cst_44 : f32 to vector<2x384xf32>
    %135 = arith.addf %134, %133 : vector<2x384xf32>
    %136 = arith.divf %134, %135 : vector<2x384xf32>
    %137 = vector.extract_strided_slice %130 {offsets = [0, 384], sizes = [2, 128], strides = [1, 1]} : vector<2x512xf32> to vector<2x128xf32>
    %138 = math.tanh %137 : vector<2x128xf32>
    %139 = vector.extract_strided_slice %136 {offsets = [0, 128], sizes = [2, 128], strides = [1, 1]} : vector<2x384xf32> to vector<2x128xf32>
    %140 = arith.mulf %139, %119 : vector<2x128xf32>
    %141 = vector.extract_strided_slice %136 {offsets = [0, 0], sizes = [2, 128], strides = [1, 1]} : vector<2x384xf32> to vector<2x128xf32>
    %142 = arith.mulf %141, %138 : vector<2x128xf32>
    %143 = arith.addf %140, %142 : vector<2x128xf32>
    %144 = vector.extract_strided_slice %136 {offsets = [0, 256], sizes = [2, 128], strides = [1, 1]} : vector<2x384xf32> to vector<2x128xf32>
    %145 = math.tanh %143 : vector<2x128xf32>
    %146 = arith.mulf %144, %145 : vector<2x128xf32>
    %c0_45 = arith.constant 0 : index
    %c5_46 = arith.constant 5 : index
    %c0_47 = arith.constant 0 : index
    %147 = vector.load %arg11[%c0_45, %c5_46, %c0_47] : memref<2x16x128xf32, #tpu.memory_space<vmem>>, vector<2x1x128xf32>
    %148 = vector.shape_cast %147 : vector<2x1x128xf32> to vector<2x128xf32>
    %149 = vector.shape_cast %146 : vector<2x128xf32> to vector<2x1x128xf32>
    tpu.vector_store %arg11[%c0_45, %c5_46, %c0_47], %149 {strides = array<i32>} : memref<2x16x128xf32, #tpu.memory_space<vmem>>, vector<2x1x128xf32>,
    %c0_48 = arith.constant 0 : index
    %c6 = arith.constant 6 : index
    %c0_49 = arith.constant 0 : index
    %150 = vector.load %arg2[%c0_48, %c6, %c0_49] : memref<2x16x512xf32, #tpu.memory_space<vmem>>, vector<2x1x512xf32>
    %151 = vector.shape_cast %150 : vector<2x1x512xf32> to vector<2x512xf32>
    %152 = arith.truncf %146 : vector<2x128xf32> to vector<2x128xbf16>
    %cst_50 = arith.constant dense<0.000000e+00> : vector<2x512xf32>
    %153 = tpu.matmul %152, %5, %cst_50 {dimension_numbers = #tpu.dot_dimension_numbers<[1], [0], [0], [1], [0, 0, 1, 1], [], []>} : vector<2x128xbf16>, vector<128x512xbf16>, vector<2x512xf32> -> vector<2x512xf32>
    %154 = arith.addf %151, %153 : vector<2x512xf32>
    %155 = vector.extract_strided_slice %154 {offsets = [0, 0], sizes = [2, 384], strides = [1, 1]} : vector<2x512xf32> to vector<2x384xf32>
    %156 = arith.negf %155 : vector<2x384xf32>
    %157 = math.exp %156 : vector<2x384xf32>
    %cst_51 = arith.constant 1.000000e+00 : f32
    %158 = vector.broadcast %cst_51 : f32 to vector<2x384xf32>
    %159 = arith.addf %158, %157 : vector<2x384xf32>
    %160 = arith.divf %158, %159 : vector<2x384xf32>
    %161 = vector.extract_strided_slice %154 {offsets = [0, 384], sizes = [2, 128], strides = [1, 1]} : vector<2x512xf32> to vector<2x128xf32>
    %162 = math.tanh %161 : vector<2x128xf32>
    %163 = vector.extract_strided_slice %160 {offsets = [0, 128], sizes = [2, 128], strides = [1, 1]} : vector<2x384xf32> to vector<2x128xf32>
    %164 = arith.mulf %163, %143 : vector<2x128xf32>
    %165 = vector.extract_strided_slice %160 {offsets = [0, 0], sizes = [2, 128], strides = [1, 1]} : vector<2x384xf32> to vector<2x128xf32>
    %166 = arith.mulf %165, %162 : vector<2x128xf32>
    %167 = arith.addf %164, %166 : vector<2x128xf32>
    %168 = vector.extract_strided_slice %160 {offsets = [0, 256], sizes = [2, 128], strides = [1, 1]} : vector<2x384xf32> to vector<2x128xf32>
    %169 = math.tanh %167 : vector<2x128xf32>
    %170 = arith.mulf %168, %169 : vector<2x128xf32>
    %c0_52 = arith.constant 0 : index
    %c6_53 = arith.constant 6 : index
    %c0_54 = arith.constant 0 : index
    %171 = vector.load %arg11[%c0_52, %c6_53, %c0_54] : memref<2x16x128xf32, #tpu.memory_space<vmem>>, vector<2x1x128xf32>
    %172 = vector.shape_cast %171 : vector<2x1x128xf32> to vector<2x128xf32>
    %173 = vector.shape_cast %170 : vector<2x128xf32> to vector<2x1x128xf32>
    tpu.vector_store %arg11[%c0_52, %c6_53, %c0_54], %173 {strides = array<i32>} : memref<2x16x128xf32, #tpu.memory_space<vmem>>, vector<2x1x128xf32>,
    %c0_55 = arith.constant 0 : index
    %c7 = arith.constant 7 : index
    %c0_56 = arith.constant 0 : index
    %174 = vector.load %arg2[%c0_55, %c7, %c0_56] : memref<2x16x512xf32, #tpu.memory_space<vmem>>, vector<2x1x512xf32>
    %175 = vector.shape_cast %174 : vector<2x1x512xf32> to vector<2x512xf32>
    %176 = arith.truncf %170 : vector<2x128xf32> to vector<2x128xbf16>
    %cst_57 = arith.constant dense<0.000000e+00> : vector<2x512xf32>
    %177 = tpu.matmul %176, %5, %cst_57 {dimension_numbers = #tpu.dot_dimension_numbers<[1], [0], [0], [1], [0, 0, 1, 1], [], []>} : vector<2x128xbf16>, vector<128x512xbf16>, vector<2x512xf32> -> vector<2x512xf32>
    %178 = arith.addf %175, %177 : vector<2x512xf32>
    %179 = vector.extract_strided_slice %178 {offsets = [0, 0], sizes = [2, 384], strides = [1, 1]} : vector<2x512xf32> to vector<2x384xf32>
    %180 = arith.negf %179 : vector<2x384xf32>
    %181 = math.exp %180 : vector<2x384xf32>
    %cst_58 = arith.constant 1.000000e+00 : f32
    %182 = vector.broadcast %cst_58 : f32 to vector<2x384xf32>
    %183 = arith.addf %182, %181 : vector<2x384xf32>
    %184 = arith.divf %182, %183 : vector<2x384xf32>
    %185 = vector.extract_strided_slice %178 {offsets = [0, 384], sizes = [2, 128], strides = [1, 1]} : vector<2x512xf32> to vector<2x128xf32>
    %186 = math.tanh %185 : vector<2x128xf32>
    %187 = vector.extract_strided_slice %184 {offsets = [0, 128], sizes = [2, 128], strides = [1, 1]} : vector<2x384xf32> to vector<2x128xf32>
    %188 = arith.mulf %187, %167 : vector<2x128xf32>
    %189 = vector.extract_strided_slice %184 {offsets = [0, 0], sizes = [2, 128], strides = [1, 1]} : vector<2x384xf32> to vector<2x128xf32>
    %190 = arith.mulf %189, %186 : vector<2x128xf32>
    %191 = arith.addf %188, %190 : vector<2x128xf32>
    %192 = vector.extract_strided_slice %184 {offsets = [0, 256], sizes = [2, 128], strides = [1, 1]} : vector<2x384xf32> to vector<2x128xf32>
    %193 = math.tanh %191 : vector<2x128xf32>
    %194 = arith.mulf %192, %193 : vector<2x128xf32>
    %c0_59 = arith.constant 0 : index
    %c7_60 = arith.constant 7 : index
    %c0_61 = arith.constant 0 : index
    %195 = vector.load %arg11[%c0_59, %c7_60, %c0_61] : memref<2x16x128xf32, #tpu.memory_space<vmem>>, vector<2x1x128xf32>
    %196 = vector.shape_cast %195 : vector<2x1x128xf32> to vector<2x128xf32>
    %197 = vector.shape_cast %194 : vector<2x128xf32> to vector<2x1x128xf32>
    tpu.vector_store %arg11[%c0_59, %c7_60, %c0_61], %197 {strides = array<i32>} : memref<2x16x128xf32, #tpu.memory_space<vmem>>, vector<2x1x128xf32>,
    %c0_62 = arith.constant 0 : index
    %c8 = arith.constant 8 : index
    %c0_63 = arith.constant 0 : index
    %198 = vector.load %arg2[%c0_62, %c8, %c0_63] : memref<2x16x512xf32, #tpu.memory_space<vmem>>, vector<2x1x512xf32>
    %199 = vector.shape_cast %198 : vector<2x1x512xf32> to vector<2x512xf32>
    %200 = arith.truncf %194 : vector<2x128xf32> to vector<2x128xbf16>
    %cst_64 = arith.constant dense<0.000000e+00> : vector<2x512xf32>
    %201 = tpu.matmul %200, %5, %cst_64 {dimension_numbers = #tpu.dot_dimension_numbers<[1], [0], [0], [1], [0, 0, 1, 1], [], []>} : vector<2x128xbf16>, vector<128x512xbf16>, vector<2x512xf32> -> vector<2x512xf32>
    %202 = arith.addf %199, %201 : vector<2x512xf32>
    %203 = vector.extract_strided_slice %202 {offsets = [0, 0], sizes = [2, 384], strides = [1, 1]} : vector<2x512xf32> to vector<2x384xf32>
    %204 = arith.negf %203 : vector<2x384xf32>
    %205 = math.exp %204 : vector<2x384xf32>
    %cst_65 = arith.constant 1.000000e+00 : f32
    %206 = vector.broadcast %cst_65 : f32 to vector<2x384xf32>
    %207 = arith.addf %206, %205 : vector<2x384xf32>
    %208 = arith.divf %206, %207 : vector<2x384xf32>
    %209 = vector.extract_strided_slice %202 {offsets = [0, 384], sizes = [2, 128], strides = [1, 1]} : vector<2x512xf32> to vector<2x128xf32>
    %210 = math.tanh %209 : vector<2x128xf32>
    %211 = vector.extract_strided_slice %208 {offsets = [0, 128], sizes = [2, 128], strides = [1, 1]} : vector<2x384xf32> to vector<2x128xf32>
    %212 = arith.mulf %211, %191 : vector<2x128xf32>
    %213 = vector.extract_strided_slice %208 {offsets = [0, 0], sizes = [2, 128], strides = [1, 1]} : vector<2x384xf32> to vector<2x128xf32>
    %214 = arith.mulf %213, %210 : vector<2x128xf32>
    %215 = arith.addf %212, %214 : vector<2x128xf32>
    %216 = vector.extract_strided_slice %208 {offsets = [0, 256], sizes = [2, 128], strides = [1, 1]} : vector<2x384xf32> to vector<2x128xf32>
    %217 = math.tanh %215 : vector<2x128xf32>
    %218 = arith.mulf %216, %217 : vector<2x128xf32>
    %c0_66 = arith.constant 0 : index
    %c8_67 = arith.constant 8 : index
    %c0_68 = arith.constant 0 : index
    %219 = vector.load %arg11[%c0_66, %c8_67, %c0_68] : memref<2x16x128xf32, #tpu.memory_space<vmem>>, vector<2x1x128xf32>
    %220 = vector.shape_cast %219 : vector<2x1x128xf32> to vector<2x128xf32>
    %221 = vector.shape_cast %218 : vector<2x128xf32> to vector<2x1x128xf32>
    tpu.vector_store %arg11[%c0_66, %c8_67, %c0_68], %221 {strides = array<i32>} : memref<2x16x128xf32, #tpu.memory_space<vmem>>, vector<2x1x128xf32>,
    %c0_69 = arith.constant 0 : index
    %c9 = arith.constant 9 : index
    %c0_70 = arith.constant 0 : index
    %222 = vector.load %arg2[%c0_69, %c9, %c0_70] : memref<2x16x512xf32, #tpu.memory_space<vmem>>, vector<2x1x512xf32>
    %223 = vector.shape_cast %222 : vector<2x1x512xf32> to vector<2x512xf32>
    %224 = arith.truncf %218 : vector<2x128xf32> to vector<2x128xbf16>
    %cst_71 = arith.constant dense<0.000000e+00> : vector<2x512xf32>
    %225 = tpu.matmul %224, %5, %cst_71 {dimension_numbers = #tpu.dot_dimension_numbers<[1], [0], [0], [1], [0, 0, 1, 1], [], []>} : vector<2x128xbf16>, vector<128x512xbf16>, vector<2x512xf32> -> vector<2x512xf32>
    %226 = arith.addf %223, %225 : vector<2x512xf32>
    %227 = vector.extract_strided_slice %226 {offsets = [0, 0], sizes = [2, 384], strides = [1, 1]} : vector<2x512xf32> to vector<2x384xf32>
    %228 = arith.negf %227 : vector<2x384xf32>
    %229 = math.exp %228 : vector<2x384xf32>
    %cst_72 = arith.constant 1.000000e+00 : f32
    %230 = vector.broadcast %cst_72 : f32 to vector<2x384xf32>
    %231 = arith.addf %230, %229 : vector<2x384xf32>
    %232 = arith.divf %230, %231 : vector<2x384xf32>
    %233 = vector.extract_strided_slice %226 {offsets = [0, 384], sizes = [2, 128], strides = [1, 1]} : vector<2x512xf32> to vector<2x128xf32>
    %234 = math.tanh %233 : vector<2x128xf32>
    %235 = vector.extract_strided_slice %232 {offsets = [0, 128], sizes = [2, 128], strides = [1, 1]} : vector<2x384xf32> to vector<2x128xf32>
    %236 = arith.mulf %235, %215 : vector<2x128xf32>
    %237 = vector.extract_strided_slice %232 {offsets = [0, 0], sizes = [2, 128], strides = [1, 1]} : vector<2x384xf32> to vector<2x128xf32>
    %238 = arith.mulf %237, %234 : vector<2x128xf32>
    %239 = arith.addf %236, %238 : vector<2x128xf32>
    %240 = vector.extract_strided_slice %232 {offsets = [0, 256], sizes = [2, 128], strides = [1, 1]} : vector<2x384xf32> to vector<2x128xf32>
    %241 = math.tanh %239 : vector<2x128xf32>
    %242 = arith.mulf %240, %241 : vector<2x128xf32>
    %c0_73 = arith.constant 0 : index
    %c9_74 = arith.constant 9 : index
    %c0_75 = arith.constant 0 : index
    %243 = vector.load %arg11[%c0_73, %c9_74, %c0_75] : memref<2x16x128xf32, #tpu.memory_space<vmem>>, vector<2x1x128xf32>
    %244 = vector.shape_cast %243 : vector<2x1x128xf32> to vector<2x128xf32>
    %245 = vector.shape_cast %242 : vector<2x128xf32> to vector<2x1x128xf32>
    tpu.vector_store %arg11[%c0_73, %c9_74, %c0_75], %245 {strides = array<i32>} : memref<2x16x128xf32, #tpu.memory_space<vmem>>, vector<2x1x128xf32>,
    %c0_76 = arith.constant 0 : index
    %c10 = arith.constant 10 : index
    %c0_77 = arith.constant 0 : index
    %246 = vector.load %arg2[%c0_76, %c10, %c0_77] : memref<2x16x512xf32, #tpu.memory_space<vmem>>, vector<2x1x512xf32>
    %247 = vector.shape_cast %246 : vector<2x1x512xf32> to vector<2x512xf32>
    %248 = arith.truncf %242 : vector<2x128xf32> to vector<2x128xbf16>
    %cst_78 = arith.constant dense<0.000000e+00> : vector<2x512xf32>
    %249 = tpu.matmul %248, %5, %cst_78 {dimension_numbers = #tpu.dot_dimension_numbers<[1], [0], [0], [1], [0, 0, 1, 1], [], []>} : vector<2x128xbf16>, vector<128x512xbf16>, vector<2x512xf32> -> vector<2x512xf32>
    %250 = arith.addf %247, %249 : vector<2x512xf32>
    %251 = vector.extract_strided_slice %250 {offsets = [0, 0], sizes = [2, 384], strides = [1, 1]} : vector<2x512xf32> to vector<2x384xf32>
    %252 = arith.negf %251 : vector<2x384xf32>
    %253 = math.exp %252 : vector<2x384xf32>
    %cst_79 = arith.constant 1.000000e+00 : f32
    %254 = vector.broadcast %cst_79 : f32 to vector<2x384xf32>
    %255 = arith.addf %254, %253 : vector<2x384xf32>
    %256 = arith.divf %254, %255 : vector<2x384xf32>
    %257 = vector.extract_strided_slice %250 {offsets = [0, 384], sizes = [2, 128], strides = [1, 1]} : vector<2x512xf32> to vector<2x128xf32>
    %258 = math.tanh %257 : vector<2x128xf32>
    %259 = vector.extract_strided_slice %256 {offsets = [0, 128], sizes = [2, 128], strides = [1, 1]} : vector<2x384xf32> to vector<2x128xf32>
    %260 = arith.mulf %259, %239 : vector<2x128xf32>
    %261 = vector.extract_strided_slice %256 {offsets = [0, 0], sizes = [2, 128], strides = [1, 1]} : vector<2x384xf32> to vector<2x128xf32>
    %262 = arith.mulf %261, %258 : vector<2x128xf32>
    %263 = arith.addf %260, %262 : vector<2x128xf32>
    %264 = vector.extract_strided_slice %256 {offsets = [0, 256], sizes = [2, 128], strides = [1, 1]} : vector<2x384xf32> to vector<2x128xf32>
    %265 = math.tanh %263 : vector<2x128xf32>
    %266 = arith.mulf %264, %265 : vector<2x128xf32>
    %c0_80 = arith.constant 0 : index
    %c10_81 = arith.constant 10 : index
    %c0_82 = arith.constant 0 : index
    %267 = vector.load %arg11[%c0_80, %c10_81, %c0_82] : memref<2x16x128xf32, #tpu.memory_space<vmem>>, vector<2x1x128xf32>
    %268 = vector.shape_cast %267 : vector<2x1x128xf32> to vector<2x128xf32>
    %269 = vector.shape_cast %266 : vector<2x128xf32> to vector<2x1x128xf32>
    tpu.vector_store %arg11[%c0_80, %c10_81, %c0_82], %269 {strides = array<i32>} : memref<2x16x128xf32, #tpu.memory_space<vmem>>, vector<2x1x128xf32>,
    %c0_83 = arith.constant 0 : index
    %c11 = arith.constant 11 : index
    %c0_84 = arith.constant 0 : index
    %270 = vector.load %arg2[%c0_83, %c11, %c0_84] : memref<2x16x512xf32, #tpu.memory_space<vmem>>, vector<2x1x512xf32>
    %271 = vector.shape_cast %270 : vector<2x1x512xf32> to vector<2x512xf32>
    %272 = arith.truncf %266 : vector<2x128xf32> to vector<2x128xbf16>
    %cst_85 = arith.constant dense<0.000000e+00> : vector<2x512xf32>
    %273 = tpu.matmul %272, %5, %cst_85 {dimension_numbers = #tpu.dot_dimension_numbers<[1], [0], [0], [1], [0, 0, 1, 1], [], []>} : vector<2x128xbf16>, vector<128x512xbf16>, vector<2x512xf32> -> vector<2x512xf32>
    %274 = arith.addf %271, %273 : vector<2x512xf32>
    %275 = vector.extract_strided_slice %274 {offsets = [0, 0], sizes = [2, 384], strides = [1, 1]} : vector<2x512xf32> to vector<2x384xf32>
    %276 = arith.negf %275 : vector<2x384xf32>
    %277 = math.exp %276 : vector<2x384xf32>
    %cst_86 = arith.constant 1.000000e+00 : f32
    %278 = vector.broadcast %cst_86 : f32 to vector<2x384xf32>
    %279 = arith.addf %278, %277 : vector<2x384xf32>
    %280 = arith.divf %278, %279 : vector<2x384xf32>
    %281 = vector.extract_strided_slice %274 {offsets = [0, 384], sizes = [2, 128], strides = [1, 1]} : vector<2x512xf32> to vector<2x128xf32>
    %282 = math.tanh %281 : vector<2x128xf32>
    %283 = vector.extract_strided_slice %280 {offsets = [0, 128], sizes = [2, 128], strides = [1, 1]} : vector<2x384xf32> to vector<2x128xf32>
    %284 = arith.mulf %283, %263 : vector<2x128xf32>
    %285 = vector.extract_strided_slice %280 {offsets = [0, 0], sizes = [2, 128], strides = [1, 1]} : vector<2x384xf32> to vector<2x128xf32>
    %286 = arith.mulf %285, %282 : vector<2x128xf32>
    %287 = arith.addf %284, %286 : vector<2x128xf32>
    %288 = vector.extract_strided_slice %280 {offsets = [0, 256], sizes = [2, 128], strides = [1, 1]} : vector<2x384xf32> to vector<2x128xf32>
    %289 = math.tanh %287 : vector<2x128xf32>
    %290 = arith.mulf %288, %289 : vector<2x128xf32>
    %c0_87 = arith.constant 0 : index
    %c11_88 = arith.constant 11 : index
    %c0_89 = arith.constant 0 : index
    %291 = vector.load %arg11[%c0_87, %c11_88, %c0_89] : memref<2x16x128xf32, #tpu.memory_space<vmem>>, vector<2x1x128xf32>
    %292 = vector.shape_cast %291 : vector<2x1x128xf32> to vector<2x128xf32>
    %293 = vector.shape_cast %290 : vector<2x128xf32> to vector<2x1x128xf32>
    tpu.vector_store %arg11[%c0_87, %c11_88, %c0_89], %293 {strides = array<i32>} : memref<2x16x128xf32, #tpu.memory_space<vmem>>, vector<2x1x128xf32>,
    %c0_90 = arith.constant 0 : index
    %c12 = arith.constant 12 : index
    %c0_91 = arith.constant 0 : index
    %294 = vector.load %arg2[%c0_90, %c12, %c0_91] : memref<2x16x512xf32, #tpu.memory_space<vmem>>, vector<2x1x512xf32>
    %295 = vector.shape_cast %294 : vector<2x1x512xf32> to vector<2x512xf32>
    %296 = arith.truncf %290 : vector<2x128xf32> to vector<2x128xbf16>
    %cst_92 = arith.constant dense<0.000000e+00> : vector<2x512xf32>
    %297 = tpu.matmul %296, %5, %cst_92 {dimension_numbers = #tpu.dot_dimension_numbers<[1], [0], [0], [1], [0, 0, 1, 1], [], []>} : vector<2x128xbf16>, vector<128x512xbf16>, vector<2x512xf32> -> vector<2x512xf32>
    %298 = arith.addf %295, %297 : vector<2x512xf32>
    %299 = vector.extract_strided_slice %298 {offsets = [0, 0], sizes = [2, 384], strides = [1, 1]} : vector<2x512xf32> to vector<2x384xf32>
    %300 = arith.negf %299 : vector<2x384xf32>
    %301 = math.exp %300 : vector<2x384xf32>
    %cst_93 = arith.constant 1.000000e+00 : f32
    %302 = vector.broadcast %cst_93 : f32 to vector<2x384xf32>
    %303 = arith.addf %302, %301 : vector<2x384xf32>
    %304 = arith.divf %302, %303 : vector<2x384xf32>
    %305 = vector.extract_strided_slice %298 {offsets = [0, 384], sizes = [2, 128], strides = [1, 1]} : vector<2x512xf32> to vector<2x128xf32>
    %306 = math.tanh %305 : vector<2x128xf32>
    %307 = vector.extract_strided_slice %304 {offsets = [0, 128], sizes = [2, 128], strides = [1, 1]} : vector<2x384xf32> to vector<2x128xf32>
    %308 = arith.mulf %307, %287 : vector<2x128xf32>
    %309 = vector.extract_strided_slice %304 {offsets = [0, 0], sizes = [2, 128], strides = [1, 1]} : vector<2x384xf32> to vector<2x128xf32>
    %310 = arith.mulf %309, %306 : vector<2x128xf32>
    %311 = arith.addf %308, %310 : vector<2x128xf32>
    %312 = vector.extract_strided_slice %304 {offsets = [0, 256], sizes = [2, 128], strides = [1, 1]} : vector<2x384xf32> to vector<2x128xf32>
    %313 = math.tanh %311 : vector<2x128xf32>
    %314 = arith.mulf %312, %313 : vector<2x128xf32>
    %c0_94 = arith.constant 0 : index
    %c12_95 = arith.constant 12 : index
    %c0_96 = arith.constant 0 : index
    %315 = vector.load %arg11[%c0_94, %c12_95, %c0_96] : memref<2x16x128xf32, #tpu.memory_space<vmem>>, vector<2x1x128xf32>
    %316 = vector.shape_cast %315 : vector<2x1x128xf32> to vector<2x128xf32>
    %317 = vector.shape_cast %314 : vector<2x128xf32> to vector<2x1x128xf32>
    tpu.vector_store %arg11[%c0_94, %c12_95, %c0_96], %317 {strides = array<i32>} : memref<2x16x128xf32, #tpu.memory_space<vmem>>, vector<2x1x128xf32>,
    %c0_97 = arith.constant 0 : index
    %c13 = arith.constant 13 : index
    %c0_98 = arith.constant 0 : index
    %318 = vector.load %arg2[%c0_97, %c13, %c0_98] : memref<2x16x512xf32, #tpu.memory_space<vmem>>, vector<2x1x512xf32>
    %319 = vector.shape_cast %318 : vector<2x1x512xf32> to vector<2x512xf32>
    %320 = arith.truncf %314 : vector<2x128xf32> to vector<2x128xbf16>
    %cst_99 = arith.constant dense<0.000000e+00> : vector<2x512xf32>
    %321 = tpu.matmul %320, %5, %cst_99 {dimension_numbers = #tpu.dot_dimension_numbers<[1], [0], [0], [1], [0, 0, 1, 1], [], []>} : vector<2x128xbf16>, vector<128x512xbf16>, vector<2x512xf32> -> vector<2x512xf32>
    %322 = arith.addf %319, %321 : vector<2x512xf32>
    %323 = vector.extract_strided_slice %322 {offsets = [0, 0], sizes = [2, 384], strides = [1, 1]} : vector<2x512xf32> to vector<2x384xf32>
    %324 = arith.negf %323 : vector<2x384xf32>
    %325 = math.exp %324 : vector<2x384xf32>
    %cst_100 = arith.constant 1.000000e+00 : f32
    %326 = vector.broadcast %cst_100 : f32 to vector<2x384xf32>
    %327 = arith.addf %326, %325 : vector<2x384xf32>
    %328 = arith.divf %326, %327 : vector<2x384xf32>
    %329 = vector.extract_strided_slice %322 {offsets = [0, 384], sizes = [2, 128], strides = [1, 1]} : vector<2x512xf32> to vector<2x128xf32>
    %330 = math.tanh %329 : vector<2x128xf32>
    %331 = vector.extract_strided_slice %328 {offsets = [0, 128], sizes = [2, 128], strides = [1, 1]} : vector<2x384xf32> to vector<2x128xf32>
    %332 = arith.mulf %331, %311 : vector<2x128xf32>
    %333 = vector.extract_strided_slice %328 {offsets = [0, 0], sizes = [2, 128], strides = [1, 1]} : vector<2x384xf32> to vector<2x128xf32>
    %334 = arith.mulf %333, %330 : vector<2x128xf32>
    %335 = arith.addf %332, %334 : vector<2x128xf32>
    %336 = vector.extract_strided_slice %328 {offsets = [0, 256], sizes = [2, 128], strides = [1, 1]} : vector<2x384xf32> to vector<2x128xf32>
    %337 = math.tanh %335 : vector<2x128xf32>
    %338 = arith.mulf %336, %337 : vector<2x128xf32>
    %c0_101 = arith.constant 0 : index
    %c13_102 = arith.constant 13 : index
    %c0_103 = arith.constant 0 : index
    %339 = vector.load %arg11[%c0_101, %c13_102, %c0_103] : memref<2x16x128xf32, #tpu.memory_space<vmem>>, vector<2x1x128xf32>
    %340 = vector.shape_cast %339 : vector<2x1x128xf32> to vector<2x128xf32>
    %341 = vector.shape_cast %338 : vector<2x128xf32> to vector<2x1x128xf32>
    tpu.vector_store %arg11[%c0_101, %c13_102, %c0_103], %341 {strides = array<i32>} : memref<2x16x128xf32, #tpu.memory_space<vmem>>, vector<2x1x128xf32>,
    %c0_104 = arith.constant 0 : index
    %c14 = arith.constant 14 : index
    %c0_105 = arith.constant 0 : index
    %342 = vector.load %arg2[%c0_104, %c14, %c0_105] : memref<2x16x512xf32, #tpu.memory_space<vmem>>, vector<2x1x512xf32>
    %343 = vector.shape_cast %342 : vector<2x1x512xf32> to vector<2x512xf32>
    %344 = arith.truncf %338 : vector<2x128xf32> to vector<2x128xbf16>
    %cst_106 = arith.constant dense<0.000000e+00> : vector<2x512xf32>
    %345 = tpu.matmul %344, %5, %cst_106 {dimension_numbers = #tpu.dot_dimension_numbers<[1], [0], [0], [1], [0, 0, 1, 1], [], []>} : vector<2x128xbf16>, vector<128x512xbf16>, vector<2x512xf32> -> vector<2x512xf32>
    %346 = arith.addf %343, %345 : vector<2x512xf32>
    %347 = vector.extract_strided_slice %346 {offsets = [0, 0], sizes = [2, 384], strides = [1, 1]} : vector<2x512xf32> to vector<2x384xf32>
    %348 = arith.negf %347 : vector<2x384xf32>
    %349 = math.exp %348 : vector<2x384xf32>
    %cst_107 = arith.constant 1.000000e+00 : f32
    %350 = vector.broadcast %cst_107 : f32 to vector<2x384xf32>
    %351 = arith.addf %350, %349 : vector<2x384xf32>
    %352 = arith.divf %350, %351 : vector<2x384xf32>
    %353 = vector.extract_strided_slice %346 {offsets = [0, 384], sizes = [2, 128], strides = [1, 1]} : vector<2x512xf32> to vector<2x128xf32>
    %354 = math.tanh %353 : vector<2x128xf32>
    %355 = vector.extract_strided_slice %352 {offsets = [0, 128], sizes = [2, 128], strides = [1, 1]} : vector<2x384xf32> to vector<2x128xf32>
    %356 = arith.mulf %355, %335 : vector<2x128xf32>
    %357 = vector.extract_strided_slice %352 {offsets = [0, 0], sizes = [2, 128], strides = [1, 1]} : vector<2x384xf32> to vector<2x128xf32>
    %358 = arith.mulf %357, %354 : vector<2x128xf32>
    %359 = arith.addf %356, %358 : vector<2x128xf32>
    %360 = vector.extract_strided_slice %352 {offsets = [0, 256], sizes = [2, 128], strides = [1, 1]} : vector<2x384xf32> to vector<2x128xf32>
    %361 = math.tanh %359 : vector<2x128xf32>
    %362 = arith.mulf %360, %361 : vector<2x128xf32>
    %c0_108 = arith.constant 0 : index
    %c14_109 = arith.constant 14 : index
    %c0_110 = arith.constant 0 : index
    %363 = vector.load %arg11[%c0_108, %c14_109, %c0_110] : memref<2x16x128xf32, #tpu.memory_space<vmem>>, vector<2x1x128xf32>
    %364 = vector.shape_cast %363 : vector<2x1x128xf32> to vector<2x128xf32>
    %365 = vector.shape_cast %362 : vector<2x128xf32> to vector<2x1x128xf32>
    tpu.vector_store %arg11[%c0_108, %c14_109, %c0_110], %365 {strides = array<i32>} : memref<2x16x128xf32, #tpu.memory_space<vmem>>, vector<2x1x128xf32>,
    %c0_111 = arith.constant 0 : index
    %c15 = arith.constant 15 : index
    %c0_112 = arith.constant 0 : index
    %366 = vector.load %arg2[%c0_111, %c15, %c0_112] : memref<2x16x512xf32, #tpu.memory_space<vmem>>, vector<2x1x512xf32>
    %367 = vector.shape_cast %366 : vector<2x1x512xf32> to vector<2x512xf32>
    %368 = arith.truncf %362 : vector<2x128xf32> to vector<2x128xbf16>
    %cst_113 = arith.constant dense<0.000000e+00> : vector<2x512xf32>
    %369 = tpu.matmul %368, %5, %cst_113 {dimension_numbers = #tpu.dot_dimension_numbers<[1], [0], [0], [1], [0, 0, 1, 1], [], []>} : vector<2x128xbf16>, vector<128x512xbf16>, vector<2x512xf32> -> vector<2x512xf32>
    %370 = arith.addf %367, %369 : vector<2x512xf32>
    %371 = vector.extract_strided_slice %370 {offsets = [0, 0], sizes = [2, 384], strides = [1, 1]} : vector<2x512xf32> to vector<2x384xf32>
    %372 = arith.negf %371 : vector<2x384xf32>
    %373 = math.exp %372 : vector<2x384xf32>
    %cst_114 = arith.constant 1.000000e+00 : f32
    %374 = vector.broadcast %cst_114 : f32 to vector<2x384xf32>
    %375 = arith.addf %374, %373 : vector<2x384xf32>
    %376 = arith.divf %374, %375 : vector<2x384xf32>
    %377 = vector.extract_strided_slice %370 {offsets = [0, 384], sizes = [2, 128], strides = [1, 1]} : vector<2x512xf32> to vector<2x128xf32>
    %378 = math.tanh %377 : vector<2x128xf32>
    %379 = vector.extract_strided_slice %376 {offsets = [0, 128], sizes = [2, 128], strides = [1, 1]} : vector<2x384xf32> to vector<2x128xf32>
    %380 = arith.mulf %379, %359 : vector<2x128xf32>
    %381 = vector.extract_strided_slice %376 {offsets = [0, 0], sizes = [2, 128], strides = [1, 1]} : vector<2x384xf32> to vector<2x128xf32>
    %382 = arith.mulf %381, %378 : vector<2x128xf32>
    %383 = arith.addf %380, %382 : vector<2x128xf32>
    %384 = vector.extract_strided_slice %376 {offsets = [0, 256], sizes = [2, 128], strides = [1, 1]} : vector<2x384xf32> to vector<2x128xf32>
    %385 = math.tanh %383 : vector<2x128xf32>
    %386 = arith.mulf %384, %385 : vector<2x128xf32>
    %c0_115 = arith.constant 0 : index
    %c15_116 = arith.constant 15 : index
    %c0_117 = arith.constant 0 : index
    %387 = vector.load %arg11[%c0_115, %c15_116, %c0_117] : memref<2x16x128xf32, #tpu.memory_space<vmem>>, vector<2x1x128xf32>
    %388 = vector.shape_cast %387 : vector<2x1x128xf32> to vector<2x128xf32>
    %389 = vector.shape_cast %386 : vector<2x128xf32> to vector<2x1x128xf32>
    tpu.vector_store %arg11[%c0_115, %c15_116, %c0_117], %389 {strides = array<i32>} : memref<2x16x128xf32, #tpu.memory_space<vmem>>, vector<2x1x128xf32>,
    %c0_118 = arith.constant 0 : index
    %c0_119 = arith.constant 0 : index
    %390 = vector.load %arg9[%c0_118, %c0_119] : memref<2x128xf32, #tpu.memory_space<vmem>>, vector<2x128xf32>
    tpu.vector_store %arg9[%c0_118, %c0_119], %386 {strides = array<i32>} : memref<2x128xf32, #tpu.memory_space<vmem>>, vector<2x128xf32>,
    %c0_120 = arith.constant 0 : index
    %c0_121 = arith.constant 0 : index
    %391 = vector.load %arg10[%c0_120, %c0_121] : memref<2x128xf32, #tpu.memory_space<vmem>>, vector<2x128xf32>
    tpu.vector_store %arg10[%c0_120, %c0_121], %383 {strides = array<i32>} : memref<2x128xf32, #tpu.memory_space<vmem>>, vector<2x128xf32>,
    %c0_122 = arith.constant 0 : index
    %c0_123 = arith.constant 0 : index
    %c0_124 = arith.constant 0 : index
    %392 = vector.load %arg11[%c0_122, %c0_123, %c0_124] : memref<2x16x128xf32, #tpu.memory_space<vmem>>, vector<2x16x128xf32>
    %393 = arith.truncf %392 : vector<2x16x128xf32> to vector<2x16x128xbf16>
    %c0_125 = arith.constant 0 : index
    %c0_126 = arith.constant 0 : index
    %c0_127 = arith.constant 0 : index
    %394 = vector.load %arg6[%c0_125, %c0_126, %c0_127] : memref<2x16x128xbf16, #tpu.memory_space<vmem>>, vector<2x16x128xbf16>
    tpu.vector_store %arg6[%c0_125, %c0_126, %c0_127], %393 {strides = array<i32>} : memref<2x16x128xbf16, #tpu.memory_space<vmem>>, vector<2x16x128xbf16>,
    %c0_i32_128 = arith.constant 0 : i32
    %395 = arith.cmpi eq, %arg1, %c0_i32_128 : i32
    %396 = arith.extui %395 : i1 to i32
    %c0_i32_129 = arith.constant 0 : i32
    %397 = arith.cmpi ne, %396, %c0_i32_129 : i32
    scf.if %397 {
      %c0_130 = arith.constant 0 : index
      %c0_131 = arith.constant 0 : index
      %398 = vector.load %arg7[%c0_130, %c0_131] : memref<2x128xf32, #tpu.memory_space<vmem>>, vector<2x128xf32>
      tpu.vector_store %arg7[%c0_130, %c0_131], %386 {strides = array<i32>} : memref<2x128xf32, #tpu.memory_space<vmem>>, vector<2x128xf32>,
      %c0_132 = arith.constant 0 : index
      %c0_133 = arith.constant 0 : index
      %399 = vector.load %arg8[%c0_132, %c0_133] : memref<2x128xf32, #tpu.memory_space<vmem>>, vector<2x128xf32>
      tpu.vector_store %arg8[%c0_132, %c0_133], %383 {strides = array<i32>} : memref<2x128xf32, #tpu.memory_space<vmem>>, vector<2x128xf32>,
    } else {
    }
    return
  }
  func.func @transform_0(%arg0: i32, %arg1: i32) -> (i32, i32, i32) {
    %c0_i32 = arith.constant 0 : i32
    %c0_i32_0 = arith.constant 0 : i32
    return %arg0, %arg1, %c0_i32 : i32, i32, i32
  }
  func.func @transform_1(%arg0: i32, %arg1: i32) -> (i32, i32) {
    %c0_i32 = arith.constant 0 : i32
    %c0_i32_0 = arith.constant 0 : i32
    %c0_i32_1 = arith.constant 0 : i32
    return %c0_i32, %c0_i32_0 : i32, i32
  }
  func.func @transform_2(%arg0: i32, %arg1: i32) -> (i32, i32) {
    %c0_i32 = arith.constant 0 : i32
    %c0_i32_0 = arith.constant 0 : i32
    return %arg0, %c0_i32 : i32, i32
  }
  func.func @transform_3(%arg0: i32, %arg1: i32) -> (i32, i32) {
    %c0_i32 = arith.constant 0 : i32
    %c0_i32_0 = arith.constant 0 : i32
    return %arg0, %c0_i32 : i32, i32
  }
  func.func @transform_4(%arg0: i32, %arg1: i32) -> (i32, i32, i32) {
    %c0_i32 = arith.constant 0 : i32
    %c0_i32_0 = arith.constant 0 : i32
    return %arg0, %arg1, %c0_i32 : i32, i32, i32
  }
  func.func @transform_5(%arg0: i32, %arg1: i32) -> (i32, i32) {
    %c0_i32 = arith.constant 0 : i32
    %c0_i32_0 = arith.constant 0 : i32
    return %arg0, %c0_i32 : i32, i32
  }
  func.func @transform_6(%arg0: i32, %arg1: i32) -> (i32, i32) {
    %c0_i32 = arith.constant 0 : i32
    %c0_i32_0 = arith.constant 0 : i32
    return %arg0, %c0_i32 : i32, i32
  }
}

</mosaic_0001>

<llo_original>
// kernel: rnnlm_forward.5
$region0: #{rnnlm_forward.5}
  #allocation0 [shape = 'u32[]', space=smem, size = 0x4, offset = 0x4, fixed_abs, tag = 'smem constant byte address 0x4 - core index']
  #allocation1 [shape = 'u32[144,128]{1,0:T(1,128)}', space=vmem, size = 0x12000, scoped, tag = 'internal scratch']
  %s0 = inlined_call_operand.vmem [shape: bf16[32,128], index: 0, kind: input, shape index: {}]
  %s1 = inlined_call_operand.vmem [shape: bf16[128,128], index: 1, kind: input, shape index: {}]
  %s2 = inlined_call_operand.vmem [shape: f32[1,128], index: 2, kind: input, shape index: {}]
  %s3 = inlined_call_operand.hbm [shape: bf16[32,128], index: 3, kind: output, shape index: {}]
  %s4 = sld [smem:[#allocation0]]
  $region22: #{rnnlm_forward.5} parent=0
    _
  %s6 = ssub.s32 1, %s4
  %s7 = scalar_select 0, %s6, %s4
  $region1: #{rnnlm_forward.5} parent=0
    #allocation2 [shape = 'u8[8192]{0}', space=vmem, size = 0x2000, scoped, tag = 'output window, operand 0, single buffered']
    #allocation3 [shape = 's32[1]{0}', space=sflag, size = 0x4, scoped, tag = 'scoped memory for rnnlm_forward.5']
    %8 = vsyncpa [#allocation3], 0
    // Predicated region
    $region2: #{rnnlm_forward.5} parent=1 // pred_check
      _
    $region3: #{rnnlm_forward.5} parent=1 // pred_check_branch
      %10 = sbr.rel (0) target = $region5
    $region4: #{rnnlm_forward.5} parent=1 // pred_region
      _
    $region5: #{rnnlm_forward.5} parent=1 // pred_fallthru
      _
    // Predicated region
    $region6: #{rnnlm_forward.5} parent=1 // pred_check
      _
    $region7: #{rnnlm_forward.5} parent=1 // pred_check_branch
      %12 = sbr.rel (0) target = $region9
    $region8: #{rnnlm_forward.5} parent=1 // pred_region
      _
    $region9: #{rnnlm_forward.5} parent=1 // pred_fallthru
      _
    // Predicated region
    $region10: #{rnnlm_forward.5} parent=1 // pred_check
      _
    $region11: #{rnnlm_forward.5} parent=1 // pred_check_branch
      %14 = sbr.rel (0) target = $region13
    $region12: #{rnnlm_forward.5} parent=1 // pred_region
      _
    $region13: #{rnnlm_forward.5} parent=1 // pred_fallthru
      _
    %v16 = vld [vmem:[%s0] sm:$0xf]
    %v17 = vld [vmem:[%s0 + $0x4] sm:$0xf]
    %v18 = vld [vmem:[%s0 + $0x8] sm:$0xf]
    %v19 = vld [vmem:[%s0 + $0xc] sm:$0xf]
    %v20 = vld [vmem:[%s1] sm:$0xf]
    %v21 = vld [vmem:[%s1 + $0x4] sm:$0xf]
    %v22 = vld [vmem:[%s1 + $0x8] sm:$0xf]
    %v23 = vld [vmem:[%s1 + $0xc] sm:$0xf]
    %v24 = vld [vmem:[%s1 + $0x10] sm:$0xf]
    %v25 = vld [vmem:[%s1 + $0x14] sm:$0xf]
    %v26 = vld [vmem:[%s1 + $0x18] sm:$0xf]
    %v27 = vld [vmem:[%s1 + $0x1c] sm:$0xf]
    %v28 = vld [vmem:[%s1 + $0x20] sm:$0xf]
    %v29 = vld [vmem:[%s1 + $0x24] sm:$0xf]
    %v30 = vld [vmem:[%s1 + $0x28] sm:$0xf]
    %v31 = vld [vmem:[%s1 + $0x2c] sm:$0xf]
    %v32 = vld [vmem:[%s1 + $0x30] sm:$0xf]
    %v33 = vld [vmem:[%s1 + $0x34] sm:$0xf]
    %v34 = vld [vmem:[%s1 + $0x38] sm:$0xf]
    %v35 = vld [vmem:[%s1 + $0x3c] sm:$0xf]
    %v36 = vld [vmem:[%s2] sm:$0x1]
    %v38 = vlaneseq
    %v39 = vshrl.u32 %v38, 7
    %v40 = vsub.s32 0, %v39
    %v41 = vrot.slane %v36, %v40
    %v47 = vunpack.c.l.b16 %v16
    %v48 = vunpack.c.l.b16 %v17
    %v49 = vunpack.c.l.b16 %v18
    %v50 = vunpack.c.l.b16 %v19
    %v51 = vpack.c.b16 %v48, %v47
    %v52 = vpack.c.b16 %v50, %v49
    %v71 = vunpack.c.l.b16 %v20
    %v72 = vunpack.c.l.b16 %v21
    %v73 = vunpack.c.l.b16 %v22
    %v74 = vunpack.c.l.b16 %v23
    %v75 = vunpack.c.l.b16 %v24
    %v76 = vunpack.c.l.b16 %v25
    %v77 = vunpack.c.l.b16 %v26
    %v78 = vunpack.c.l.b16 %v27
    %v79 = vunpack.c.l.b16 %v28
    %v80 = vunpack.c.l.b16 %v29
    %v81 = vunpack.c.l.b16 %v30
    %v82 = vunpack.c.l.b16 %v31
    %v83 = vunpack.c.l.b16 %v32
    %v84 = vunpack.c.l.b16 %v33
    %v85 = vunpack.c.l.b16 %v34
    %v86 = vunpack.c.l.b16 %v35
    %v87 = vpack.c.b16 %v72, %v71
    %v88 = vpack.c.b16 %v74, %v73
    %v89 = vpack.c.b16 %v76, %v75
    %v90 = vpack.c.b16 %v78, %v77
    %v91 = vpack.c.b16 %v80, %v79
    %v92 = vpack.c.b16 %v82, %v81
    %v93 = vpack.c.b16 %v84, %v83
    %v94 = vpack.c.b16 %v86, %v85
    %103 = vmatprep.subr.bf16.mxu0 0
    %104 = vmatpush1.bf16.msra.mxu0 %v94
    %105 = vmatprep.subr.bf16.mxu0 0
    %106 = vmatpush1.bf16.msra.mxu0 %v93
    %107 = vmatprep.subr.bf16.mxu0 0
    %108 = vmatpush1.bf16.msra.mxu0 %v92
    %109 = vmatprep.subr.bf16.mxu0 0
    %110 = vmatpush1.bf16.msra.mxu0 %v91
    %111 = vmatprep.subr.bf16.mxu0 0
    %112 = vmatpush1.bf16.msra.mxu0 %v90
    %113 = vmatprep.subr.bf16.mxu0 0
    %114 = vmatpush1.bf16.msra.mxu0 %v89
    %115 = vmatprep.subr.bf16.mxu0 0
    %116 = vmatpush1.bf16.msra.mxu0 %v88
    %117 = vmatprep.subr.bf16.mxu0 0
    %118 = vmatpush1.bf16.msra.mxu0 %v87
    %119 = vmatprep.subr.bf16.mxu0 0
    %120 = vmatpush2.bf16.msra.mxu0 0
    %121 = vmatprep.subr.bf16.mxu0 0
    %122 = vmatpush2.bf16.msra.mxu0 0
    %123 = vmatprep.subr.bf16.mxu0 0
    %124 = vmatpush2.bf16.msra.mxu0 0
    %125 = vmatprep.subr.bf16.mxu0 0
    %126 = vmatpush2.bf16.msra.mxu0 0
    %127 = vmatprep.subr.bf16.mxu0 0
    %128 = vmatpush2.bf16.msra.mxu0 0
    %129 = vmatprep.subr.bf16.mxu0 0
    %130 = vmatpush2.bf16.msra.mxu0 0
    %131 = vmatprep.subr.bf16.mxu0 0
    %132 = vmatpush2.bf16.msra.mxu0 0
    %133 = vmatprep.subr.bf16.mxu0 0
    %134 = vmatpush2.bf16.msra.mxu0 0
    %135 = vmatprep.mubr.bf16.mxu0 0
    %136 = vmatmul.mubr.bf16.gmra.mxu0 %v51
    %v137 = vpop.f32.mrf.mxu0
    %v138 = vadd.f32 %v41, %v137
    %v139 = vpop.f32.mrf.mxu0
    %v140 = vpop.f32.mrf.mxu0
    %v141 = vadd.f32 %v41, %v140
    %v142 = vpop.f32.mrf.mxu0
    %143 = vmatprep.mubr.bf16.mxu0 0
    %144 = vmatmul.mubr.bf16.gmra.mxu0 %v52
    %v145 = vpop.f32.mrf.mxu0
    %v146 = vadd.f32 %v41, %v145
    %v147 = vpop.f32.mrf.mxu0
    %v148 = vpop.f32.mrf.mxu0
    %v149 = vadd.f32 %v41, %v148
    %v150 = vpop.f32.mrf.mxu0
    %151 = vdwg.mxu0
    %v152 = vpack.c.bf16 %v141, %v138
    %v153 = vpack.c.bf16 %v149, %v146
    %v156 = vunpack.c.l.b16 %v152
    %v157 = vunpack.c.h.b16 %v152
    %v158 = vunpack.c.l.b16 %v153
    %v159 = vunpack.c.h.b16 %v153
    %v160 = vpack.c.b16 %v156, %v156
    %v161 = vpack.c.b16 %v157, %v157
    %v162 = vpack.c.b16 %v158, %v158
    %v163 = vpack.c.b16 %v159, %v159
    %168 = vst [vmem:[#allocation2] sm:$0xf] %v160
    %169 = vst [vmem:[#allocation2 + $0x4] sm:$0xf] %v161
    %170 = vst [vmem:[#allocation2 + $0x8] sm:$0xf] %v162
    %171 = vst [vmem:[#allocation2 + $0xc] sm:$0xf] %v163
    // Predicated region
    $region14: #{rnnlm_forward.5} parent=1 // pred_check
      _
    $region15: #{rnnlm_forward.5} parent=1 // pred_check_branch
      %173 = sbr.rel (0) target = $region17
    $region16: #{rnnlm_forward.5} parent=1 // pred_region
      %s175 = ssub.s32 256, 256
      %176 = vsyncadd [#allocation3], %s175
      %s177 = sshll.u32 [#allocation2], 4
      %s178 = int_to_ptr.vmem [resolvable:$true] %s177
      %183 = dma.vmem_to_hbm [thread:$0]  %s178, 256, %s3, [#allocation3], 64, 64, 4
    $region17: #{rnnlm_forward.5} parent=1 // pred_fallthru
      _
    // Predicated region
    $region18: #{rnnlm_forward.5} parent=1 // pred_check
      _
    $region19: #{rnnlm_forward.5} parent=1 // pred_check_branch
      %185 = sbr.rel (0) target = $region21
    $region20: #{rnnlm_forward.5} parent=1 // pred_region
      %186 = dma.done [#allocation3], 256
    $region21: #{rnnlm_forward.5} parent=1 // pred_fallthru
      _
    %187 = vsyncpa [#allocation3], 1

// kernel: rnnlm_forward.3
$region0: #{rnnlm_forward.3}
  #allocation0 [shape = 'u32[]', space=smem, size = 0x4, offset = 0x4, fixed_abs, tag = 'smem constant byte address 0x4 - core index']
  #allocation1 [shape = 'u32[144,128]{1,0:T(1,128)}', space=vmem, size = 0x12000, scoped, tag = 'internal scratch']
  #allocation2 [shape = 'f32[32,128]{1,0:T(8,128)}', space=vmem, size = 0x4000, scoped, tag = 'scratch operand']
  %s0 = inlined_call_operand.vmem [shape: f32[32,128], index: 0, kind: input, shape index: {}]
  %s1 = inlined_call_operand.vmem [shape: bf16[128,128], index: 1, kind: input, shape index: {}]
  %s2 = inlined_call_operand.vmem [shape: bf16[128,512], index: 2, kind: input, shape index: {}]
  %s3 = inlined_call_operand.vmem [shape: f32[1,512], index: 3, kind: input, shape index: {}]
  %s4 = inlined_call_operand.vmem [shape: f32[32,512], index: 4, kind: output, shape index: {}]
  %s5 = sld [smem:[#allocation0]]
  $region34: #{rnnlm_forward.3} parent=0
    _
  %s7 = ssub.s32 1, %s5
  %s8 = scalar_select 0, %s7, %s5
  // Predicated region
  $region2: #{rnnlm_forward.3} parent=0 // pred_check
    _
  $region3: #{rnnlm_forward.3} parent=0 // pred_check_branch
    %10 = sbr.rel (0) target = $region5
  $region4: #{rnnlm_forward.3} parent=0 // pred_region
    _
  $region5: #{rnnlm_forward.3} parent=0 // pred_fallthru
    _
  // Predicated region
  $region6: #{rnnlm_forward.3} parent=0 // pred_check
    _
  $region7: #{rnnlm_forward.3} parent=0 // pred_check_branch
    %12 = sbr.rel (0) target = $region9
  $region8: #{rnnlm_forward.3} parent=0 // pred_region
    _
  $region9: #{rnnlm_forward.3} parent=0 // pred_fallthru
    _
  // Predicated region
  $region10: #{rnnlm_forward.3} parent=0 // pred_check
    _
  $region11: #{rnnlm_forward.3} parent=0 // pred_check_branch
    %14 = sbr.rel (0) target = $region13
  $region12: #{rnnlm_forward.3} parent=0 // pred_region
    _
  $region13: #{rnnlm_forward.3} parent=0 // pred_fallthru
    _
  // Predicated region
  $region14: #{rnnlm_forward.3} parent=0 // pred_check
    _
  $region15: #{rnnlm_forward.3} parent=0 // pred_check_branch
    %16 = sbr.rel (0) target = $region17
  $region16: #{rnnlm_forward.3} parent=0 // pred_region
    _
  $region17: #{rnnlm_forward.3} parent=0 // pred_fallthru
    _
  %p18 = scmp.eq.s32.totalorder 0, 0
  // Predicated region
  $region18: #{rnnlm_forward.3} parent=0 // pred_check
    %p19 = pneg %p18
  $region19: #{rnnlm_forward.3} parent=0 // pred_check_branch
    %21 = sbr.rel (%p19) target = $region21
  $region20: #{rnnlm_forward.3} parent=0 // pred_region
    %22 = vst [vmem:[#allocation2] sm:$0xff] 0.0
    %23 = vst [vmem:[#allocation2 + $0x8] sm:$0xff] 0.0
    %24 = vst [vmem:[#allocation2 + $0x10] sm:$0xff] 0.0
    %25 = vst [vmem:[#allocation2 + $0x18] sm:$0xff] 0.0
  $region21: #{rnnlm_forward.3} parent=0 // pred_fallthru
    _
  %v26 = vld [vmem:[#allocation2] sm:$0xff]
  %v27 = vld [vmem:[#allocation2 + $0x8] sm:$0xff]
  %v28 = vld [vmem:[#allocation2 + $0x10] sm:$0xff]
  %v29 = vld [vmem:[#allocation2 + $0x18] sm:$0xff]
  %v30 = vld [vmem:[%s0] sm:$0xff]
  %v31 = vld [vmem:[%s0 + $0x8] sm:$0xff]
  %v32 = vld [vmem:[%s0 + $0x10] sm:$0xff]
  %v33 = vld [vmem:[%s0 + $0x18] sm:$0xff]
  %v34 = vpack.c.bf16 %v31, %v30
  %v35 = vpack.c.bf16 %v33, %v32
  %v36 = vld [vmem:[%s1] sm:$0xf]
  %v37 = vld [vmem:[%s1 + $0x4] sm:$0xf]
  %v38 = vld [vmem:[%s1 + $0x8] sm:$0xf]
  %v39 = vld [vmem:[%s1 + $0xc] sm:$0xf]
  %v40 = vld [vmem:[%s1 + $0x10] sm:$0xf]
  %v41 = vld [vmem:[%s1 + $0x14] sm:$0xf]
  %v42 = vld [vmem:[%s1 + $0x18] sm:$0xf]
  %v43 = vld [vmem:[%s1 + $0x1c] sm:$0xf]
  %v44 = vld [vmem:[%s1 + $0x20] sm:$0xf]
  %v45 = vld [vmem:[%s1 + $0x24] sm:$0xf]
  %v46 = vld [vmem:[%s1 + $0x28] sm:$0xf]
  %v47 = vld [vmem:[%s1 + $0x2c] sm:$0xf]
  %v48 = vld [vmem:[%s1 + $0x30] sm:$0xf]
  %v49 = vld [vmem:[%s1 + $0x34] sm:$0xf]
  %v50 = vld [vmem:[%s1 + $0x38] sm:$0xf]
  %v51 = vld [vmem:[%s1 + $0x3c] sm:$0xf]
  %v68 = vunpack.c.l.b16 %v36
  %v69 = vunpack.c.l.b16 %v37
  %v70 = vunpack.c.l.b16 %v38
  %v71 = vunpack.c.l.b16 %v39
  %v72 = vunpack.c.l.b16 %v40
  %v73 = vunpack.c.l.b16 %v41
  %v74 = vunpack.c.l.b16 %v42
  %v75 = vunpack.c.l.b16 %v43
  %v76 = vunpack.c.l.b16 %v44
  %v77 = vunpack.c.l.b16 %v45
  %v78 = vunpack.c.l.b16 %v46
  %v79 = vunpack.c.l.b16 %v47
  %v80 = vunpack.c.l.b16 %v48
  %v81 = vunpack.c.l.b16 %v49
  %v82 = vunpack.c.l.b16 %v50
  %v83 = vunpack.c.l.b16 %v51
  %v84 = vpack.c.b16 %v69, %v68
  %v85 = vpack.c.b16 %v71, %v70
  %v86 = vpack.c.b16 %v73, %v72
  %v87 = vpack.c.b16 %v75, %v74
  %v88 = vpack.c.b16 %v77, %v76
  %v89 = vpack.c.b16 %v79, %v78
  %v90 = vpack.c.b16 %v81, %v80
  %v91 = vpack.c.b16 %v83, %v82
  %100 = vmatprep.subr.bf16.mxu0 0
  %101 = vmatpush1.bf16.msra.mxu0 %v91
  %102 = vmatprep.subr.bf16.mxu0 0
  %103 = vmatpush1.bf16.msra.mxu0 %v90
  %104 = vmatprep.subr.bf16.mxu0 0
  %105 = vmatpush1.bf16.msra.mxu0 %v89
  %106 = vmatprep.subr.bf16.mxu0 0
  %107 = vmatpush1.bf16.msra.mxu0 %v88
  %108 = vmatprep.subr.bf16.mxu0 0
  %109 = vmatpush1.bf16.msra.mxu0 %v87
  %110 = vmatprep.subr.bf16.mxu0 0
  %111 = vmatpush1.bf16.msra.mxu0 %v86
  %112 = vmatprep.subr.bf16.mxu0 0
  %113 = vmatpush1.bf16.msra.mxu0 %v85
  %114 = vmatprep.subr.bf16.mxu0 0
  %115 = vmatpush1.bf16.msra.mxu0 %v84
  %116 = vmatprep.subr.bf16.mxu0 0
  %117 = vmatpush2.bf16.msra.mxu0 0
  %118 = vmatprep.subr.bf16.mxu0 0
  %119 = vmatpush2.bf16.msra.mxu0 0
  %120 = vmatprep.subr.bf16.mxu0 0
  %121 = vmatpush2.bf16.msra.mxu0 0
  %122 = vmatprep.subr.bf16.mxu0 0
  %123 = vmatpush2.bf16.msra.mxu0 0
  %124 = vmatprep.subr.bf16.mxu0 0
  %125 = vmatpush2.bf16.msra.mxu0 0
  %126 = vmatprep.subr.bf16.mxu0 0
  %127 = vmatpush2.bf16.msra.mxu0 0
  %128 = vmatprep.subr.bf16.mxu0 0
  %129 = vmatpush2.bf16.msra.mxu0 0
  %130 = vmatprep.subr.bf16.mxu0 0
  %131 = vmatpush2.bf16.msra.mxu0 0
  %132 = vmatprep.mubr.bf16.mxu0 0
  %133 = vmatmul.mubr.bf16.gmra.mxu0 %v34
  %v134 = vpop.f32.mrf.mxu0
  %v135 = vadd.f32 0.0, %v134
  %v136 = vpop.f32.mrf.mxu0
  %v137 = vpop.f32.mrf.mxu0
  %v138 = vadd.f32 0.0, %v137
  %v139 = vpop.f32.mrf.mxu0
  %140 = vmatprep.mubr.bf16.mxu0 0
  %141 = vmatmul.mubr.bf16.gmra.mxu0 %v35
  %v142 = vpop.f32.mrf.mxu0
  %v143 = vadd.f32 0.0, %v142
  %v144 = vpop.f32.mrf.mxu0
  %v145 = vpop.f32.mrf.mxu0
  %v146 = vadd.f32 0.0, %v145
  %v147 = vpop.f32.mrf.mxu0
  %148 = vdwg.mxu0
  %v149 = vadd.f32 %v26, %v135
  %v150 = vadd.f32 %v27, %v138
  %v151 = vadd.f32 %v28, %v143
  %v152 = vadd.f32 %v29, %v146
  %153 = vst [vmem:[#allocation2] sm:$0xff] %v149
  %154 = vst [vmem:[#allocation2 + $0x8] sm:$0xff] %v150
  %155 = vst [vmem:[#allocation2 + $0x10] sm:$0xff] %v151
  %156 = vst [vmem:[#allocation2 + $0x18] sm:$0xff] %v152
  // Predicated region
  $region22: #{rnnlm_forward.3} parent=0 // pred_check
    %p157 = pneg %p18
  $region23: #{rnnlm_forward.3} parent=0 // pred_check_branch
    %159 = sbr.rel (%p157) target = $region25
  $region24: #{rnnlm_forward.3} parent=0 // pred_region
    %v160 = vld [vmem:[#allocation2] sm:$0xff]
    %v161 = vld [vmem:[#allocation2 + $0x8] sm:$0xff]
    %v162 = vld [vmem:[#allocation2 + $0x10] sm:$0xff]
    %v163 = vld [vmem:[#allocation2 + $0x18] sm:$0xff]
    %v164 = vpack.c.bf16 %v161, %v160
    %v165 = vpack.c.bf16 %v163, %v162
    %v166 = vld [vmem:[%s2] sm:$0xff]
    %v167 = vld [vmem:[%s2 + $0x8] sm:$0xff]
    %v168 = vld [vmem:[%s2 + $0x10] sm:$0xff]
    %v169 = vld [vmem:[%s2 + $0x18] sm:$0xff]
    %v170 = vld [vmem:[%s2 + $0x20] sm:$0xff]
    %v171 = vld [vmem:[%s2 + $0x28] sm:$0xff]
    %v172 = vld [vmem:[%s2 + $0x30] sm:$0xff]
    %v173 = vld [vmem:[%s2 + $0x38] sm:$0xff]
    %v174 = vld [vmem:[%s2 + $0x40] sm:$0xff]
    %v175 = vld [vmem:[%s2 + $0x48] sm:$0xff]
    %v176 = vld [vmem:[%s2 + $0x50] sm:$0xff]
    %v177 = vld [vmem:[%s2 + $0x58] sm:$0xff]
    %v178 = vld [vmem:[%s2 + $0x60] sm:$0xff]
    %v179 = vld [vmem:[%s2 + $0x68] sm:$0xff]
    %v180 = vld [vmem:[%s2 + $0x70] sm:$0xff]
    %v181 = vld [vmem:[%s2 + $0x78] sm:$0xff]
    %v182 = vld [vmem:[%s2 + $0x80] sm:$0xff]
    %v183 = vld [vmem:[%s2 + $0x88] sm:$0xff]
    %v184 = vld [vmem:[%s2 + $0x90] sm:$0xff]
    %v185 = vld [vmem:[%s2 + $0x98] sm:$0xff]
    %v186 = vld [vmem:[%s2 + $0xa0] sm:$0xff]
    %v187 = vld [vmem:[%s2 + $0xa8] sm:$0xff]
    %v188 = vld [vmem:[%s2 + $0xb0] sm:$0xff]
    %v189 = vld [vmem:[%s2 + $0xb8] sm:$0xff]
    %v190 = vld [vmem:[%s2 + $0xc0] sm:$0xff]
    %v191 = vld [vmem:[%s2 + $0xc8] sm:$0xff]
    %v192 = vld [vmem:[%s2 + $0xd0] sm:$0xff]
    %v193 = vld [vmem:[%s2 + $0xd8] sm:$0xff]
    %v194 = vld [vmem:[%s2 + $0xe0] sm:$0xff]
    %v195 = vld [vmem:[%s2 + $0xe8] sm:$0xff]
    %v196 = vld [vmem:[%s2 + $0xf0] sm:$0xff]
    %v197 = vld [vmem:[%s2 + $0xf8] sm:$0xff]
    %v198 = vld [vmem:[%s3] sm:$0xf]
    %v200 = vlaneseq
    %v201 = vshrl.u32 %v200, 7
    %v202 = vsub.s32 0, %v201
    %v203 = vrot.slane %v198, %v202
    %v204 = vlaneseq
    %v205 = vshrl.u32 %v204, 7
    %v206 = vsub.s32 1, %v205
    %v207 = vrot.slane %v198, %v206
    %v208 = vlaneseq
    %v209 = vshrl.u32 %v208, 7
    %v210 = vsub.s32 2, %v209
    %v211 = vrot.slane %v198, %v210
    %v212 = vlaneseq
    %v213 = vshrl.u32 %v212, 7
    %v214 = vsub.s32 3, %v213
    %v215 = vrot.slane %v198, %v214
    %v252 = vunpack.c.l.b16 %v166
    %v253 = vunpack.c.h.b16 %v166
    %v254 = vunpack.c.l.b16 %v167
    %v255 = vunpack.c.h.b16 %v167
    %v256 = vunpack.c.l.b16 %v168
    %v257 = vunpack.c.h.b16 %v168
    %v258 = vunpack.c.l.b16 %v169
    %v259 = vunpack.c.h.b16 %v169
    %v260 = vunpack.c.l.b16 %v170
    %v261 = vunpack.c.h.b16 %v170
    %v262 = vunpack.c.l.b16 %v171
    %v263 = vunpack.c.h.b16 %v171
    %v264 = vunpack.c.l.b16 %v172
    %v265 = vunpack.c.h.b16 %v172
    %v266 = vunpack.c.l.b16 %v173
    %v267 = vunpack.c.h.b16 %v173
    %v268 = vunpack.c.l.b16 %v174
    %v269 = vunpack.c.h.b16 %v174
    %v270 = vunpack.c.l.b16 %v175
    %v271 = vunpack.c.h.b16 %v175
    %v272 = vunpack.c.l.b16 %v176
    %v273 = vunpack.c.h.b16 %v176
    %v274 = vunpack.c.l.b16 %v177
    %v275 = vunpack.c.h.b16 %v177
    %v276 = vunpack.c.l.b16 %v178
    %v277 = vunpack.c.h.b16 %v178
    %v278 = vunpack.c.l.b16 %v179
    %v279 = vunpack.c.h.b16 %v179
    %v280 = vunpack.c.l.b16 %v180
    %v281 = vunpack.c.h.b16 %v180
    %v282 = vunpack.c.l.b16 %v181
    %v283 = vunpack.c.h.b16 %v181
    %v284 = vunpack.c.l.b16 %v182
    %v285 = vunpack.c.h.b16 %v182
    %v286 = vunpack.c.l.b16 %v183
    %v287 = vunpack.c.h.b16 %v183
    %v288 = vunpack.c.l.b16 %v184
    %v289 = vunpack.c.h.b16 %v184
    %v290 = vunpack.c.l.b16 %v185
    %v291 = vunpack.c.h.b16 %v185
    %v292 = vunpack.c.l.b16 %v186
    %v293 = vunpack.c.h.b16 %v186
    %v294 = vunpack.c.l.b16 %v187
    %v295 = vunpack.c.h.b16 %v187
    %v296 = vunpack.c.l.b16 %v188
    %v297 = vunpack.c.h.b16 %v188
    %v298 = vunpack.c.l.b16 %v189
    %v299 = vunpack.c.h.b16 %v189
    %v300 = vunpack.c.l.b16 %v190
    %v301 = vunpack.c.h.b16 %v190
    %v302 = vunpack.c.l.b16 %v191
    %v303 = vunpack.c.h.b16 %v191
    %v304 = vunpack.c.l.b16 %v192
    %v305 = vunpack.c.h.b16 %v192
    %v306 = vunpack.c.l.b16 %v193
    %v307 = vunpack.c.h.b16 %v193
    %v308 = vunpack.c.l.b16 %v194
    %v309 = vunpack.c.h.b16 %v194
    %v310 = vunpack.c.l.b16 %v195
    %v311 = vunpack.c.h.b16 %v195
    %v312 = vunpack.c.l.b16 %v196
    %v313 = vunpack.c.h.b16 %v196
    %v314 = vunpack.c.l.b16 %v197
    %v315 = vunpack.c.h.b16 %v197
    %v316 = vpack.c.b16 %v256, %v252
    %v317 = vpack.c.b16 %v257, %v253
    %v318 = vpack.c.b16 %v258, %v254
    %v319 = vpack.c.b16 %v259, %v255
    %v320 = vpack.c.b16 %v264, %v260
    %v321 = vpack.c.b16 %v265, %v261
    %v322 = vpack.c.b16 %v266, %v262
    %v323 = vpack.c.b16 %v267, %v263
    %v324 = vpack.c.b16 %v272, %v268
    %v325 = vpack.c.b16 %v273, %v269
    %v326 = vpack.c.b16 %v274, %v270
    %v327 = vpack.c.b16 %v275, %v271
    %v328 = vpack.c.b16 %v280, %v276
    %v329 = vpack.c.b16 %v281, %v277
    %v330 = vpack.c.b16 %v282, %v278
    %v331 = vpack.c.b16 %v283, %v279
    %v332 = vpack.c.b16 %v288, %v284
    %v333 = vpack.c.b16 %v289, %v285
    %v334 = vpack.c.b16 %v290, %v286
    %v335 = vpack.c.b16 %v291, %v287
    %v336 = vpack.c.b16 %v296, %v292
    %v337 = vpack.c.b16 %v297, %v293
    %v338 = vpack.c.b16 %v298, %v294
    %v339 = vpack.c.b16 %v299, %v295
    %v340 = vpack.c.b16 %v304, %v300
    %v341 = vpack.c.b16 %v305, %v301
    %v342 = vpack.c.b16 %v306, %v302
    %v343 = vpack.c.b16 %v307, %v303
    %v344 = vpack.c.b16 %v312, %v308
    %v345 = vpack.c.b16 %v313, %v309
    %v346 = vpack.c.b16 %v314, %v310
    %v347 = vpack.c.b16 %v315, %v311
    %380 = vmatprep.subr.bf16.mxu0 %v345
    %381 = vmatpush1.bf16.msra.mxu0 %v344
    %382 = vmatprep.subr.bf16.mxu0 %v341
    %383 = vmatpush1.bf16.msra.mxu0 %v340
    %384 = vmatprep.subr.bf16.mxu0 %v337
    %385 = vmatpush1.bf16.msra.mxu0 %v336
    %386 = vmatprep.subr.bf16.mxu0 %v333
    %387 = vmatpush1.bf16.msra.mxu0 %v332
    %388 = vmatprep.subr.bf16.mxu0 %v329
    %389 = vmatpush1.bf16.msra.mxu0 %v328
    %390 = vmatprep.subr.bf16.mxu0 %v325
    %391 = vmatpush1.bf16.msra.mxu0 %v324
    %392 = vmatprep.subr.bf16.mxu0 %v321
    %393 = vmatpush1.bf16.msra.mxu0 %v320
    %394 = vmatprep.subr.bf16.mxu0 %v317
    %395 = vmatpush1.bf16.msra.mxu0 %v316
    %396 = vmatprep.subr.bf16.mxu0 0
    %397 = vmatpush2.bf16.msra.mxu0 0
    %398 = vmatprep.subr.bf16.mxu0 0
    %399 = vmatpush2.bf16.msra.mxu0 0
    %400 = vmatprep.subr.bf16.mxu0 0
    %401 = vmatpush2.bf16.msra.mxu0 0
    %402 = vmatprep.subr.bf16.mxu0 0
    %403 = vmatpush2.bf16.msra.mxu0 0
    %404 = vmatprep.subr.bf16.mxu0 0
    %405 = vmatpush2.bf16.msra.mxu0 0
    %406 = vmatprep.subr.bf16.mxu0 0
    %407 = vmatpush2.bf16.msra.mxu0 0
    %408 = vmatprep.subr.bf16.mxu0 0
    %409 = vmatpush2.bf16.msra.mxu0 0
    %410 = vmatprep.subr.bf16.mxu0 0
    %411 = vmatpush2.bf16.msra.mxu0 0
    %412 = vmatprep.mubr.bf16.mxu0 0
    %413 = vmatmul.mubr.bf16.gmra.mxu0 %v164
    %v414 = vpop.f32.mrf.mxu0
    %v415 = vadd.f32 %v203, %v414
    %v416 = vpop.f32.mrf.mxu0
    %v417 = vadd.f32 %v207, %v416
    %v418 = vpop.f32.mrf.mxu0
    %v419 = vadd.f32 %v203, %v418
    %v420 = vpop.f32.mrf.mxu0
    %v421 = vadd.f32 %v207, %v420
    %422 = vmatprep.mubr.bf16.mxu0 0
    %423 = vmatmul.mubr.bf16.gmra.mxu0 %v165
    %v424 = vpop.f32.mrf.mxu0
    %v425 = vadd.f32 %v203, %v424
    %v426 = vpop.f32.mrf.mxu0
    %v427 = vadd.f32 %v207, %v426
    %v428 = vpop.f32.mrf.mxu0
    %v429 = vadd.f32 %v203, %v428
    %v430 = vpop.f32.mrf.mxu0
    %v431 = vadd.f32 %v207, %v430
    %432 = vdwg.mxu0
    %433 = vmatprep.subr.bf16.mxu0 %v347
    %434 = vmatpush1.bf16.msra.mxu0 %v346
    %435 = vmatprep.subr.bf16.mxu0 %v343
    %436 = vmatpush1.bf16.msra.mxu0 %v342
    %437 = vmatprep.subr.bf16.mxu0 %v339
    %438 = vmatpush1.bf16.msra.mxu0 %v338
    %439 = vmatprep.subr.bf16.mxu0 %v335
    %440 = vmatpush1.bf16.msra.mxu0 %v334
    %441 = vmatprep.subr.bf16.mxu0 %v331
    %442 = vmatpush1.bf16.msra.mxu0 %v330
    %443 = vmatprep.subr.bf16.mxu0 %v327
    %444 = vmatpush1.bf16.msra.mxu0 %v326
    %445 = vmatprep.subr.bf16.mxu0 %v323
    %446 = vmatpush1.bf16.msra.mxu0 %v322
    %447 = vmatprep.subr.bf16.mxu0 %v319
    %448 = vmatpush1.bf16.msra.mxu0 %v318
    %449 = vmatprep.subr.bf16.mxu0 0
    %450 = vmatpush2.bf16.msra.mxu0 0
    %451 = vmatprep.subr.bf16.mxu0 0
    %452 = vmatpush2.bf16.msra.mxu0 0
    %453 = vmatprep.subr.bf16.mxu0 0
    %454 = vmatpush2.bf16.msra.mxu0 0
    %455 = vmatprep.subr.bf16.mxu0 0
    %456 = vmatpush2.bf16.msra.mxu0 0
    %457 = vmatprep.subr.bf16.mxu0 0
    %458 = vmatpush2.bf16.msra.mxu0 0
    %459 = vmatprep.subr.bf16.mxu0 0
    %460 = vmatpush2.bf16.msra.mxu0 0
    %461 = vmatprep.subr.bf16.mxu0 0
    %462 = vmatpush2.bf16.msra.mxu0 0
    %463 = vmatprep.subr.bf16.mxu0 0
    %464 = vmatpush2.bf16.msra.mxu0 0
    %465 = vmatprep.mubr.bf16.mxu0 0
    %466 = vmatmul.mubr.bf16.gmra.mxu0 %v164
    %v467 = vpop.f32.mrf.mxu0
    %v468 = vadd.f32 %v211, %v467
    %v469 = vpop.f32.mrf.mxu0
    %v470 = vadd.f32 %v215, %v469
    %v471 = vpop.f32.mrf.mxu0
    %v472 = vadd.f32 %v211, %v471
    %v473 = vpop.f32.mrf.mxu0
    %v474 = vadd.f32 %v215, %v473
    %475 = vmatprep.mubr.bf16.mxu0 0
    %476 = vmatmul.mubr.bf16.gmra.mxu0 %v165
    %v477 = vpop.f32.mrf.mxu0
    %v478 = vadd.f32 %v211, %v477
    %v479 = vpop.f32.mrf.mxu0
    %v480 = vadd.f32 %v215, %v479
    %v481 = vpop.f32.mrf.mxu0
    %v482 = vadd.f32 %v211, %v481
    %v483 = vpop.f32.mrf.mxu0
    %v484 = vadd.f32 %v215, %v483
    %485 = vdwg.mxu0
    %486 = vst [vmem:[%s4] sm:$0xff] %v415
    %487 = vst [vmem:[%s4 + $0x8] sm:$0xff] %v417
    %488 = vst [vmem:[%s4 + $0x10] sm:$0xff] %v468
    %489 = vst [vmem:[%s4 + $0x18] sm:$0xff] %v470
    %490 = vst [vmem:[%s4 + $0x20] sm:$0xff] %v419
    %491 = vst [vmem:[%s4 + $0x28] sm:$0xff] %v421
    %492 = vst [vmem:[%s4 + $0x30] sm:$0xff] %v472
    %493 = vst [vmem:[%s4 + $0x38] sm:$0xff] %v474
    %494 = vst [vmem:[%s4 + $0x40] sm:$0xff] %v425
    %495 = vst [vmem:[%s4 + $0x48] sm:$0xff] %v427
    %496 = vst [vmem:[%s4 + $0x50] sm:$0xff] %v478
    %497 = vst [vmem:[%s4 + $0x58] sm:$0xff] %v480
    %498 = vst [vmem:[%s4 + $0x60] sm:$0xff] %v429
    %499 = vst [vmem:[%s4 + $0x68] sm:$0xff] %v431
    %500 = vst [vmem:[%s4 + $0x70] sm:$0xff] %v482
    %501 = vst [vmem:[%s4 + $0x78] sm:$0xff] %v484
  $region25: #{rnnlm_forward.3} parent=0 // pred_fallthru
    _
  // Predicated region
  $region26: #{rnnlm_forward.3} parent=0 // pred_check
    _
  $region27: #{rnnlm_forward.3} parent=0 // pred_check_branch
    %503 = sbr.rel (0) target = $region29
  $region28: #{rnnlm_forward.3} parent=0 // pred_region
    _
  $region29: #{rnnlm_forward.3} parent=0 // pred_fallthru
    _
  // Predicated region
  $region30: #{rnnlm_forward.3} parent=0 // pred_check
    _
  $region31: #{rnnlm_forward.3} parent=0 // pred_check_branch
    %505 = sbr.rel (0) target = $region33
  $region32: #{rnnlm_forward.3} parent=0 // pred_region
    _
  $region33: #{rnnlm_forward.3} parent=0 // pred_fallthru
    _

// kernel: rnnlm_forward.4
$region0: #{rnnlm_forward.4}
  #allocation0 [shape = 'u32[]', space=smem, size = 0x4, offset = 0x4, fixed_abs, tag = 'smem constant byte address 0x4 - core index']
  #allocation1 [shape = 'u32[144,128]{1,0:T(1,128)}', space=vmem, size = 0x12000, scoped, tag = 'internal scratch']
  #allocation2 [shape = 'f32[2,128]{1,0:T(2,128)}', space=vmem, size = 0x400, scoped, tag = 'scratch operand']
  #allocation3 [shape = 'f32[2,128]{1,0:T(2,128)}', space=vmem, size = 0x400, scoped, tag = 'scratch operand']
  #allocation4 [shape = 'f32[2,16,128]{2,1,0:T(8,128)}', space=vmem, size = 0x4000, scoped, tag = 'scratch operand']
  %s0 = inlined_call_operand.vmem [shape: f32[2,16,512], index: 0, kind: input, shape index: {}]
  %s1 = inlined_call_operand.vmem [shape: bf16[128,512], index: 1, kind: input, shape index: {}]
  %s2 = inlined_call_operand.vmem [shape: f32[2,128], index: 2, kind: input, shape index: {}]
  %s3 = inlined_call_operand.vmem [shape: f32[2,128], index: 3, kind: input, shape index: {}]
  %s4 = inlined_call_operand.vmem [shape: bf16[2,16,128], index: 4, kind: output, shape index: {0}]
  %s5 = inlined_call_operand.hbm [shape: f32[2,128], index: 5, kind: output, shape index: {1}]
  %s6 = inlined_call_operand.hbm [shape: f32[2,128], index: 6, kind: output, shape index: {2}]
  %7 = xla_tuple %s4, %s5, %s6
  %s8 = sld [smem:[#allocation0]]
  $region50: #{rnnlm_forward.4} parent=0
    _
  %s10 = ssub.s32 1, %s8
  %s11 = scalar_select 0, %s10, %s8
  $region1: #{rnnlm_forward.4} parent=0
    #allocation5 [shape = 'u8[1024]{0}', space=vmem, size = 0x400, scoped, tag = 'output window, operand 1, single buffered']
    #allocation6 [shape = 's32[1]{0}', space=sflag, size = 0x4, scoped, tag = 'scoped memory for rnnlm_forward.4']
    #allocation7 [shape = 'u8[1024]{0}', space=vmem, size = 0x400, scoped, tag = 'output window, operand 2, single buffered']
    #allocation8 [shape = 's32[1]{0}', space=sflag, size = 0x4, scoped, tag = 'scoped memory for rnnlm_forward.4']
    %12 = vsyncpa [#allocation6], 0
    %13 = vsyncpa [#allocation8], 0
    // Predicated region
    $region2: #{rnnlm_forward.4} parent=1 // pred_check
      _
    $region3: #{rnnlm_forward.4} parent=1 // pred_check_branch
      %15 = sbr.rel (0) target = $region5
    $region4: #{rnnlm_forward.4} parent=1 // pred_region
      _
    $region5: #{rnnlm_forward.4} parent=1 // pred_fallthru
      _
    // Predicated region
    $region6: #{rnnlm_forward.4} parent=1 // pred_check
      _
    $region7: #{rnnlm_forward.4} parent=1 // pred_check_branch
      %17 = sbr.rel (0) target = $region9
    $region8: #{rnnlm_forward.4} parent=1 // pred_region
      _
    $region9: #{rnnlm_forward.4} parent=1 // pred_fallthru
      _
    // Predicated region
    $region10: #{rnnlm_forward.4} parent=1 // pred_check
      _
    $region11: #{rnnlm_forward.4} parent=1 // pred_check_branch
      %19 = sbr.rel (0) target = $region13
    $region12: #{rnnlm_forward.4} parent=1 // pred_region
      _
    $region13: #{rnnlm_forward.4} parent=1 // pred_fallthru
      _
    // Predicated region
    $region14: #{rnnlm_forward.4} parent=1 // pred_check
      _
    $region15: #{rnnlm_forward.4} parent=1 // pred_check_branch
      %21 = sbr.rel (0) target = $region17
    $region16: #{rnnlm_forward.4} parent=1 // pred_region
      _
    $region17: #{rnnlm_forward.4} parent=1 // pred_fallthru
      _
    %p23 = scmp.eq.s32.totalorder 0, 0
    // Predicated region
    $region18: #{rnnlm_forward.4} parent=1 // pred_check
      %p24 = pneg %p23
    $region19: #{rnnlm_forward.4} parent=1 // pred_check_branch
      %26 = sbr.rel (%p24) target = $region21
    $region20: #{rnnlm_forward.4} parent=1 // pred_region
      %v27 = vld [vmem:[%s2] sm:$0x3]
      %28 = vst [vmem:[#allocation2] sm:$0x3] %v27
      %v29 = vld [vmem:[%s3] sm:$0x3]
      %30 = vst [vmem:[#allocation3] sm:$0x3] %v29
    $region21: #{rnnlm_forward.4} parent=1 // pred_fallthru
      _
    %v31 = vld [vmem:[#allocation2] sm:$0x3]
    %v32 = vld [vmem:[#allocation3] sm:$0x3]
    %v33 = vld [vmem:[%s1] sm:$0xff]
    %v34 = vld [vmem:[%s1 + $0x8] sm:$0xff]
    %v35 = vld [vmem:[%s1 + $0x10] sm:$0xff]
    %v36 = vld [vmem:[%s1 + $0x18] sm:$0xff]
    %v37 = vld [vmem:[%s1 + $0x20] sm:$0xff]
    %v38 = vld [vmem:[%s1 + $0x28] sm:$0xff]
    %v39 = vld [vmem:[%s1 + $0x30] sm:$0xff]
    %v40 = vld [vmem:[%s1 + $0x38] sm:$0xff]
    %v41 = vld [vmem:[%s1 + $0x40] sm:$0xff]
    %v42 = vld [vmem:[%s1 + $0x48] sm:$0xff]
    %v43 = vld [vmem:[%s1 + $0x50] sm:$0xff]
    %v44 = vld [vmem:[%s1 + $0x58] sm:$0xff]
    %v45 = vld [vmem:[%s1 + $0x60] sm:$0xff]
    %v46 = vld [vmem:[%s1 + $0x68] sm:$0xff]
    %v47 = vld [vmem:[%s1 + $0x70] sm:$0xff]
    %v48 = vld [vmem:[%s1 + $0x78] sm:$0xff]
    %v49 = vld [vmem:[%s1 + $0x80] sm:$0xff]
    %v50 = vld [vmem:[%s1 + $0x88] sm:$0xff]
    %v51 = vld [vmem:[%s1 + $0x90] sm:$0xff]
    %v52 = vld [vmem:[%s1 + $0x98] sm:$0xff]
    %v53 = vld [vmem:[%s1 + $0xa0] sm:$0xff]
    %v54 = vld [vmem:[%s1 + $0xa8] sm:$0xff]
    %v55 = vld [vmem:[%s1 + $0xb0] sm:$0xff]
    %v56 = vld [vmem:[%s1 + $0xb8] sm:$0xff]
    %v57 = vld [vmem:[%s1 + $0xc0] sm:$0xff]
    %v58 = vld [vmem:[%s1 + $0xc8] sm:$0xff]
    %v59 = vld [vmem:[%s1 + $0xd0] sm:$0xff]
    %v60 = vld [vmem:[%s1 + $0xd8] sm:$0xff]
    %v61 = vld [vmem:[%s1 + $0xe0] sm:$0xff]
    %v62 = vld [vmem:[%s1 + $0xe8] sm:$0xff]
    %v63 = vld [vmem:[%s1 + $0xf0] sm:$0xff]
    %v64 = vld [vmem:[%s1 + $0xf8] sm:$0xff]
    %v65 = vld [vmem:[%s0] ss:$8 sm:$0xf]
    %s66 = scalar_lea.vmem %s0, 64
    %v67 = vld [vmem:[%s66] ss:$8 sm:$0xf]
    %v68 = vpack.c.bf16 %v31, %v31
    %v101 = vunpack.c.l.b16 %v33
    %v102 = vunpack.c.h.b16 %v33
    %v103 = vunpack.c.l.b16 %v34
    %v104 = vunpack.c.h.b16 %v34
    %v105 = vunpack.c.l.b16 %v35
    %v106 = vunpack.c.h.b16 %v35
    %v107 = vunpack.c.l.b16 %v36
    %v108 = vunpack.c.h.b16 %v36
    %v109 = vunpack.c.l.b16 %v37
    %v110 = vunpack.c.h.b16 %v37
    %v111 = vunpack.c.l.b16 %v38
    %v112 = vunpack.c.h.b16 %v38
    %v113 = vunpack.c.l.b16 %v39
    %v114 = vunpack.c.h.b16 %v39
    %v115 = vunpack.c.l.b16 %v40
    %v116 = vunpack.c.h.b16 %v40
    %v117 = vunpack.c.l.b16 %v41
    %v118 = vunpack.c.h.b16 %v41
    %v119 = vunpack.c.l.b16 %v42
    %v120 = vunpack.c.h.b16 %v42
    %v121 = vunpack.c.l.b16 %v43
    %v122 = vunpack.c.h.b16 %v43
    %v123 = vunpack.c.l.b16 %v44
    %v124 = vunpack.c.h.b16 %v44
    %v125 = vunpack.c.l.b16 %v45
    %v126 = vunpack.c.h.b16 %v45
    %v127 = vunpack.c.l.b16 %v46
    %v128 = vunpack.c.h.b16 %v46
    %v129 = vunpack.c.l.b16 %v47
    %v130 = vunpack.c.h.b16 %v47
    %v131 = vunpack.c.l.b16 %v48
    %v132 = vunpack.c.h.b16 %v48
    %v133 = vunpack.c.l.b16 %v49
    %v134 = vunpack.c.h.b16 %v49
    %v135 = vunpack.c.l.b16 %v50
    %v136 = vunpack.c.h.b16 %v50
    %v137 = vunpack.c.l.b16 %v51
    %v138 = vunpack.c.h.b16 %v51
    %v139 = vunpack.c.l.b16 %v52
    %v140 = vunpack.c.h.b16 %v52
    %v141 = vunpack.c.l.b16 %v53
    %v142 = vunpack.c.h.b16 %v53
    %v143 = vunpack.c.l.b16 %v54
    %v144 = vunpack.c.h.b16 %v54
    %v145 = vunpack.c.l.b16 %v55
    %v146 = vunpack.c.h.b16 %v55
    %v147 = vunpack.c.l.b16 %v56
    %v148 = vunpack.c.h.b16 %v56
    %v149 = vunpack.c.l.b16 %v57
    %v150 = vunpack.c.h.b16 %v57
    %v151 = vunpack.c.l.b16 %v58
    %v152 = vunpack.c.h.b16 %v58
    %v153 = vunpack.c.l.b16 %v59
    %v154 = vunpack.c.h.b16 %v59
    %v155 = vunpack.c.l.b16 %v60
    %v156 = vunpack.c.h.b16 %v60
    %v157 = vunpack.c.l.b16 %v61
    %v158 = vunpack.c.h.b16 %v61
    %v159 = vunpack.c.l.b16 %v62
    %v160 = vunpack.c.h.b16 %v62
    %v161 = vunpack.c.l.b16 %v63
    %v162 = vunpack.c.h.b16 %v63
    %v163 = vunpack.c.l.b16 %v64
    %v164 = vunpack.c.h.b16 %v64
    %v165 = vpack.c.b16 %v105, %v101
    %v166 = vpack.c.b16 %v106, %v102
    %v167 = vpack.c.b16 %v107, %v103
    %v168 = vpack.c.b16 %v108, %v104
    %v169 = vpack.c.b16 %v113, %v109
    %v170 = vpack.c.b16 %v114, %v110
    %v171 = vpack.c.b16 %v115, %v111
    %v172 = vpack.c.b16 %v116, %v112
    %v173 = vpack.c.b16 %v121, %v117
    %v174 = vpack.c.b16 %v122, %v118
    %v175 = vpack.c.b16 %v123, %v119
    %v176 = vpack.c.b16 %v124, %v120
    %v177 = vpack.c.b16 %v129, %v125
    %v178 = vpack.c.b16 %v130, %v126
    %v179 = vpack.c.b16 %v131, %v127
    %v180 = vpack.c.b16 %v132, %v128
    %v181 = vpack.c.b16 %v137, %v133
    %v182 = vpack.c.b16 %v138, %v134
    %v183 = vpack.c.b16 %v139, %v135
    %v184 = vpack.c.b16 %v140, %v136
    %v185 = vpack.c.b16 %v145, %v141
    %v186 = vpack.c.b16 %v146, %v142
    %v187 = vpack.c.b16 %v147, %v143
    %v188 = vpack.c.b16 %v148, %v144
    %v189 = vpack.c.b16 %v153, %v149
    %v190 = vpack.c.b16 %v154, %v150
    %v191 = vpack.c.b16 %v155, %v151
    %v192 = vpack.c.b16 %v156, %v152
    %v193 = vpack.c.b16 %v161, %v157
    %v194 = vpack.c.b16 %v162, %v158
    %v195 = vpack.c.b16 %v163, %v159
    %v196 = vpack.c.b16 %v164, %v160
    %229 = vmatprep.subr.bf16.mxu0 %v194
    %230 = vmatpush1.bf16.msra.mxu0 %v193
    %231 = vmatprep.subr.bf16.mxu0 %v190
    %232 = vmatpush1.bf16.msra.mxu0 %v189
    %233 = vmatprep.subr.bf16.mxu0 %v186
    %234 = vmatpush1.bf16.msra.mxu0 %v185
    %235 = vmatprep.subr.bf16.mxu0 %v182
    %236 = vmatpush1.bf16.msra.mxu0 %v181
    %237 = vmatprep.subr.bf16.mxu0 %v178
    %238 = vmatpush1.bf16.msra.mxu0 %v177
    %239 = vmatprep.subr.bf16.mxu0 %v174
    %240 = vmatpush1.bf16.msra.mxu0 %v173
    %241 = vmatprep.subr.bf16.mxu0 %v170
    %242 = vmatpush1.bf16.msra.mxu0 %v169
    %243 = vmatprep.subr.bf16.mxu0 %v166
    %244 = vmatpush1.bf16.msra.mxu0 %v165
    %245 = vmatprep.subr.bf16.mxu0 0
    %246 = vmatpush2.bf16.msra.mxu0 0
    %247 = vmatprep.subr.bf16.mxu0 0
    %248 = vmatpush2.bf16.msra.mxu0 0
    %249 = vmatprep.subr.bf16.mxu0 0
    %250 = vmatpush2.bf16.msra.mxu0 0
    %251 = vmatprep.subr.bf16.mxu0 0
    %252 = vmatpush2.bf16.msra.mxu0 0
    %253 = vmatprep.subr.bf16.mxu0 0
    %254 = vmatpush2.bf16.msra.mxu0 0
    %255 = vmatprep.subr.bf16.mxu0 0
    %256 = vmatpush2.bf16.msra.mxu0 0
    %257 = vmatprep.subr.bf16.mxu0 0
    %258 = vmatpush2.bf16.msra.mxu0 0
    %259 = vmatprep.subr.bf16.mxu0 0
    %260 = vmatpush2.bf16.msra.mxu0 0
    %261 = vmatprep.mubr.bf16.mxu0 0
    %262 = vmatmul.mubr.bf16.gmra.mxu0 %v68
    %v263 = vpop.f32.mrf.mxu0
    %v264 = vadd.f32 0.0, %v263
    %v265 = vpop.f32.mrf.mxu0
    %v266 = vadd.f32 0.0, %v265
    %v267 = vpop.f32.mrf.mxu0
    %v268 = vpop.f32.mrf.mxu0
    %269 = vdwg.mxu0
    %270 = vmatprep.subr.bf16.mxu0 %v196
    %271 = vmatpush1.bf16.msra.mxu0 %v195
    %272 = vmatprep.subr.bf16.mxu0 %v192
    %273 = vmatpush1.bf16.msra.mxu0 %v191
    %274 = vmatprep.subr.bf16.mxu0 %v188
    %275 = vmatpush1.bf16.msra.mxu0 %v187
    %276 = vmatprep.subr.bf16.mxu0 %v184
    %277 = vmatpush1.bf16.msra.mxu0 %v183
    %278 = vmatprep.subr.bf16.mxu0 %v180
    %279 = vmatpush1.bf16.msra.mxu0 %v179
    %280 = vmatprep.subr.bf16.mxu0 %v176
    %281 = vmatpush1.bf16.msra.mxu0 %v175
    %282 = vmatprep.subr.bf16.mxu0 %v172
    %283 = vmatpush1.bf16.msra.mxu0 %v171
    %284 = vmatprep.subr.bf16.mxu0 %v168
    %285 = vmatpush1.bf16.msra.mxu0 %v167
    %286 = vmatprep.subr.bf16.mxu0 0
    %287 = vmatpush2.bf16.msra.mxu0 0
    %288 = vmatprep.subr.bf16.mxu0 0
    %289 = vmatpush2.bf16.msra.mxu0 0
    %290 = vmatprep.subr.bf16.mxu0 0
    %291 = vmatpush2.bf16.msra.mxu0 0
    %292 = vmatprep.subr.bf16.mxu0 0
    %293 = vmatpush2.bf16.msra.mxu0 0
    %294 = vmatprep.subr.bf16.mxu0 0
    %295 = vmatpush2.bf16.msra.mxu0 0
    %296 = vmatprep.subr.bf16.mxu0 0
    %297 = vmatpush2.bf16.msra.mxu0 0
    %298 = vmatprep.subr.bf16.mxu0 0
    %299 = vmatpush2.bf16.msra.mxu0 0
    %300 = vmatprep.subr.bf16.mxu0 0
    %301 = vmatpush2.bf16.msra.mxu0 0
    %302 = vmatprep.mubr.bf16.mxu0 0
    %303 = vmatmul.mubr.bf16.gmra.mxu0 %v68
    %v304 = vpop.f32.mrf.mxu0
    %v305 = vadd.f32 0.0, %v304
    %v306 = vpop.f32.mrf.mxu0
    %v307 = vadd.f32 0.0, %v306
    %v308 = vpop.f32.mrf.mxu0
    %v309 = vpop.f32.mrf.mxu0
    %310 = vdwg.mxu0
    %v315 = vcombine.low %v264, %v266
    %v316 = vcombine.low %v305, %v307
    %v318 = vunpack.c.l.s4 1966171168
    %v319 = vunpack.c.0.s8 %v318
    %v320 = vlaneseq
    %v321 = vshrl.u32 %v320, 7
    %v322 = vsub.s32 %v319, %v321
    %v323 = vrot.slane %v315, %v322
    %v325 = vunpack.c.l.s4 1966171168
    %v326 = vunpack.c.0.s8 %v325
    %v327 = vlaneseq
    %v328 = vshrl.u32 %v327, 7
    %v329 = vsub.s32 %v326, %v328
    %v330 = vrot.slane %v316, %v329
    %v331 = vcombine.low %v323, %v330
    %v332 = vcombine.high %v323, %v330
    %v334 = vunpack.c.l.s4 1966171168
    %v335 = vunpack.c.0.s8 %v334
    %v336 = vlaneseq
    %v337 = vshrl.u32 %v336, 7
    %v338 = vsub.s32 %v335, %v337
    %v339 = vrot.slane %v331, %v338
    %v341 = vunpack.c.l.s4 1966171168
    %v342 = vunpack.c.0.s8 %v341
    %v343 = vlaneseq
    %v344 = vshrl.u32 %v343, 7
    %v345 = vsub.s32 %v342, %v344
    %v346 = vrot.slane %v332, %v345
    %v349 = vadd.f32 %v65, %v339
    %v350 = vadd.f32 %v67, %v346
    %v351 = vxor.u32 %v349, 2147483648
    %v352 = vxor.u32 %v350, 2147483648
    %v353 = vmul.f32 %v351, 1.442695
    %v354 = vpow.pop %v353
    %v355 = vmul.f32 %v352, 1.442695
    %v356 = vpow.pop %v355
    %v357 = vadd.f32 %v354, 1.0
    %v358 = vadd.f32 %v356, 1.0
    %v359 = vrcp.pop %v357
    %v360 = vmul.f32 1.0, %v359
    %v361 = vrcp.pop %v358
    %v362 = vmul.f32 1.0, %v361
    %v365 = vrot.slane %v349, 3
    %v366 = vrot.slane %v350, 3
    %v369 = vtanh.pop %v365
    %v370 = vtanh.pop %v366
    %v373 = vrot.slane %v360, 1
    %v374 = vrot.slane %v362, 1
    %v379 = vunpack.c.l.s4 1966171168
    %v380 = vunpack.c.0.s8 %v379
    %v381 = vlaneseq
    %v382 = vshrl.u32 %v381, 7
    %v383 = vsub.s32 %v380, %v382
    %v384 = vrot.slane %v32, %v383
    %v385 = vcombine.high %v384, %v384
    %v387 = vunpack.c.l.s4 1966171168
    %v388 = vunpack.c.0.s8 %v387
    %v389 = vlaneseq
    %v390 = vshrl.u32 %v389, 7
    %v391 = vsub.s32 %v388, %v390
    %v392 = vrot.slane %v384, %v391
    %v394 = vunpack.c.l.s4 1966171168
    %v395 = vunpack.c.0.s8 %v394
    %v396 = vlaneseq
    %v397 = vshrl.u32 %v396, 7
    %v398 = vsub.s32 %v395, %v397
    %v399 = vrot.slane %v385, %v398
    %v402 = vmul.f32 %v373, %v392
    %v403 = vmul.f32 %v374, %v399
    %v404 = vmul.f32 %v360, %v369
    %v405 = vmul.f32 %v362, %v370
    %v406 = vadd.f32 %v402, %v404
    %v407 = vadd.f32 %v403, %v405
    %v408 = vtanh.pop %v406
    %v409 = vtanh.pop %v407
    %v410 = vrot.slane %v360, 2
    %v411 = vrot.slane %v362, 2
    %v414 = vmul.f32 %v410, %v408
    %v415 = vmul.f32 %v411, %v409
    %416 = vst [vmem:[#allocation4] sm:$0x1] %v414
    %417 = vst [vmem:[#allocation4 + $0x10] sm:$0x1] %v415
    %s418 = scalar_lea.vmem %s0, 1
    %v419 = vld [vmem:[%s418] ss:$8 sm:$0xf]
    %s420 = scalar_lea.vmem %s0, 65
    %v421 = vld [vmem:[%s420] ss:$8 sm:$0xf]
    %v422 = vpack.c.bf16 %v414, %v414
    %v423 = vpack.c.bf16 %v415, %v415
    %v426 = vunpack.c.l.b16 %v422
    %v427 = vunpack.c.l.b16 %v423
    %v428 = vrot.slane %v427, 7
    %vm429 = vcmask 1041409
    %v430 = vsel %vm429, %v428, %v426
    %v431 = vpack.c.b16 %v430, %v430
    %433 = vmatprep.subr.bf16.mxu0 %v194
    %434 = vmatpush1.bf16.msra.mxu0 %v193
    %435 = vmatprep.subr.bf16.mxu0 %v190
    %436 = vmatpush1.bf16.msra.mxu0 %v189
    %437 = vmatprep.subr.bf16.mxu0 %v186
    %438 = vmatpush1.bf16.msra.mxu0 %v185
    %439 = vmatprep.subr.bf16.mxu0 %v182
    %440 = vmatpush1.bf16.msra.mxu0 %v181
    %441 = vmatprep.subr.bf16.mxu0 %v178
    %442 = vmatpush1.bf16.msra.mxu0 %v177
    %443 = vmatprep.subr.bf16.mxu0 %v174
    %444 = vmatpush1.bf16.msra.mxu0 %v173
    %445 = vmatprep.subr.bf16.mxu0 %v170
    %446 = vmatpush1.bf16.msra.mxu0 %v169
    %447 = vmatprep.subr.bf16.mxu0 %v166
    %448 = vmatpush1.bf16.msra.mxu0 %v165
    %449 = vmatprep.subr.bf16.mxu0 0
    %450 = vmatpush2.bf16.msra.mxu0 0
    %451 = vmatprep.subr.bf16.mxu0 0
    %452 = vmatpush2.bf16.msra.mxu0 0
    %453 = vmatprep.subr.bf16.mxu0 0
    %454 = vmatpush2.bf16.msra.mxu0 0
    %455 = vmatprep.subr.bf16.mxu0 0
    %456 = vmatpush2.bf16.msra.mxu0 0
    %457 = vmatprep.subr.bf16.mxu0 0
    %458 = vmatpush2.bf16.msra.mxu0 0
    %459 = vmatprep.subr.bf16.mxu0 0
    %460 = vmatpush2.bf16.msra.mxu0 0
    %461 = vmatprep.subr.bf16.mxu0 0
    %462 = vmatpush2.bf16.msra.mxu0 0
    %463 = vmatprep.subr.bf16.mxu0 0
    %464 = vmatpush2.bf16.msra.mxu0 0
    %465 = vmatprep.mubr.bf16.mxu0 0
    %466 = vmatmul.mubr.bf16.gmra.mxu0 %v431
    %v467 = vpop.f32.mrf.mxu0
    %v468 = vadd.f32 0.0, %v467
    %v469 = vpop.f32.mrf.mxu0
    %v470 = vadd.f32 0.0, %v469
    %v471 = vpop.f32.mrf.mxu0
    %v472 = vpop.f32.mrf.mxu0
    %473 = vdwg.mxu0
    %474 = vmatprep.subr.bf16.mxu0 %v196
    %475 = vmatpush1.bf16.msra.mxu0 %v195
    %476 = vmatprep.subr.bf16.mxu0 %v192
    %477 = vmatpush1.bf16.msra.mxu0 %v191
    %478 = vmatprep.subr.bf16.mxu0 %v188
    %479 = vmatpush1.bf16.msra.mxu0 %v187
    %480 = vmatprep.subr.bf16.mxu0 %v184
    %481 = vmatpush1.bf16.msra.mxu0 %v183
    %482 = vmatprep.subr.bf16.mxu0 %v180
    %483 = vmatpush1.bf16.msra.mxu0 %v179
    %484 = vmatprep.subr.bf16.mxu0 %v176
    %485 = vmatpush1.bf16.msra.mxu0 %v175
    %486 = vmatprep.subr.bf16.mxu0 %v172
    %487 = vmatpush1.bf16.msra.mxu0 %v171
    %488 = vmatprep.subr.bf16.mxu0 %v168
    %489 = vmatpush1.bf16.msra.mxu0 %v167
    %490 = vmatprep.subr.bf16.mxu0 0
    %491 = vmatpush2.bf16.msra.mxu0 0
    %492 = vmatprep.subr.bf16.mxu0 0
    %493 = vmatpush2.bf16.msra.mxu0 0
    %494 = vmatprep.subr.bf16.mxu0 0
    %495 = vmatpush2.bf16.msra.mxu0 0
    %496 = vmatprep.subr.bf16.mxu0 0
    %497 = vmatpush2.bf16.msra.mxu0 0
    %498 = vmatprep.subr.bf16.mxu0 0
    %499 = vmatpush2.bf16.msra.mxu0 0
    %500 = vmatprep.subr.bf16.mxu0 0
    %501 = vmatpush2.bf16.msra.mxu0 0
    %502 = vmatprep.subr.bf16.mxu0 0
    %503 = vmatpush2.bf16.msra.mxu0 0
    %504 = vmatprep.subr.bf16.mxu0 0
    %505 = vmatpush2.bf16.msra.mxu0 0
    %506 = vmatprep.mubr.bf16.mxu0 0
    %507 = vmatmul.mubr.bf16.gmra.mxu0 %v431
    %v508 = vpop.f32.mrf.mxu0
    %v509 = vadd.f32 0.0, %v508
    %v510 = vpop.f32.mrf.mxu0
    %v511 = vadd.f32 0.0, %v510
    %v512 = vpop.f32.mrf.mxu0
    %v513 = vpop.f32.mrf.mxu0
    %514 = vdwg.mxu0
    %v519 = vcombine.low %v468, %v470
    %v520 = vcombine.low %v509, %v511
    %v522 = vunpack.c.l.s4 1966171168
    %v523 = vunpack.c.0.s8 %v522
    %v524 = vlaneseq
    %v525 = vshrl.u32 %v524, 7
    %v526 = vsub.s32 %v523, %v525
    %v527 = vrot.slane %v519, %v526
    %v529 = vunpack.c.l.s4 1966171168
    %v530 = vunpack.c.0.s8 %v529
    %v531 = vlaneseq
    %v532 = vshrl.u32 %v531, 7
    %v533 = vsub.s32 %v530, %v532
    %v534 = vrot.slane %v520, %v533
    %v535 = vcombine.low %v527, %v534
    %v536 = vcombine.high %v527, %v534
    %v538 = vunpack.c.l.s4 1966171168
    %v539 = vunpack.c.0.s8 %v538
    %v540 = vlaneseq
    %v541 = vshrl.u32 %v540, 7
    %v542 = vsub.s32 %v539, %v541
    %v543 = vrot.slane %v535, %v542
    %v545 = vunpack.c.l.s4 1966171168
    %v546 = vunpack.c.0.s8 %v545
    %v547 = vlaneseq
    %v548 = vshrl.u32 %v547, 7
    %v549 = vsub.s32 %v546, %v548
    %v550 = vrot.slane %v536, %v549
    %v553 = vadd.f32 %v419, %v543
    %v554 = vadd.f32 %v421, %v550
    %v555 = vxor.u32 %v553, 2147483648
    %v556 = vxor.u32 %v554, 2147483648
    %v557 = vmul.f32 %v555, 1.442695
    %v558 = vpow.pop %v557
    %v559 = vmul.f32 %v556, 1.442695
    %v560 = vpow.pop %v559
    %v561 = vadd.f32 %v558, 1.0
    %v562 = vadd.f32 %v560, 1.0
    %v563 = vrcp.pop %v561
    %v564 = vmul.f32 1.0, %v563
    %v565 = vrcp.pop %v562
    %v566 = vmul.f32 1.0, %v565
    %v569 = vrot.slane %v553, 3
    %v570 = vrot.slane %v554, 3
    %v573 = vtanh.pop %v569
    %v574 = vtanh.pop %v570
    %v577 = vrot.slane %v564, 1
    %v578 = vrot.slane %v566, 1
    %v581 = vmul.f32 %v577, %v406
    %v582 = vmul.f32 %v578, %v407
    %v583 = vmul.f32 %v564, %v573
    %v584 = vmul.f32 %v566, %v574
    %v585 = vadd.f32 %v581, %v583
    %v586 = vadd.f32 %v582, %v584
    %v587 = vtanh.pop %v585
    %v588 = vtanh.pop %v586
    %v589 = vrot.slane %v564, 2
    %v590 = vrot.slane %v566, 2
    %v593 = vmul.f32 %v589, %v587
    %v594 = vmul.f32 %v590, %v588
    %595 = vst [vmem:[#allocation4 + $0x1] sm:$0x1] %v593
    %596 = vst [vmem:[#allocation4 + $0x11] sm:$0x1] %v594
    %s597 = scalar_lea.vmem %s0, 2
    %v598 = vld [vmem:[%s597] ss:$8 sm:$0xf]
    %s599 = scalar_lea.vmem %s0, 66
    %v600 = vld [vmem:[%s599] ss:$8 sm:$0xf]
    %v601 = vpack.c.bf16 %v593, %v593
    %v602 = vpack.c.bf16 %v594, %v594
    %v605 = vunpack.c.l.b16 %v601
    %v606 = vunpack.c.l.b16 %v602
    %v607 = vrot.slane %v606, 7
    %v608 = vsel %vm429, %v607, %v605
    %v609 = vpack.c.b16 %v608, %v608
    %611 = vmatprep.subr.bf16.mxu0 %v194
    %612 = vmatpush1.bf16.msra.mxu0 %v193
    %613 = vmatprep.subr.bf16.mxu0 %v190
    %614 = vmatpush1.bf16.msra.mxu0 %v189
    %615 = vmatprep.subr.bf16.mxu0 %v186
    %616 = vmatpush1.bf16.msra.mxu0 %v185
    %617 = vmatprep.subr.bf16.mxu0 %v182
    %618 = vmatpush1.bf16.msra.mxu0 %v181
    %619 = vmatprep.subr.bf16.mxu0 %v178
    %620 = vmatpush1.bf16.msra.mxu0 %v177
    %621 = vmatprep.subr.bf16.mxu0 %v174
    %622 = vmatpush1.bf16.msra.mxu0 %v173
    %623 = vmatprep.subr.bf16.mxu0 %v170
    %624 = vmatpush1.bf16.msra.mxu0 %v169
    %625 = vmatprep.subr.bf16.mxu0 %v166
    %626 = vmatpush1.bf16.msra.mxu0 %v165
    %627 = vmatprep.subr.bf16.mxu0 0
    %628 = vmatpush2.bf16.msra.mxu0 0
    %629 = vmatprep.subr.bf16.mxu0 0
    %630 = vmatpush2.bf16.msra.mxu0 0
    %631 = vmatprep.subr.bf16.mxu0 0
    %632 = vmatpush2.bf16.msra.mxu0 0
    %633 = vmatprep.subr.bf16.mxu0 0
    %634 = vmatpush2.bf16.msra.mxu0 0
    %635 = vmatprep.subr.bf16.mxu0 0
    %636 = vmatpush2.bf16.msra.mxu0 0
    %637 = vmatprep.subr.bf16.mxu0 0
    %638 = vmatpush2.bf16.msra.mxu0 0
    %639 = vmatprep.subr.bf16.mxu0 0
    %640 = vmatpush2.bf16.msra.mxu0 0
    %641 = vmatprep.subr.bf16.mxu0 0
    %642 = vmatpush2.bf16.msra.mxu0 0
    %643 = vmatprep.mubr.bf16.mxu0 0
    %644 = vmatmul.mubr.bf16.gmra.mxu0 %v609
    %v645 = vpop.f32.mrf.mxu0
    %v646 = vadd.f32 0.0, %v645
    %v647 = vpop.f32.mrf.mxu0
    %v648 = vadd.f32 0.0, %v647
    %v649 = vpop.f32.mrf.mxu0
    %v650 = vpop.f32.mrf.mxu0
    %651 = vdwg.mxu0
    %652 = vmatprep.subr.bf16.mxu0 %v196
    %653 = vmatpush1.bf16.msra.mxu0 %v195
    %654 = vmatprep.subr.bf16.mxu0 %v192
    %655 = vmatpush1.bf16.msra.mxu0 %v191
    %656 = vmatprep.subr.bf16.mxu0 %v188
    %657 = vmatpush1.bf16.msra.mxu0 %v187
    %658 = vmatprep.subr.bf16.mxu0 %v184
    %659 = vmatpush1.bf16.msra.mxu0 %v183
    %660 = vmatprep.subr.bf16.mxu0 %v180
    %661 = vmatpush1.bf16.msra.mxu0 %v179
    %662 = vmatprep.subr.bf16.mxu0 %v176
    %663 = vmatpush1.bf16.msra.mxu0 %v175
    %664 = vmatprep.subr.bf16.mxu0 %v172
    %665 = vmatpush1.bf16.msra.mxu0 %v171
    %666 = vmatprep.subr.bf16.mxu0 %v168
    %667 = vmatpush1.bf16.msra.mxu0 %v167
    %668 = vmatprep.subr.bf16.mxu0 0
    %669 = vmatpush2.bf16.msra.mxu0 0
    %670 = vmatprep.subr.bf16.mxu0 0
    %671 = vmatpush2.bf16.msra.mxu0 0
    %672 = vmatprep.subr.bf16.mxu0 0
    %673 = vmatpush2.bf16.msra.mxu0 0
    %674 = vmatprep.subr.bf16.mxu0 0
    %675 = vmatpush2.bf16.msra.mxu0 0
    %676 = vmatprep.subr.bf16.mxu0 0
    %677 = vmatpush2.bf16.msra.mxu0 0
    %678 = vmatprep.subr.bf16.mxu0 0
    %679 = vmatpush2.bf16.msra.mxu0 0
    %680 = vmatprep.subr.bf16.mxu0 0
    %681 = vmatpush2.bf16.msra.mxu0 0
    %682 = vmatprep.subr.bf16.mxu0 0
    %683 = vmatpush2.bf16.msra.mxu0 0
    %684 = vmatprep.mubr.bf16.mxu0 0
    %685 = vmatmul.mubr.bf16.gmra.mxu0 %v609
    %v686 = vpop.f32.mrf.mxu0
    %v687 = vadd.f32 0.0, %v686
    %v688 = vpop.f32.mrf.mxu0
    %v689 = vadd.f32 0.0, %v688
    %v690 = vpop.f32.mrf.mxu0
    %v691 = vpop.f32.mrf.mxu0
    %692 = vdwg.mxu0
    %v697 = vcombine.low %v646, %v648
    %v698 = vcombine.low %v687, %v689
    %v700 = vunpack.c.l.s4 1966171168
    %v701 = vunpack.c.0.s8 %v700
    %v702 = vlaneseq
    %v703 = vshrl.u32 %v702, 7
    %v704 = vsub.s32 %v701, %v703
    %v705 = vrot.slane %v697, %v704
    %v707 = vunpack.c.l.s4 1966171168
    %v708 = vunpack.c.0.s8 %v707
    %v709 = vlaneseq
    %v710 = vshrl.u32 %v709, 7
    %v711 = vsub.s32 %v708, %v710
    %v712 = vrot.slane %v698, %v711
    %v713 = vcombine.low %v705, %v712
    %v714 = vcombine.high %v705, %v712
    %v716 = vunpack.c.l.s4 1966171168
    %v717 = vunpack.c.0.s8 %v716
    %v718 = vlaneseq
    %v719 = vshrl.u32 %v718, 7
    %v720 = vsub.s32 %v717, %v719
    %v721 = vrot.slane %v713, %v720
    %v723 = vunpack.c.l.s4 1966171168
    %v724 = vunpack.c.0.s8 %v723
    %v725 = vlaneseq
    %v726 = vshrl.u32 %v725, 7
    %v727 = vsub.s32 %v724, %v726
    %v728 = vrot.slane %v714, %v727
    %v731 = vadd.f32 %v598, %v721
    %v732 = vadd.f32 %v600, %v728
    %v733 = vxor.u32 %v731, 2147483648
    %v734 = vxor.u32 %v732, 2147483648
    %v735 = vmul.f32 %v733, 1.442695
    %v736 = vpow.pop %v735
    %v737 = vmul.f32 %v734, 1.442695
    %v738 = vpow.pop %v737
    %v739 = vadd.f32 %v736, 1.0
    %v740 = vadd.f32 %v738, 1.0
    %v741 = vrcp.pop %v739
    %v742 = vmul.f32 1.0, %v741
    %v743 = vrcp.pop %v740
    %v744 = vmul.f32 1.0, %v743
    %v747 = vrot.slane %v731, 3
    %v748 = vrot.slane %v732, 3
    %v751 = vtanh.pop %v747
    %v752 = vtanh.pop %v748
    %v755 = vrot.slane %v742, 1
    %v756 = vrot.slane %v744, 1
    %v759 = vmul.f32 %v755, %v585
    %v760 = vmul.f32 %v756, %v586
    %v761 = vmul.f32 %v742, %v751
    %v762 = vmul.f32 %v744, %v752
    %v763 = vadd.f32 %v759, %v761
    %v764 = vadd.f32 %v760, %v762
    %v765 = vtanh.pop %v763
    %v766 = vtanh.pop %v764
    %v767 = vrot.slane %v742, 2
    %v768 = vrot.slane %v744, 2
    %v771 = vmul.f32 %v767, %v765
    %v772 = vmul.f32 %v768, %v766
    %773 = vst [vmem:[#allocation4 + $0x2] sm:$0x1] %v771
    %774 = vst [vmem:[#allocation4 + $0x12] sm:$0x1] %v772
    %s775 = scalar_lea.vmem %s0, 3
    %v776 = vld [vmem:[%s775] ss:$8 sm:$0xf]
    %s777 = scalar_lea.vmem %s0, 67
    %v778 = vld [vmem:[%s777] ss:$8 sm:$0xf]
    %v779 = vpack.c.bf16 %v771, %v771
    %v780 = vpack.c.bf16 %v772, %v772
    %v783 = vunpack.c.l.b16 %v779
    %v784 = vunpack.c.l.b16 %v780
    %v785 = vrot.slane %v784, 7
    %v786 = vsel %vm429, %v785, %v783
    %v787 = vpack.c.b16 %v786, %v786
    %789 = vmatprep.subr.bf16.mxu0 %v194
    %790 = vmatpush1.bf16.msra.mxu0 %v193
    %791 = vmatprep.subr.bf16.mxu0 %v190
    %792 = vmatpush1.bf16.msra.mxu0 %v189
    %793 = vmatprep.subr.bf16.mxu0 %v186
    %794 = vmatpush1.bf16.msra.mxu0 %v185
    %795 = vmatprep.subr.bf16.mxu0 %v182
    %796 = vmatpush1.bf16.msra.mxu0 %v181
    %797 = vmatprep.subr.bf16.mxu0 %v178
    %798 = vmatpush1.bf16.msra.mxu0 %v177
    %799 = vmatprep.subr.bf16.mxu0 %v174
    %800 = vmatpush1.bf16.msra.mxu0 %v173
    %801 = vmatprep.subr.bf16.mxu0 %v170
    %802 = vmatpush1.bf16.msra.mxu0 %v169
    %803 = vmatprep.subr.bf16.mxu0 %v166
    %804 = vmatpush1.bf16.msra.mxu0 %v165
    %805 = vmatprep.subr.bf16.mxu0 0
    %806 = vmatpush2.bf16.msra.mxu0 0
    %807 = vmatprep.subr.bf16.mxu0 0
    %808 = vmatpush2.bf16.msra.mxu0 0
    %809 = vmatprep.subr.bf16.mxu0 0
    %810 = vmatpush2.bf16.msra.mxu0 0
    %811 = vmatprep.subr.bf16.mxu0 0
    %812 = vmatpush2.bf16.msra.mxu0 0
    %813 = vmatprep.subr.bf16.mxu0 0
    %814 = vmatpush2.bf16.msra.mxu0 0
    %815 = vmatprep.subr.bf16.mxu0 0
    %816 = vmatpush2.bf16.msra.mxu0 0
    %817 = vmatprep.subr.bf16.mxu0 0
    %818 = vmatpush2.bf16.msra.mxu0 0
    %819 = vmatprep.subr.bf16.mxu0 0
    %820 = vmatpush2.bf16.msra.mxu0 0
    %821 = vmatprep.mubr.bf16.mxu0 0
    %822 = vmatmul.mubr.bf16.gmra.mxu0 %v787
    %v823 = vpop.f32.mrf.mxu0
    %v824 = vadd.f32 0.0, %v823
    %v825 = vpop.f32.mrf.mxu0
    %v826 = vadd.f32 0.0, %v825
    %v827 = vpop.f32.mrf.mxu0
    %v828 = vpop.f32.mrf.mxu0
    %829 = vdwg.mxu0
    %830 = vmatprep.subr.bf16.mxu0 %v196
    %831 = vmatpush1.bf16.msra.mxu0 %v195
    %832 = vmatprep.subr.bf16.mxu0 %v192
    %833 = vmatpush1.bf16.msra.mxu0 %v191
    %834 = vmatprep.subr.bf16.mxu0 %v188
    %835 = vmatpush1.bf16.msra.mxu0 %v187
    %836 = vmatprep.subr.bf16.mxu0 %v184
    %837 = vmatpush1.bf16.msra.mxu0 %v183
    %838 = vmatprep.subr.bf16.mxu0 %v180
    %839 = vmatpush1.bf16.msra.mxu0 %v179
    %840 = vmatprep.subr.bf16.mxu0 %v176
    %841 = vmatpush1.bf16.msra.mxu0 %v175
    %842 = vmatprep.subr.bf16.mxu0 %v172
    %843 = vmatpush1.bf16.msra.mxu0 %v171
    %844 = vmatprep.subr.bf16.mxu0 %v168
    %845 = vmatpush1.bf16.msra.mxu0 %v167
    %846 = vmatprep.subr.bf16.mxu0 0
    %847 = vmatpush2.bf16.msra.mxu0 0
    %848 = vmatprep.subr.bf16.mxu0 0
    %849 = vmatpush2.bf16.msra.mxu0 0
    %850 = vmatprep.subr.bf16.mxu0 0
    %851 = vmatpush2.bf16.msra.mxu0 0
    %852 = vmatprep.subr.bf16.mxu0 0
    %853 = vmatpush2.bf16.msra.mxu0 0
    %854 = vmatprep.subr.bf16.mxu0 0
    %855 = vmatpush2.bf16.msra.mxu0 0
    %856 = vmatprep.subr.bf16.mxu0 0
    %857 = vmatpush2.bf16.msra.mxu0 0
    %858 = vmatprep.subr.bf16.mxu0 0
    %859 = vmatpush2.bf16.msra.mxu0 0
    %860 = vmatprep.subr.bf16.mxu0 0
    %861 = vmatpush2.bf16.msra.mxu0 0
    %862 = vmatprep.mubr.bf16.mxu0 0
    %863 = vmatmul.mubr.bf16.gmra.mxu0 %v787
    %v864 = vpop.f32.mrf.mxu0
    %v865 = vadd.f32 0.0, %v864
    %v866 = vpop.f32.mrf.mxu0
    %v867 = vadd.f32 0.0, %v866
    %v868 = vpop.f32.mrf.mxu0
    %v869 = vpop.f32.mrf.mxu0
    %870 = vdwg.mxu0
    %v875 = vcombine.low %v824, %v826
    %v876 = vcombine.low %v865, %v867
    %v878 = vunpack.c.l.s4 1966171168
    %v879 = vunpack.c.0.s8 %v878
    %v880 = vlaneseq
    %v881 = vshrl.u32 %v880, 7
    %v882 = vsub.s32 %v879, %v881
    %v883 = vrot.slane %v875, %v882
    %v885 = vunpack.c.l.s4 1966171168
    %v886 = vunpack.c.0.s8 %v885
    %v887 = vlaneseq
    %v888 = vshrl.u32 %v887, 7
    %v889 = vsub.s32 %v886, %v888
    %v890 = vrot.slane %v876, %v889
    %v891 = vcombine.low %v883, %v890
    %v892 = vcombine.high %v883, %v890
    %v894 = vunpack.c.l.s4 1966171168
    %v895 = vunpack.c.0.s8 %v894
    %v896 = vlaneseq
    %v897 = vshrl.u32 %v896, 7
    %v898 = vsub.s32 %v895, %v897
    %v899 = vrot.slane %v891, %v898
    %v901 = vunpack.c.l.s4 1966171168
    %v902 = vunpack.c.0.s8 %v901
    %v903 = vlaneseq
    %v904 = vshrl.u32 %v903, 7
    %v905 = vsub.s32 %v902, %v904
    %v906 = vrot.slane %v892, %v905
    %v909 = vadd.f32 %v776, %v899
    %v910 = vadd.f32 %v778, %v906
    %v911 = vxor.u32 %v909, 2147483648
    %v912 = vxor.u32 %v910, 2147483648
    %v913 = vmul.f32 %v911, 1.442695
    %v914 = vpow.pop %v913
    %v915 = vmul.f32 %v912, 1.442695
    %v916 = vpow.pop %v915
    %v917 = vadd.f32 %v914, 1.0
    %v918 = vadd.f32 %v916, 1.0
    %v919 = vrcp.pop %v917
    %v920 = vmul.f32 1.0, %v919
    %v921 = vrcp.pop %v918
    %v922 = vmul.f32 1.0, %v921
    %v925 = vrot.slane %v909, 3
    %v926 = vrot.slane %v910, 3
    %v929 = vtanh.pop %v925
    %v930 = vtanh.pop %v926
    %v933 = vrot.slane %v920, 1
    %v934 = vrot.slane %v922, 1
    %v937 = vmul.f32 %v933, %v763
    %v938 = vmul.f32 %v934, %v764
    %v939 = vmul.f32 %v920, %v929
    %v940 = vmul.f32 %v922, %v930
    %v941 = vadd.f32 %v937, %v939
    %v942 = vadd.f32 %v938, %v940
    %v943 = vtanh.pop %v941
    %v944 = vtanh.pop %v942
    %v945 = vrot.slane %v920, 2
    %v946 = vrot.slane %v922, 2
    %v949 = vmul.f32 %v945, %v943
    %v950 = vmul.f32 %v946, %v944
    %951 = vst [vmem:[#allocation4 + $0x3] sm:$0x1] %v949
    %952 = vst [vmem:[#allocation4 + $0x13] sm:$0x1] %v950
    %s953 = scalar_lea.vmem %s0, 4
    %v954 = vld [vmem:[%s953] ss:$8 sm:$0xf]
    %s955 = scalar_lea.vmem %s0, 68
    %v956 = vld [vmem:[%s955] ss:$8 sm:$0xf]
    %v957 = vpack.c.bf16 %v949, %v949
    %v958 = vpack.c.bf16 %v950, %v950
    %v961 = vunpack.c.l.b16 %v957
    %v962 = vunpack.c.l.b16 %v958
    %v963 = vrot.slane %v962, 7
    %v964 = vsel %vm429, %v963, %v961
    %v965 = vpack.c.b16 %v964, %v964
    %967 = vmatprep.subr.bf16.mxu0 %v194
    %968 = vmatpush1.bf16.msra.mxu0 %v193
    %969 = vmatprep.subr.bf16.mxu0 %v190
    %970 = vmatpush1.bf16.msra.mxu0 %v189
    %971 = vmatprep.subr.bf16.mxu0 %v186
    %972 = vmatpush1.bf16.msra.mxu0 %v185
    %973 = vmatprep.subr.bf16.mxu0 %v182
    %974 = vmatpush1.bf16.msra.mxu0 %v181
    %975 = vmatprep.subr.bf16.mxu0 %v178
    %976 = vmatpush1.bf16.msra.mxu0 %v177
    %977 = vmatprep.subr.bf16.mxu0 %v174
    %978 = vmatpush1.bf16.msra.mxu0 %v173
    %979 = vmatprep.subr.bf16.mxu0 %v170
    %980 = vmatpush1.bf16.msra.mxu0 %v169
    %981 = vmatprep.subr.bf16.mxu0 %v166
    %982 = vmatpush1.bf16.msra.mxu0 %v165
    %983 = vmatprep.subr.bf16.mxu0 0
    %984 = vmatpush2.bf16.msra.mxu0 0
    %985 = vmatprep.subr.bf16.mxu0 0
    %986 = vmatpush2.bf16.msra.mxu0 0
    %987 = vmatprep.subr.bf16.mxu0 0
    %988 = vmatpush2.bf16.msra.mxu0 0
    %989 = vmatprep.subr.bf16.mxu0 0
    %990 = vmatpush2.bf16.msra.mxu0 0
    %991 = vmatprep.subr.bf16.mxu0 0
    %992 = vmatpush2.bf16.msra.mxu0 0
    %993 = vmatprep.subr.bf16.mxu0 0
    %994 = vmatpush2.bf16.msra.mxu0 0
    %995 = vmatprep.subr.bf16.mxu0 0
    %996 = vmatpush2.bf16.msra.mxu0 0
    %997 = vmatprep.subr.bf16.mxu0 0
    %998 = vmatpush2.bf16.msra.mxu0 0
    %999 = vmatprep.mubr.bf16.mxu0 0
    %1000 = vmatmul.mubr.bf16.gmra.mxu0 %v965
    %v1001 = vpop.f32.mrf.mxu0
    %v1002 = vadd.f32 0.0, %v1001
    %v1003 = vpop.f32.mrf.mxu0
    %v1004 = vadd.f32 0.0, %v1003
    %v1005 = vpop.f32.mrf.mxu0
    %v1006 = vpop.f32.mrf.mxu0
    %1007 = vdwg.mxu0
    %1008 = vmatprep.subr.bf16.mxu0 %v196
    %1009 = vmatpush1.bf16.msra.mxu0 %v195
    %1010 = vmatprep.subr.bf16.mxu0 %v192
    %1011 = vmatpush1.bf16.msra.mxu0 %v191
    %1012 = vmatprep.subr.bf16.mxu0 %v188
    %1013 = vmatpush1.bf16.msra.mxu0 %v187
    %1014 = vmatprep.subr.bf16.mxu0 %v184
    %1015 = vmatpush1.bf16.msra.mxu0 %v183
    %1016 = vmatprep.subr.bf16.mxu0 %v180
    %1017 = vmatpush1.bf16.msra.mxu0 %v179
    %1018 = vmatprep.subr.bf16.mxu0 %v176
    %1019 = vmatpush1.bf16.msra.mxu0 %v175
    %1020 = vmatprep.subr.bf16.mxu0 %v172
    %1021 = vmatpush1.bf16.msra.mxu0 %v171
    %1022 = vmatprep.subr.bf16.mxu0 %v168
    %1023 = vmatpush1.bf16.msra.mxu0 %v167
    %1024 = vmatprep.subr.bf16.mxu0 0
    %1025 = vmatpush2.bf16.msra.mxu0 0
    %1026 = vmatprep.subr.bf16.mxu0 0
    %1027 = vmatpush2.bf16.msra.mxu0 0
    %1028 = vmatprep.subr.bf16.mxu0 0
    %1029 = vmatpush2.bf16.msra.mxu0 0
    %1030 = vmatprep.subr.bf16.mxu0 0
    %1031 = vmatpush2.bf16.msra.mxu0 0
    %1032 = vmatprep.subr.bf16.mxu0 0
    %1033 = vmatpush2.bf16.msra.mxu0 0
    %1034 = vmatprep.subr.bf16.mxu0 0
    %1035 = vmatpush2.bf16.msra.mxu0 0
    %1036 = vmatprep.subr.bf16.mxu0 0
    %1037 = vmatpush2.bf16.msra.mxu0 0
    %1038 = vmatprep.subr.bf16.mxu0 0
    %1039 = vmatpush2.bf16.msra.mxu0 0
    %1040 = vmatprep.mubr.bf16.mxu0 0
    %1041 = vmatmul.mubr.bf16.gmra.mxu0 %v965
    %v1042 = vpop.f32.mrf.mxu0
    %v1043 = vadd.f32 0.0, %v1042
    %v1044 = vpop.f32.mrf.mxu0
    %v1045 = vadd.f32 0.0, %v1044
    %v1046 = vpop.f32.mrf.mxu0
    %v1047 = vpop.f32.mrf.mxu0
    %1048 = vdwg.mxu0
    %v1053 = vcombine.low %v1002, %v1004
    %v1054 = vcombine.low %v1043, %v1045
    %v1056 = vunpack.c.l.s4 1966171168
    %v1057 = vunpack.c.0.s8 %v1056
    %v1058 = vlaneseq
    %v1059 = vshrl.u32 %v1058, 7
    %v1060 = vsub.s32 %v1057, %v1059
    %v1061 = vrot.slane %v1053, %v1060
    %v1063 = vunpack.c.l.s4 1966171168
    %v1064 = vunpack.c.0.s8 %v1063
    %v1065 = vlaneseq
    %v1066 = vshrl.u32 %v1065, 7
    %v1067 = vsub.s32 %v1064, %v1066
    %v1068 = vrot.slane %v1054, %v1067
    %v1069 = vcombine.low %v1061, %v1068
    %v1070 = vcombine.high %v1061, %v1068
    %v1072 = vunpack.c.l.s4 1966171168
    %v1073 = vunpack.c.0.s8 %v1072
    %v1074 = vlaneseq
    %v1075 = vshrl.u32 %v1074, 7
    %v1076 = vsub.s32 %v1073, %v1075
    %v1077 = vrot.slane %v1069, %v1076
    %v1079 = vunpack.c.l.s4 1966171168
    %v1080 = vunpack.c.0.s8 %v1079
    %v1081 = vlaneseq
    %v1082 = vshrl.u32 %v1081, 7
    %v1083 = vsub.s32 %v1080, %v1082
    %v1084 = vrot.slane %v1070, %v1083
    %v1087 = vadd.f32 %v954, %v1077
    %v1088 = vadd.f32 %v956, %v1084
    %v1089 = vxor.u32 %v1087, 2147483648
    %v1090 = vxor.u32 %v1088, 2147483648
    %v1091 = vmul.f32 %v1089, 1.442695
    %v1092 = vpow.pop %v1091
    %v1093 = vmul.f32 %v1090, 1.442695
    %v1094 = vpow.pop %v1093
    %v1095 = vadd.f32 %v1092, 1.0
    %v1096 = vadd.f32 %v1094, 1.0
    %v1097 = vrcp.pop %v1095
    %v1098 = vmul.f32 1.0, %v1097
    %v1099 = vrcp.pop %v1096
    %v1100 = vmul.f32 1.0, %v1099
    %v1103 = vrot.slane %v1087, 3
    %v1104 = vrot.slane %v1088, 3
    %v1107 = vtanh.pop %v1103
    %v1108 = vtanh.pop %v1104
    %v1111 = vrot.slane %v1098, 1
    %v1112 = vrot.slane %v1100, 1
    %v1115 = vmul.f32 %v1111, %v941
    %v1116 = vmul.f32 %v1112, %v942
    %v1117 = vmul.f32 %v1098, %v1107
    %v1118 = vmul.f32 %v1100, %v1108
    %v1119 = vadd.f32 %v1115, %v1117
    %v1120 = vadd.f32 %v1116, %v1118
    %v1121 = vtanh.pop %v1119
    %v1122 = vtanh.pop %v1120
    %v1123 = vrot.slane %v1098, 2
    %v1124 = vrot.slane %v1100, 2
    %v1127 = vmul.f32 %v1123, %v1121
    %v1128 = vmul.f32 %v1124, %v1122
    %1129 = vst [vmem:[#allocation4 + $0x4] sm:$0x1] %v1127
    %1130 = vst [vmem:[#allocation4 + $0x14] sm:$0x1] %v1128
    %s1131 = scalar_lea.vmem %s0, 5
    %v1132 = vld [vmem:[%s1131] ss:$8 sm:$0xf]
    %s1133 = scalar_lea.vmem %s0, 69
    %v1134 = vld [vmem:[%s1133] ss:$8 sm:$0xf]
    %v1135 = vpack.c.bf16 %v1127, %v1127
    %v1136 = vpack.c.bf16 %v1128, %v1128
    %v1139 = vunpack.c.l.b16 %v1135
    %v1140 = vunpack.c.l.b16 %v1136
    %v1141 = vrot.slane %v1140, 7
    %v1142 = vsel %vm429, %v1141, %v1139
    %v1143 = vpack.c.b16 %v1142, %v1142
    %1145 = vmatprep.subr.bf16.mxu0 %v194
    %1146 = vmatpush1.bf16.msra.mxu0 %v193
    %1147 = vmatprep.subr.bf16.mxu0 %v190
    %1148 = vmatpush1.bf16.msra.mxu0 %v189
    %1149 = vmatprep.subr.bf16.mxu0 %v186
    %1150 = vmatpush1.bf16.msra.mxu0 %v185
    %1151 = vmatprep.subr.bf16.mxu0 %v182
    %1152 = vmatpush1.bf16.msra.mxu0 %v181
    %1153 = vmatprep.subr.bf16.mxu0 %v178
    %1154 = vmatpush1.bf16.msra.mxu0 %v177
    %1155 = vmatprep.subr.bf16.mxu0 %v174
    %1156 = vmatpush1.bf16.msra.mxu0 %v173
    %1157 = vmatprep.subr.bf16.mxu0 %v170
    %1158 = vmatpush1.bf16.msra.mxu0 %v169
    %1159 = vmatprep.subr.bf16.mxu0 %v166
    %1160 = vmatpush1.bf16.msra.mxu0 %v165
    %1161 = vmatprep.subr.bf16.mxu0 0
    %1162 = vmatpush2.bf16.msra.mxu0 0
    %1163 = vmatprep.subr.bf16.mxu0 0
    %1164 = vmatpush2.bf16.msra.mxu0 0
    %1165 = vmatprep.subr.bf16.mxu0 0
    %1166 = vmatpush2.bf16.msra.mxu0 0
    %1167 = vmatprep.subr.bf16.mxu0 0
    %1168 = vmatpush2.bf16.msra.mxu0 0
    %1169 = vmatprep.subr.bf16.mxu0 0
    %1170 = vmatpush2.bf16.msra.mxu0 0
    %1171 = vmatprep.subr.bf16.mxu0 0
    %1172 = vmatpush2.bf16.msra.mxu0 0
    %1173 = vmatprep.subr.bf16.mxu0 0
    %1174 = vmatpush2.bf16.msra.mxu0 0
    %1175 = vmatprep.subr.bf16.mxu0 0
    %1176 = vmatpush2.bf16.msra.mxu0 0
    %1177 = vmatprep.mubr.bf16.mxu0 0
    %1178 = vmatmul.mubr.bf16.gmra.mxu0 %v1143
    %v1179 = vpop.f32.mrf.mxu0
    %v1180 = vadd.f32 0.0, %v1179
    %v1181 = vpop.f32.mrf.mxu0
    %v1182 = vadd.f32 0.0, %v1181
    %v1183 = vpop.f32.mrf.mxu0
    %v1184 = vpop.f32.mrf.mxu0
    %1185 = vdwg.mxu0
    %1186 = vmatprep.subr.bf16.mxu0 %v196
    %1187 = vmatpush1.bf16.msra.mxu0 %v195
    %1188 = vmatprep.subr.bf16.mxu0 %v192
    %1189 = vmatpush1.bf16.msra.mxu0 %v191
    %1190 = vmatprep.subr.bf16.mxu0 %v188
    %1191 = vmatpush1.bf16.msra.mxu0 %v187
    %1192 = vmatprep.subr.bf16.mxu0 %v184
    %1193 = vmatpush1.bf16.msra.mxu0 %v183
    %1194 = vmatprep.subr.bf16.mxu0 %v180
    %1195 = vmatpush1.bf16.msra.mxu0 %v179
    %1196 = vmatprep.subr.bf16.mxu0 %v176
    %1197 = vmatpush1.bf16.msra.mxu0 %v175
    %1198 = vmatprep.subr.bf16.mxu0 %v172
    %1199 = vmatpush1.bf16.msra.mxu0 %v171
    %1200 = vmatprep.subr.bf16.mxu0 %v168
    %1201 = vmatpush1.bf16.msra.mxu0 %v167
    %1202 = vmatprep.subr.bf16.mxu0 0
    %1203 = vmatpush2.bf16.msra.mxu0 0
    %1204 = vmatprep.subr.bf16.mxu0 0
    %1205 = vmatpush2.bf16.msra.mxu0 0
    %1206 = vmatprep.subr.bf16.mxu0 0
    %1207 = vmatpush2.bf16.msra.mxu0 0
    %1208 = vmatprep.subr.bf16.mxu0 0
    %1209 = vmatpush2.bf16.msra.mxu0 0
    %1210 = vmatprep.subr.bf16.mxu0 0
    %1211 = vmatpush2.bf16.msra.mxu0 0
    %1212 = vmatprep.subr.bf16.mxu0 0
    %1213 = vmatpush2.bf16.msra.mxu0 0
    %1214 = vmatprep.subr.bf16.mxu0 0
    %1215 = vmatpush2.bf16.msra.mxu0 0
    %1216 = vmatprep.subr.bf16.mxu0 0
    %1217 = vmatpush2.bf16.msra.mxu0 0
    %1218 = vmatprep.mubr.bf16.mxu0 0
    %1219 = vmatmul.mubr.bf16.gmra.mxu0 %v1143
    %v1220 = vpop.f32.mrf.mxu0
    %v1221 = vadd.f32 0.0, %v1220
    %v1222 = vpop.f32.mrf.mxu0
    %v1223 = vadd.f32 0.0, %v1222
    %v1224 = vpop.f32.mrf.mxu0
    %v1225 = vpop.f32.mrf.mxu0
    %1226 = vdwg.mxu0
    %v1231 = vcombine.low %v1180, %v1182
    %v1232 = vcombine.low %v1221, %v1223
    %v1234 = vunpack.c.l.s4 1966171168
    %v1235 = vunpack.c.0.s8 %v1234
    %v1236 = vlaneseq
    %v1237 = vshrl.u32 %v1236, 7
    %v1238 = vsub.s32 %v1235, %v1237
    %v1239 = vrot.slane %v1231, %v1238
    %v1241 = vunpack.c.l.s4 1966171168
    %v1242 = vunpack.c.0.s8 %v1241
    %v1243 = vlaneseq
    %v1244 = vshrl.u32 %v1243, 7
    %v1245 = vsub.s32 %v1242, %v1244
    %v1246 = vrot.slane %v1232, %v1245
    %v1247 = vcombine.low %v1239, %v1246
    %v1248 = vcombine.high %v1239, %v1246
    %v1250 = vunpack.c.l.s4 1966171168
    %v1251 = vunpack.c.0.s8 %v1250
    %v1252 = vlaneseq
    %v1253 = vshrl.u32 %v1252, 7
    %v1254 = vsub.s32 %v1251, %v1253
    %v1255 = vrot.slane %v1247, %v1254
    %v1257 = vunpack.c.l.s4 1966171168
    %v1258 = vunpack.c.0.s8 %v1257
    %v1259 = vlaneseq
    %v1260 = vshrl.u32 %v1259, 7
    %v1261 = vsub.s32 %v1258, %v1260
    %v1262 = vrot.slane %v1248, %v1261
    %v1265 = vadd.f32 %v1132, %v1255
    %v1266 = vadd.f32 %v1134, %v1262
    %v1267 = vxor.u32 %v1265, 2147483648
    %v1268 = vxor.u32 %v1266, 2147483648
    %v1269 = vmul.f32 %v1267, 1.442695
    %v1270 = vpow.pop %v1269
    %v1271 = vmul.f32 %v1268, 1.442695
    %v1272 = vpow.pop %v1271
    %v1273 = vadd.f32 %v1270, 1.0
    %v1274 = vadd.f32 %v1272, 1.0
    %v1275 = vrcp.pop %v1273
    %v1276 = vmul.f32 1.0, %v1275
    %v1277 = vrcp.pop %v1274
    %v1278 = vmul.f32 1.0, %v1277
    %v1281 = vrot.slane %v1265, 3
    %v1282 = vrot.slane %v1266, 3
    %v1285 = vtanh.pop %v1281
    %v1286 = vtanh.pop %v1282
    %v1289 = vrot.slane %v1276, 1
    %v1290 = vrot.slane %v1278, 1
    %v1293 = vmul.f32 %v1289, %v1119
    %v1294 = vmul.f32 %v1290, %v1120
    %v1295 = vmul.f32 %v1276, %v1285
    %v1296 = vmul.f32 %v1278, %v1286
    %v1297 = vadd.f32 %v1293, %v1295
    %v1298 = vadd.f32 %v1294, %v1296
    %v1299 = vtanh.pop %v1297
    %v1300 = vtanh.pop %v1298
    %v1301 = vrot.slane %v1276, 2
    %v1302 = vrot.slane %v1278, 2
    %v1305 = vmul.f32 %v1301, %v1299
    %v1306 = vmul.f32 %v1302, %v1300
    %1307 = vst [vmem:[#allocation4 + $0x5] sm:$0x1] %v1305
    %1308 = vst [vmem:[#allocation4 + $0x15] sm:$0x1] %v1306
    %s1309 = scalar_lea.vmem %s0, 6
    %v1310 = vld [vmem:[%s1309] ss:$8 sm:$0xf]
    %s1311 = scalar_lea.vmem %s0, 70
    %v1312 = vld [vmem:[%s1311] ss:$8 sm:$0xf]
    %v1313 = vpack.c.bf16 %v1305, %v1305
    %v1314 = vpack.c.bf16 %v1306, %v1306
    %v1317 = vunpack.c.l.b16 %v1313
    %v1318 = vunpack.c.l.b16 %v1314
    %v1319 = vrot.slane %v1318, 7
    %v1320 = vsel %vm429, %v1319, %v1317
    %v1321 = vpack.c.b16 %v1320, %v1320
    %1323 = vmatprep.subr.bf16.mxu0 %v194
    %1324 = vmatpush1.bf16.msra.mxu0 %v193
    %1325 = vmatprep.subr.bf16.mxu0 %v190
    %1326 = vmatpush1.bf16.msra.mxu0 %v189
    %1327 = vmatprep.subr.bf16.mxu0 %v186
    %1328 = vmatpush1.bf16.msra.mxu0 %v185
    %1329 = vmatprep.subr.bf16.mxu0 %v182
    %1330 = vmatpush1.bf16.msra.mxu0 %v181
    %1331 = vmatprep.subr.bf16.mxu0 %v178
    %1332 = vmatpush1.bf16.msra.mxu0 %v177
    %1333 = vmatprep.subr.bf16.mxu0 %v174
    %1334 = vmatpush1.bf16.msra.mxu0 %v173
    %1335 = vmatprep.subr.bf16.mxu0 %v170
    %1336 = vmatpush1.bf16.msra.mxu0 %v169
    %1337 = vmatprep.subr.bf16.mxu0 %v166
    %1338 = vmatpush1.bf16.msra.mxu0 %v165
    %1339 = vmatprep.subr.bf16.mxu0 0
    %1340 = vmatpush2.bf16.msra.mxu0 0
    %1341 = vmatprep.subr.bf16.mxu0 0
    %1342 = vmatpush2.bf16.msra.mxu0 0
    %1343 = vmatprep.subr.bf16.mxu0 0
    %1344 = vmatpush2.bf16.msra.mxu0 0
    %1345 = vmatprep.subr.bf16.mxu0 0
    %1346 = vmatpush2.bf16.msra.mxu0 0
    %1347 = vmatprep.subr.bf16.mxu0 0
    %1348 = vmatpush2.bf16.msra.mxu0 0
    %1349 = vmatprep.subr.bf16.mxu0 0
    %1350 = vmatpush2.bf16.msra.mxu0 0
    %1351 = vmatprep.subr.bf16.mxu0 0
    %1352 = vmatpush2.bf16.msra.mxu0 0
    %1353 = vmatprep.subr.bf16.mxu0 0
    %1354 = vmatpush2.bf16.msra.mxu0 0
    %1355 = vmatprep.mubr.bf16.mxu0 0
    %1356 = vmatmul.mubr.bf16.gmra.mxu0 %v1321
    %v1357 = vpop.f32.mrf.mxu0
    %v1358 = vadd.f32 0.0, %v1357
    %v1359 = vpop.f32.mrf.mxu0
    %v1360 = vadd.f32 0.0, %v1359
    %v1361 = vpop.f32.mrf.mxu0
    %v1362 = vpop.f32.mrf.mxu0
    %1363 = vdwg.mxu0
    %1364 = vmatprep.subr.bf16.mxu0 %v196
    %1365 = vmatpush1.bf16.msra.mxu0 %v195
    %1366 = vmatprep.subr.bf16.mxu0 %v192
    %1367 = vmatpush1.bf16.msra.mxu0 %v191
    %1368 = vmatprep.subr.bf16.mxu0 %v188
    %1369 = vmatpush1.bf16.msra.mxu0 %v187
    %1370 = vmatprep.subr.bf16.mxu0 %v184
    %1371 = vmatpush1.bf16.msra.mxu0 %v183
    %1372 = vmatprep.subr.bf16.mxu0 %v180
    %1373 = vmatpush1.bf16.msra.mxu0 %v179
    %1374 = vmatprep.subr.bf16.mxu0 %v176
    %1375 = vmatpush1.bf16.msra.mxu0 %v175
    %1376 = vmatprep.subr.bf16.mxu0 %v172
    %1377 = vmatpush1.bf16.msra.mxu0 %v171
    %1378 = vmatprep.subr.bf16.mxu0 %v168
    %1379 = vmatpush1.bf16.msra.mxu0 %v167
    %1380 = vmatprep.subr.bf16.mxu0 0
    %1381 = vmatpush2.bf16.msra.mxu0 0
    %1382 = vmatprep.subr.bf16.mxu0 0
    %1383 = vmatpush2.bf16.msra.mxu0 0
    %1384 = vmatprep.subr.bf16.mxu0 0
    %1385 = vmatpush2.bf16.msra.mxu0 0
    %1386 = vmatprep.subr.bf16.mxu0 0
    %1387 = vmatpush2.bf16.msra.mxu0 0
    %1388 = vmatprep.subr.bf16.mxu0 0
    %1389 = vmatpush2.bf16.msra.mxu0 0
    %1390 = vmatprep.subr.bf16.mxu0 0
    %1391 = vmatpush2.bf16.msra.mxu0 0
    %1392 = vmatprep.subr.bf16.mxu0 0
    %1393 = vmatpush2.bf16.msra.mxu0 0
    %1394 = vmatprep.subr.bf16.mxu0 0
    %1395 = vmatpush2.bf16.msra.mxu0 0
    %1396 = vmatprep.mubr.bf16.mxu0 0
    %1397 = vmatmul.mubr.bf16.gmra.mxu0 %v1321
    %v1398 = vpop.f32.mrf.mxu0
    %v1399 = vadd.f32 0.0, %v1398
    %v1400 = vpop.f32.mrf.mxu0
    %v1401 = vadd.f32 0.0, %v1400
    %v1402 = vpop.f32.mrf.mxu0
    %v1403 = vpop.f32.mrf.mxu0
    %1404 = vdwg.mxu0
    %v1409 = vcombine.low %v1358, %v1360
    %v1410 = vcombine.low %v1399, %v1401
    %v1412 = vunpack.c.l.s4 1966171168
    %v1413 = vunpack.c.0.s8 %v1412
    %v1414 = vlaneseq
    %v1415 = vshrl.u32 %v1414, 7
    %v1416 = vsub.s32 %v1413, %v1415
    %v1417 = vrot.slane %v1409, %v1416
    %v1419 = vunpack.c.l.s4 1966171168
    %v1420 = vunpack.c.0.s8 %v1419
    %v1421 = vlaneseq
    %v1422 = vshrl.u32 %v1421, 7
    %v1423 = vsub.s32 %v1420, %v1422
    %v1424 = vrot.slane %v1410, %v1423
    %v1425 = vcombine.low %v1417, %v1424
    %v1426 = vcombine.high %v1417, %v1424
    %v1428 = vunpack.c.l.s4 1966171168
    %v1429 = vunpack.c.0.s8 %v1428
    %v1430 = vlaneseq
    %v1431 = vshrl.u32 %v1430, 7
    %v1432 = vsub.s32 %v1429, %v1431
    %v1433 = vrot.slane %v1425, %v1432
    %v1435 = vunpack.c.l.s4 1966171168
    %v1436 = vunpack.c.0.s8 %v1435
    %v1437 = vlaneseq
    %v1438 = vshrl.u32 %v1437, 7
    %v1439 = vsub.s32 %v1436, %v1438
    %v1440 = vrot.slane %v1426, %v1439
    %v1443 = vadd.f32 %v1310, %v1433
    %v1444 = vadd.f32 %v1312, %v1440
    %v1445 = vxor.u32 %v1443, 2147483648
    %v1446 = vxor.u32 %v1444, 2147483648
    %v1447 = vmul.f32 %v1445, 1.442695
    %v1448 = vpow.pop %v1447
    %v1449 = vmul.f32 %v1446, 1.442695
    %v1450 = vpow.pop %v1449
    %v1451 = vadd.f32 %v1448, 1.0
    %v1452 = vadd.f32 %v1450, 1.0
    %v1453 = vrcp.pop %v1451
    %v1454 = vmul.f32 1.0, %v1453
    %v1455 = vrcp.pop %v1452
    %v1456 = vmul.f32 1.0, %v1455
    %v1459 = vrot.slane %v1443, 3
    %v1460 = vrot.slane %v1444, 3
    %v1463 = vtanh.pop %v1459
    %v1464 = vtanh.pop %v1460
    %v1467 = vrot.slane %v1454, 1
    %v1468 = vrot.slane %v1456, 1
    %v1471 = vmul.f32 %v1467, %v1297
    %v1472 = vmul.f32 %v1468, %v1298
    %v1473 = vmul.f32 %v1454, %v1463
    %v1474 = vmul.f32 %v1456, %v1464
    %v1475 = vadd.f32 %v1471, %v1473
    %v1476 = vadd.f32 %v1472, %v1474
    %v1477 = vtanh.pop %v1475
    %v1478 = vtanh.pop %v1476
    %v1479 = vrot.slane %v1454, 2
    %v1480 = vrot.slane %v1456, 2
    %v1483 = vmul.f32 %v1479, %v1477
    %v1484 = vmul.f32 %v1480, %v1478
    %1485 = vst [vmem:[#allocation4 + $0x6] sm:$0x1] %v1483
    %1486 = vst [vmem:[#allocation4 + $0x16] sm:$0x1] %v1484
    %s1487 = scalar_lea.vmem %s0, 7
    %v1488 = vld [vmem:[%s1487] ss:$8 sm:$0xf]
    %s1489 = scalar_lea.vmem %s0, 71
    %v1490 = vld [vmem:[%s1489] ss:$8 sm:$0xf]
    %v1491 = vpack.c.bf16 %v1483, %v1483
    %v1492 = vpack.c.bf16 %v1484, %v1484
    %v1495 = vunpack.c.l.b16 %v1491
    %v1496 = vunpack.c.l.b16 %v1492
    %v1497 = vrot.slane %v1496, 7
    %v1498 = vsel %vm429, %v1497, %v1495
    %v1499 = vpack.c.b16 %v1498, %v1498
    %1501 = vmatprep.subr.bf16.mxu0 %v194
    %1502 = vmatpush1.bf16.msra.mxu0 %v193
    %1503 = vmatprep.subr.bf16.mxu0 %v190
    %1504 = vmatpush1.bf16.msra.mxu0 %v189
    %1505 = vmatprep.subr.bf16.mxu0 %v186
    %1506 = vmatpush1.bf16.msra.mxu0 %v185
    %1507 = vmatprep.subr.bf16.mxu0 %v182
    %1508 = vmatpush1.bf16.msra.mxu0 %v181
    %1509 = vmatprep.subr.bf16.mxu0 %v178
    %1510 = vmatpush1.bf16.msra.mxu0 %v177
    %1511 = vmatprep.subr.bf16.mxu0 %v174
    %1512 = vmatpush1.bf16.msra.mxu0 %v173
    %1513 = vmatprep.subr.bf16.mxu0 %v170
    %1514 = vmatpush1.bf16.msra.mxu0 %v169
    %1515 = vmatprep.subr.bf16.mxu0 %v166
    %1516 = vmatpush1.bf16.msra.mxu0 %v165
    %1517 = vmatprep.subr.bf16.mxu0 0
    %1518 = vmatpush2.bf16.msra.mxu0 0
    %1519 = vmatprep.subr.bf16.mxu0 0
    %1520 = vmatpush2.bf16.msra.mxu0 0
    %1521 = vmatprep.subr.bf16.mxu0 0
    %1522 = vmatpush2.bf16.msra.mxu0 0
    %1523 = vmatprep.subr.bf16.mxu0 0
    %1524 = vmatpush2.bf16.msra.mxu0 0
    %1525 = vmatprep.subr.bf16.mxu0 0
    %1526 = vmatpush2.bf16.msra.mxu0 0
    %1527 = vmatprep.subr.bf16.mxu0 0
    %1528 = vmatpush2.bf16.msra.mxu0 0
    %1529 = vmatprep.subr.bf16.mxu0 0
    %1530 = vmatpush2.bf16.msra.mxu0 0
    %1531 = vmatprep.subr.bf16.mxu0 0
    %1532 = vmatpush2.bf16.msra.mxu0 0
    %1533 = vmatprep.mubr.bf16.mxu0 0
    %1534 = vmatmul.mubr.bf16.gmra.mxu0 %v1499
    %v1535 = vpop.f32.mrf.mxu0
    %v1536 = vadd.f32 0.0, %v1535
    %v1537 = vpop.f32.mrf.mxu0
    %v1538 = vadd.f32 0.0, %v1537
    %v1539 = vpop.f32.mrf.mxu0
    %v1540 = vpop.f32.mrf.mxu0
    %1541 = vdwg.mxu0
    %1542 = vmatprep.subr.bf16.mxu0 %v196
    %1543 = vmatpush1.bf16.msra.mxu0 %v195
    %1544 = vmatprep.subr.bf16.mxu0 %v192
    %1545 = vmatpush1.bf16.msra.mxu0 %v191
    %1546 = vmatprep.subr.bf16.mxu0 %v188
    %1547 = vmatpush1.bf16.msra.mxu0 %v187
    %1548 = vmatprep.subr.bf16.mxu0 %v184
    %1549 = vmatpush1.bf16.msra.mxu0 %v183
    %1550 = vmatprep.subr.bf16.mxu0 %v180
    %1551 = vmatpush1.bf16.msra.mxu0 %v179
    %1552 = vmatprep.subr.bf16.mxu0 %v176
    %1553 = vmatpush1.bf16.msra.mxu0 %v175
    %1554 = vmatprep.subr.bf16.mxu0 %v172
    %1555 = vmatpush1.bf16.msra.mxu0 %v171
    %1556 = vmatprep.subr.bf16.mxu0 %v168
    %1557 = vmatpush1.bf16.msra.mxu0 %v167
    %1558 = vmatprep.subr.bf16.mxu0 0
    %1559 = vmatpush2.bf16.msra.mxu0 0
    %1560 = vmatprep.subr.bf16.mxu0 0
    %1561 = vmatpush2.bf16.msra.mxu0 0
    %1562 = vmatprep.subr.bf16.mxu0 0
    %1563 = vmatpush2.bf16.msra.mxu0 0
    %1564 = vmatprep.subr.bf16.mxu0 0
    %1565 = vmatpush2.bf16.msra.mxu0 0
    %1566 = vmatprep.subr.bf16.mxu0 0
    %1567 = vmatpush2.bf16.msra.mxu0 0
    %1568 = vmatprep.subr.bf16.mxu0 0
    %1569 = vmatpush2.bf16.msra.mxu0 0
    %1570 = vmatprep.subr.bf16.mxu0 0
    %1571 = vmatpush2.bf16.msra.mxu0 0
    %1572 = vmatprep.subr.bf16.mxu0 0
    %1573 = vmatpush2.bf16.msra.mxu0 0
    %1574 = vmatprep.mubr.bf16.mxu0 0
    %1575 = vmatmul.mubr.bf16.gmra.mxu0 %v1499
    %v1576 = vpop.f32.mrf.mxu0
    %v1577 = vadd.f32 0.0, %v1576
    %v1578 = vpop.f32.mrf.mxu0
    %v1579 = vadd.f32 0.0, %v1578
    %v1580 = vpop.f32.mrf.mxu0
    %v1581 = vpop.f32.mrf.mxu0
    %1582 = vdwg.mxu0
    %v1587 = vcombine.low %v1536, %v1538
    %v1588 = vcombine.low %v1577, %v1579
    %v1590 = vunpack.c.l.s4 1966171168
    %v1591 = vunpack.c.0.s8 %v1590
    %v1592 = vlaneseq
    %v1593 = vshrl.u32 %v1592, 7
    %v1594 = vsub.s32 %v1591, %v1593
    %v1595 = vrot.slane %v1587, %v1594
    %v1597 = vunpack.c.l.s4 1966171168
    %v1598 = vunpack.c.0.s8 %v1597
    %v1599 = vlaneseq
    %v1600 = vshrl.u32 %v1599, 7
    %v1601 = vsub.s32 %v1598, %v1600
    %v1602 = vrot.slane %v1588, %v1601
    %v1603 = vcombine.low %v1595, %v1602
    %v1604 = vcombine.high %v1595, %v1602
    %v1606 = vunpack.c.l.s4 1966171168
    %v1607 = vunpack.c.0.s8 %v1606
    %v1608 = vlaneseq
    %v1609 = vshrl.u32 %v1608, 7
    %v1610 = vsub.s32 %v1607, %v1609
    %v1611 = vrot.slane %v1603, %v1610
    %v1613 = vunpack.c.l.s4 1966171168
    %v1614 = vunpack.c.0.s8 %v1613
    %v1615 = vlaneseq
    %v1616 = vshrl.u32 %v1615, 7
    %v1617 = vsub.s32 %v1614, %v1616
    %v1618 = vrot.slane %v1604, %v1617
    %v1621 = vadd.f32 %v1488, %v1611
    %v1622 = vadd.f32 %v1490, %v1618
    %v1623 = vxor.u32 %v1621, 2147483648
    %v1624 = vxor.u32 %v1622, 2147483648
    %v1625 = vmul.f32 %v1623, 1.442695
    %v1626 = vpow.pop %v1625
    %v1627 = vmul.f32 %v1624, 1.442695
    %v1628 = vpow.pop %v1627
    %v1629 = vadd.f32 %v1626, 1.0
    %v1630 = vadd.f32 %v1628, 1.0
    %v1631 = vrcp.pop %v1629
    %v1632 = vmul.f32 1.0, %v1631
    %v1633 = vrcp.pop %v1630
    %v1634 = vmul.f32 1.0, %v1633
    %v1637 = vrot.slane %v1621, 3
    %v1638 = vrot.slane %v1622, 3
    %v1641 = vtanh.pop %v1637
    %v1642 = vtanh.pop %v1638
    %v1645 = vrot.slane %v1632, 1
    %v1646 = vrot.slane %v1634, 1
    %v1649 = vmul.f32 %v1645, %v1475
    %v1650 = vmul.f32 %v1646, %v1476
    %v1651 = vmul.f32 %v1632, %v1641
    %v1652 = vmul.f32 %v1634, %v1642
    %v1653 = vadd.f32 %v1649, %v1651
    %v1654 = vadd.f32 %v1650, %v1652
    %v1655 = vtanh.pop %v1653
    %v1656 = vtanh.pop %v1654
    %v1657 = vrot.slane %v1632, 2
    %v1658 = vrot.slane %v1634, 2
    %v1661 = vmul.f32 %v1657, %v1655
    %v1662 = vmul.f32 %v1658, %v1656
    %1663 = vst [vmem:[#allocation4 + $0x7] sm:$0x1] %v1661
    %1664 = vst [vmem:[#allocation4 + $0x17] sm:$0x1] %v1662
    %s1665 = scalar_lea.vmem %s0, 32
    %v1666 = vld [vmem:[%s1665] ss:$8 sm:$0xf]
    %s1667 = scalar_lea.vmem %s0, 96
    %v1668 = vld [vmem:[%s1667] ss:$8 sm:$0xf]
    %v1669 = vpack.c.bf16 %v1661, %v1661
    %v1670 = vpack.c.bf16 %v1662, %v1662
    %v1673 = vunpack.c.l.b16 %v1669
    %v1674 = vunpack.c.l.b16 %v1670
    %v1675 = vrot.slane %v1674, 7
    %v1676 = vsel %vm429, %v1675, %v1673
    %v1677 = vpack.c.b16 %v1676, %v1676
    %1679 = vmatprep.subr.bf16.mxu0 %v194
    %1680 = vmatpush1.bf16.msra.mxu0 %v193
    %1681 = vmatprep.subr.bf16.mxu0 %v190
    %1682 = vmatpush1.bf16.msra.mxu0 %v189
    %1683 = vmatprep.subr.bf16.mxu0 %v186
    %1684 = vmatpush1.bf16.msra.mxu0 %v185
    %1685 = vmatprep.subr.bf16.mxu0 %v182
    %1686 = vmatpush1.bf16.msra.mxu0 %v181
    %1687 = vmatprep.subr.bf16.mxu0 %v178
    %1688 = vmatpush1.bf16.msra.mxu0 %v177
    %1689 = vmatprep.subr.bf16.mxu0 %v174
    %1690 = vmatpush1.bf16.msra.mxu0 %v173
    %1691 = vmatprep.subr.bf16.mxu0 %v170
    %1692 = vmatpush1.bf16.msra.mxu0 %v169
    %1693 = vmatprep.subr.bf16.mxu0 %v166
    %1694 = vmatpush1.bf16.msra.mxu0 %v165
    %1695 = vmatprep.subr.bf16.mxu0 0
    %1696 = vmatpush2.bf16.msra.mxu0 0
    %1697 = vmatprep.subr.bf16.mxu0 0
    %1698 = vmatpush2.bf16.msra.mxu0 0
    %1699 = vmatprep.subr.bf16.mxu0 0
    %1700 = vmatpush2.bf16.msra.mxu0 0
    %1701 = vmatprep.subr.bf16.mxu0 0
    %1702 = vmatpush2.bf16.msra.mxu0 0
    %1703 = vmatprep.subr.bf16.mxu0 0
    %1704 = vmatpush2.bf16.msra.mxu0 0
    %1705 = vmatprep.subr.bf16.mxu0 0
    %1706 = vmatpush2.bf16.msra.mxu0 0
    %1707 = vmatprep.subr.bf16.mxu0 0
    %1708 = vmatpush2.bf16.msra.mxu0 0
    %1709 = vmatprep.subr.bf16.mxu0 0
    %1710 = vmatpush2.bf16.msra.mxu0 0
    %1711 = vmatprep.mubr.bf16.mxu0 0
    %1712 = vmatmul.mubr.bf16.gmra.mxu0 %v1677
    %v1713 = vpop.f32.mrf.mxu0
    %v1714 = vadd.f32 0.0, %v1713
    %v1715 = vpop.f32.mrf.mxu0
    %v1716 = vadd.f32 0.0, %v1715
    %v1717 = vpop.f32.mrf.mxu0
    %v1718 = vpop.f32.mrf.mxu0
    %1719 = vdwg.mxu0
    %1720 = vmatprep.subr.bf16.mxu0 %v196
    %1721 = vmatpush1.bf16.msra.mxu0 %v195
    %1722 = vmatprep.subr.bf16.mxu0 %v192
    %1723 = vmatpush1.bf16.msra.mxu0 %v191
    %1724 = vmatprep.subr.bf16.mxu0 %v188
    %1725 = vmatpush1.bf16.msra.mxu0 %v187
    %1726 = vmatprep.subr.bf16.mxu0 %v184
    %1727 = vmatpush1.bf16.msra.mxu0 %v183
    %1728 = vmatprep.subr.bf16.mxu0 %v180
    %1729 = vmatpush1.bf16.msra.mxu0 %v179
    %1730 = vmatprep.subr.bf16.mxu0 %v176
    %1731 = vmatpush1.bf16.msra.mxu0 %v175
    %1732 = vmatprep.subr.bf16.mxu0 %v172
    %1733 = vmatpush1.bf16.msra.mxu0 %v171
    %1734 = vmatprep.subr.bf16.mxu0 %v168
    %1735 = vmatpush1.bf16.msra.mxu0 %v167
    %1736 = vmatprep.subr.bf16.mxu0 0
    %1737 = vmatpush2.bf16.msra.mxu0 0
    %1738 = vmatprep.subr.bf16.mxu0 0
    %1739 = vmatpush2.bf16.msra.mxu0 0
    %1740 = vmatprep.subr.bf16.mxu0 0
    %1741 = vmatpush2.bf16.msra.mxu0 0
    %1742 = vmatprep.subr.bf16.mxu0 0
    %1743 = vmatpush2.bf16.msra.mxu0 0
    %1744 = vmatprep.subr.bf16.mxu0 0
    %1745 = vmatpush2.bf16.msra.mxu0 0
    %1746 = vmatprep.subr.bf16.mxu0 0
    %1747 = vmatpush2.bf16.msra.mxu0 0
    %1748 = vmatprep.subr.bf16.mxu0 0
    %1749 = vmatpush2.bf16.msra.mxu0 0
    %1750 = vmatprep.subr.bf16.mxu0 0
    %1751 = vmatpush2.bf16.msra.mxu0 0
    %1752 = vmatprep.mubr.bf16.mxu0 0
    %1753 = vmatmul.mubr.bf16.gmra.mxu0 %v1677
    %v1754 = vpop.f32.mrf.mxu0
    %v1755 = vadd.f32 0.0, %v1754
    %v1756 = vpop.f32.mrf.mxu0
    %v1757 = vadd.f32 0.0, %v1756
    %v1758 = vpop.f32.mrf.mxu0
    %v1759 = vpop.f32.mrf.mxu0
    %1760 = vdwg.mxu0
    %v1765 = vcombine.low %v1714, %v1716
    %v1766 = vcombine.low %v1755, %v1757
    %v1768 = vunpack.c.l.s4 1966171168
    %v1769 = vunpack.c.0.s8 %v1768
    %v1770 = vlaneseq
    %v1771 = vshrl.u32 %v1770, 7
    %v1772 = vsub.s32 %v1769, %v1771
    %v1773 = vrot.slane %v1765, %v1772
    %v1775 = vunpack.c.l.s4 1966171168
    %v1776 = vunpack.c.0.s8 %v1775
    %v1777 = vlaneseq
    %v1778 = vshrl.u32 %v1777, 7
    %v1779 = vsub.s32 %v1776, %v1778
    %v1780 = vrot.slane %v1766, %v1779
    %v1781 = vcombine.low %v1773, %v1780
    %v1782 = vcombine.high %v1773, %v1780
    %v1784 = vunpack.c.l.s4 1966171168
    %v1785 = vunpack.c.0.s8 %v1784
    %v1786 = vlaneseq
    %v1787 = vshrl.u32 %v1786, 7
    %v1788 = vsub.s32 %v1785, %v1787
    %v1789 = vrot.slane %v1781, %v1788
    %v1791 = vunpack.c.l.s4 1966171168
    %v1792 = vunpack.c.0.s8 %v1791
    %v1793 = vlaneseq
    %v1794 = vshrl.u32 %v1793, 7
    %v1795 = vsub.s32 %v1792, %v1794
    %v1796 = vrot.slane %v1782, %v1795
    %v1799 = vadd.f32 %v1666, %v1789
    %v1800 = vadd.f32 %v1668, %v1796
    %v1801 = vxor.u32 %v1799, 2147483648
    %v1802 = vxor.u32 %v1800, 2147483648
    %v1803 = vmul.f32 %v1801, 1.442695
    %v1804 = vpow.pop %v1803
    %v1805 = vmul.f32 %v1802, 1.442695
    %v1806 = vpow.pop %v1805
    %v1807 = vadd.f32 %v1804, 1.0
    %v1808 = vadd.f32 %v1806, 1.0
    %v1809 = vrcp.pop %v1807
    %v1810 = vmul.f32 1.0, %v1809
    %v1811 = vrcp.pop %v1808
    %v1812 = vmul.f32 1.0, %v1811
    %v1815 = vrot.slane %v1799, 3
    %v1816 = vrot.slane %v1800, 3
    %v1819 = vtanh.pop %v1815
    %v1820 = vtanh.pop %v1816
    %v1823 = vrot.slane %v1810, 1
    %v1824 = vrot.slane %v1812, 1
    %v1827 = vmul.f32 %v1823, %v1653
    %v1828 = vmul.f32 %v1824, %v1654
    %v1829 = vmul.f32 %v1810, %v1819
    %v1830 = vmul.f32 %v1812, %v1820
    %v1831 = vadd.f32 %v1827, %v1829
    %v1832 = vadd.f32 %v1828, %v1830
    %v1833 = vtanh.pop %v1831
    %v1834 = vtanh.pop %v1832
    %v1835 = vrot.slane %v1810, 2
    %v1836 = vrot.slane %v1812, 2
    %v1839 = vmul.f32 %v1835, %v1833
    %v1840 = vmul.f32 %v1836, %v1834
    %1841 = vst [vmem:[#allocation4 + $0x8] sm:$0x1] %v1839
    %1842 = vst [vmem:[#allocation4 + $0x18] sm:$0x1] %v1840
    %s1843 = scalar_lea.vmem %s0, 33
    %v1844 = vld [vmem:[%s1843] ss:$8 sm:$0xf]
    %s1845 = scalar_lea.vmem %s0, 97
    %v1846 = vld [vmem:[%s1845] ss:$8 sm:$0xf]
    %v1847 = vpack.c.bf16 %v1839, %v1839
    %v1848 = vpack.c.bf16 %v1840, %v1840
    %v1851 = vunpack.c.l.b16 %v1847
    %v1852 = vunpack.c.l.b16 %v1848
    %v1853 = vrot.slane %v1852, 7
    %v1854 = vsel %vm429, %v1853, %v1851
    %v1855 = vpack.c.b16 %v1854, %v1854
    %1857 = vmatprep.subr.bf16.mxu0 %v194
    %1858 = vmatpush1.bf16.msra.mxu0 %v193
    %1859 = vmatprep.subr.bf16.mxu0 %v190
    %1860 = vmatpush1.bf16.msra.mxu0 %v189
    %1861 = vmatprep.subr.bf16.mxu0 %v186
    %1862 = vmatpush1.bf16.msra.mxu0 %v185
    %1863 = vmatprep.subr.bf16.mxu0 %v182
    %1864 = vmatpush1.bf16.msra.mxu0 %v181
    %1865 = vmatprep.subr.bf16.mxu0 %v178
    %1866 = vmatpush1.bf16.msra.mxu0 %v177
    %1867 = vmatprep.subr.bf16.mxu0 %v174
    %1868 = vmatpush1.bf16.msra.mxu0 %v173
    %1869 = vmatprep.subr.bf16.mxu0 %v170
    %1870 = vmatpush1.bf16.msra.mxu0 %v169
    %1871 = vmatprep.subr.bf16.mxu0 %v166
    %1872 = vmatpush1.bf16.msra.mxu0 %v165
    %1873 = vmatprep.subr.bf16.mxu0 0
    %1874 = vmatpush2.bf16.msra.mxu0 0
    %1875 = vmatprep.subr.bf16.mxu0 0
    %1876 = vmatpush2.bf16.msra.mxu0 0
    %1877 = vmatprep.subr.bf16.mxu0 0
    %1878 = vmatpush2.bf16.msra.mxu0 0
    %1879 = vmatprep.subr.bf16.mxu0 0
    %1880 = vmatpush2.bf16.msra.mxu0 0
    %1881 = vmatprep.subr.bf16.mxu0 0
    %1882 = vmatpush2.bf16.msra.mxu0 0
    %1883 = vmatprep.subr.bf16.mxu0 0
    %1884 = vmatpush2.bf16.msra.mxu0 0
    %1885 = vmatprep.subr.bf16.mxu0 0
    %1886 = vmatpush2.bf16.msra.mxu0 0
    %1887 = vmatprep.subr.bf16.mxu0 0
    %1888 = vmatpush2.bf16.msra.mxu0 0
    %1889 = vmatprep.mubr.bf16.mxu0 0
    %1890 = vmatmul.mubr.bf16.gmra.mxu0 %v1855
    %v1891 = vpop.f32.mrf.mxu0
    %v1892 = vadd.f32 0.0, %v1891
    %v1893 = vpop.f32.mrf.mxu0
    %v1894 = vadd.f32 0.0, %v1893
    %v1895 = vpop.f32.mrf.mxu0
    %v1896 = vpop.f32.mrf.mxu0
    %1897 = vdwg.mxu0
    %1898 = vmatprep.subr.bf16.mxu0 %v196
    %1899 = vmatpush1.bf16.msra.mxu0 %v195
    %1900 = vmatprep.subr.bf16.mxu0 %v192
    %1901 = vmatpush1.bf16.msra.mxu0 %v191
    %1902 = vmatprep.subr.bf16.mxu0 %v188
    %1903 = vmatpush1.bf16.msra.mxu0 %v187
    %1904 = vmatprep.subr.bf16.mxu0 %v184
    %1905 = vmatpush1.bf16.msra.mxu0 %v183
    %1906 = vmatprep.subr.bf16.mxu0 %v180
    %1907 = vmatpush1.bf16.msra.mxu0 %v179
    %1908 = vmatprep.subr.bf16.mxu0 %v176
    %1909 = vmatpush1.bf16.msra.mxu0 %v175
    %1910 = vmatprep.subr.bf16.mxu0 %v172
    %1911 = vmatpush1.bf16.msra.mxu0 %v171
    %1912 = vmatprep.subr.bf16.mxu0 %v168
    %1913 = vmatpush1.bf16.msra.mxu0 %v167
    %1914 = vmatprep.subr.bf16.mxu0 0
    %1915 = vmatpush2.bf16.msra.mxu0 0
    %1916 = vmatprep.subr.bf16.mxu0 0
    %1917 = vmatpush2.bf16.msra.mxu0 0
    %1918 = vmatprep.subr.bf16.mxu0 0
    %1919 = vmatpush2.bf16.msra.mxu0 0
    %1920 = vmatprep.subr.bf16.mxu0 0
    %1921 = vmatpush2.bf16.msra.mxu0 0
    %1922 = vmatprep.subr.bf16.mxu0 0
    %1923 = vmatpush2.bf16.msra.mxu0 0
    %1924 = vmatprep.subr.bf16.mxu0 0
    %1925 = vmatpush2.bf16.msra.mxu0 0
    %1926 = vmatprep.subr.bf16.mxu0 0
    %1927 = vmatpush2.bf16.msra.mxu0 0
    %1928 = vmatprep.subr.bf16.mxu0 0
    %1929 = vmatpush2.bf16.msra.mxu0 0
    %1930 = vmatprep.mubr.bf16.mxu0 0
    %1931 = vmatmul.mubr.bf16.gmra.mxu0 %v1855
    %v1932 = vpop.f32.mrf.mxu0
    %v1933 = vadd.f32 0.0, %v1932
    %v1934 = vpop.f32.mrf.mxu0
    %v1935 = vadd.f32 0.0, %v1934
    %v1936 = vpop.f32.mrf.mxu0
    %v1937 = vpop.f32.mrf.mxu0
    %1938 = vdwg.mxu0
    %v1943 = vcombine.low %v1892, %v1894
    %v1944 = vcombine.low %v1933, %v1935
    %v1946 = vunpack.c.l.s4 1966171168
    %v1947 = vunpack.c.0.s8 %v1946
    %v1948 = vlaneseq
    %v1949 = vshrl.u32 %v1948, 7
    %v1950 = vsub.s32 %v1947, %v1949
    %v1951 = vrot.slane %v1943, %v1950
    %v1953 = vunpack.c.l.s4 1966171168
    %v1954 = vunpack.c.0.s8 %v1953
    %v1955 = vlaneseq
    %v1956 = vshrl.u32 %v1955, 7
    %v1957 = vsub.s32 %v1954, %v1956
    %v1958 = vrot.slane %v1944, %v1957
    %v1959 = vcombine.low %v1951, %v1958
    %v1960 = vcombine.high %v1951, %v1958
    %v1962 = vunpack.c.l.s4 1966171168
    %v1963 = vunpack.c.0.s8 %v1962
    %v1964 = vlaneseq
    %v1965 = vshrl.u32 %v1964, 7
    %v1966 = vsub.s32 %v1963, %v1965
    %v1967 = vrot.slane %v1959, %v1966
    %v1969 = vunpack.c.l.s4 1966171168
    %v1970 = vunpack.c.0.s8 %v1969
    %v1971 = vlaneseq
    %v1972 = vshrl.u32 %v1971, 7
    %v1973 = vsub.s32 %v1970, %v1972
    %v1974 = vrot.slane %v1960, %v1973
    %v1977 = vadd.f32 %v1844, %v1967
    %v1978 = vadd.f32 %v1846, %v1974
    %v1979 = vxor.u32 %v1977, 2147483648
    %v1980 = vxor.u32 %v1978, 2147483648
    %v1981 = vmul.f32 %v1979, 1.442695
    %v1982 = vpow.pop %v1981
    %v1983 = vmul.f32 %v1980, 1.442695
    %v1984 = vpow.pop %v1983
    %v1985 = vadd.f32 %v1982, 1.0
    %v1986 = vadd.f32 %v1984, 1.0
    %v1987 = vrcp.pop %v1985
    %v1988 = vmul.f32 1.0, %v1987
    %v1989 = vrcp.pop %v1986
    %v1990 = vmul.f32 1.0, %v1989
    %v1993 = vrot.slane %v1977, 3
    %v1994 = vrot.slane %v1978, 3
    %v1997 = vtanh.pop %v1993
    %v1998 = vtanh.pop %v1994
    %v2001 = vrot.slane %v1988, 1
    %v2002 = vrot.slane %v1990, 1
    %v2005 = vmul.f32 %v2001, %v1831
    %v2006 = vmul.f32 %v2002, %v1832
    %v2007 = vmul.f32 %v1988, %v1997
    %v2008 = vmul.f32 %v1990, %v1998
    %v2009 = vadd.f32 %v2005, %v2007
    %v2010 = vadd.f32 %v2006, %v2008
    %v2011 = vtanh.pop %v2009
    %v2012 = vtanh.pop %v2010
    %v2013 = vrot.slane %v1988, 2
    %v2014 = vrot.slane %v1990, 2
    %v2017 = vmul.f32 %v2013, %v2011
    %v2018 = vmul.f32 %v2014, %v2012
    %2019 = vst [vmem:[#allocation4 + $0x9] sm:$0x1] %v2017
    %2020 = vst [vmem:[#allocation4 + $0x19] sm:$0x1] %v2018
    %s2021 = scalar_lea.vmem %s0, 34
    %v2022 = vld [vmem:[%s2021] ss:$8 sm:$0xf]
    %s2023 = scalar_lea.vmem %s0, 98
    %v2024 = vld [vmem:[%s2023] ss:$8 sm:$0xf]
    %v2025 = vpack.c.bf16 %v2017, %v2017
    %v2026 = vpack.c.bf16 %v2018, %v2018
    %v2029 = vunpack.c.l.b16 %v2025
    %v2030 = vunpack.c.l.b16 %v2026
    %v2031 = vrot.slane %v2030, 7
    %v2032 = vsel %vm429, %v2031, %v2029
    %v2033 = vpack.c.b16 %v2032, %v2032
    %2035 = vmatprep.subr.bf16.mxu0 %v194
    %2036 = vmatpush1.bf16.msra.mxu0 %v193
    %2037 = vmatprep.subr.bf16.mxu0 %v190
    %2038 = vmatpush1.bf16.msra.mxu0 %v189
    %2039 = vmatprep.subr.bf16.mxu0 %v186
    %2040 = vmatpush1.bf16.msra.mxu0 %v185
    %2041 = vmatprep.subr.bf16.mxu0 %v182
    %2042 = vmatpush1.bf16.msra.mxu0 %v181
    %2043 = vmatprep.subr.bf16.mxu0 %v178
    %2044 = vmatpush1.bf16.msra.mxu0 %v177
    %2045 = vmatprep.subr.bf16.mxu0 %v174
    %2046 = vmatpush1.bf16.msra.mxu0 %v173
    %2047 = vmatprep.subr.bf16.mxu0 %v170
    %2048 = vmatpush1.bf16.msra.mxu0 %v169
    %2049 = vmatprep.subr.bf16.mxu0 %v166
    %2050 = vmatpush1.bf16.msra.mxu0 %v165
    %2051 = vmatprep.subr.bf16.mxu0 0
    %2052 = vmatpush2.bf16.msra.mxu0 0
    %2053 = vmatprep.subr.bf16.mxu0 0
    %2054 = vmatpush2.bf16.msra.mxu0 0
    %2055 = vmatprep.subr.bf16.mxu0 0
    %2056 = vmatpush2.bf16.msra.mxu0 0
    %2057 = vmatprep.subr.bf16.mxu0 0
    %2058 = vmatpush2.bf16.msra.mxu0 0
    %2059 = vmatprep.subr.bf16.mxu0 0
    %2060 = vmatpush2.bf16.msra.mxu0 0
    %2061 = vmatprep.subr.bf16.mxu0 0
    %2062 = vmatpush2.bf16.msra.mxu0 0
    %2063 = vmatprep.subr.bf16.mxu0 0
    %2064 = vmatpush2.bf16.msra.mxu0 0
    %2065 = vmatprep.subr.bf16.mxu0 0
    %2066 = vmatpush2.bf16.msra.mxu0 0
    %2067 = vmatprep.mubr.bf16.mxu0 0
    %2068 = vmatmul.mubr.bf16.gmra.mxu0 %v2033
    %v2069 = vpop.f32.mrf.mxu0
    %v2070 = vadd.f32 0.0, %v2069
    %v2071 = vpop.f32.mrf.mxu0
    %v2072 = vadd.f32 0.0, %v2071
    %v2073 = vpop.f32.mrf.mxu0
    %v2074 = vpop.f32.mrf.mxu0
    %2075 = vdwg.mxu0
    %2076 = vmatprep.subr.bf16.mxu0 %v196
    %2077 = vmatpush1.bf16.msra.mxu0 %v195
    %2078 = vmatprep.subr.bf16.mxu0 %v192
    %2079 = vmatpush1.bf16.msra.mxu0 %v191
    %2080 = vmatprep.subr.bf16.mxu0 %v188
    %2081 = vmatpush1.bf16.msra.mxu0 %v187
    %2082 = vmatprep.subr.bf16.mxu0 %v184
    %2083 = vmatpush1.bf16.msra.mxu0 %v183
    %2084 = vmatprep.subr.bf16.mxu0 %v180
    %2085 = vmatpush1.bf16.msra.mxu0 %v179
    %2086 = vmatprep.subr.bf16.mxu0 %v176
    %2087 = vmatpush1.bf16.msra.mxu0 %v175
    %2088 = vmatprep.subr.bf16.mxu0 %v172
    %2089 = vmatpush1.bf16.msra.mxu0 %v171
    %2090 = vmatprep.subr.bf16.mxu0 %v168
    %2091 = vmatpush1.bf16.msra.mxu0 %v167
    %2092 = vmatprep.subr.bf16.mxu0 0
    %2093 = vmatpush2.bf16.msra.mxu0 0
    %2094 = vmatprep.subr.bf16.mxu0 0
    %2095 = vmatpush2.bf16.msra.mxu0 0
    %2096 = vmatprep.subr.bf16.mxu0 0
    %2097 = vmatpush2.bf16.msra.mxu0 0
    %2098 = vmatprep.subr.bf16.mxu0 0
    %2099 = vmatpush2.bf16.msra.mxu0 0
    %2100 = vmatprep.subr.bf16.mxu0 0
    %2101 = vmatpush2.bf16.msra.mxu0 0
    %2102 = vmatprep.subr.bf16.mxu0 0
    %2103 = vmatpush2.bf16.msra.mxu0 0
    %2104 = vmatprep.subr.bf16.mxu0 0
    %2105 = vmatpush2.bf16.msra.mxu0 0
    %2106 = vmatprep.subr.bf16.mxu0 0
    %2107 = vmatpush2.bf16.msra.mxu0 0
    %2108 = vmatprep.mubr.bf16.mxu0 0
    %2109 = vmatmul.mubr.bf16.gmra.mxu0 %v2033
    %v2110 = vpop.f32.mrf.mxu0
    %v2111 = vadd.f32 0.0, %v2110
    %v2112 = vpop.f32.mrf.mxu0
    %v2113 = vadd.f32 0.0, %v2112
    %v2114 = vpop.f32.mrf.mxu0
    %v2115 = vpop.f32.mrf.mxu0
    %2116 = vdwg.mxu0
    %v2121 = vcombine.low %v2070, %v2072
    %v2122 = vcombine.low %v2111, %v2113
    %v2124 = vunpack.c.l.s4 1966171168
    %v2125 = vunpack.c.0.s8 %v2124
    %v2126 = vlaneseq
    %v2127 = vshrl.u32 %v2126, 7
    %v2128 = vsub.s32 %v2125, %v2127
    %v2129 = vrot.slane %v2121, %v2128
    %v2131 = vunpack.c.l.s4 1966171168
    %v2132 = vunpack.c.0.s8 %v2131
    %v2133 = vlaneseq
    %v2134 = vshrl.u32 %v2133, 7
    %v2135 = vsub.s32 %v2132, %v2134
    %v2136 = vrot.slane %v2122, %v2135
    %v2137 = vcombine.low %v2129, %v2136
    %v2138 = vcombine.high %v2129, %v2136
    %v2140 = vunpack.c.l.s4 1966171168
    %v2141 = vunpack.c.0.s8 %v2140
    %v2142 = vlaneseq
    %v2143 = vshrl.u32 %v2142, 7
    %v2144 = vsub.s32 %v2141, %v2143
    %v2145 = vrot.slane %v2137, %v2144
    %v2147 = vunpack.c.l.s4 1966171168
    %v2148 = vunpack.c.0.s8 %v2147
    %v2149 = vlaneseq
    %v2150 = vshrl.u32 %v2149, 7
    %v2151 = vsub.s32 %v2148, %v2150
    %v2152 = vrot.slane %v2138, %v2151
    %v2155 = vadd.f32 %v2022, %v2145
    %v2156 = vadd.f32 %v2024, %v2152
    %v2157 = vxor.u32 %v2155, 2147483648
    %v2158 = vxor.u32 %v2156, 2147483648
    %v2159 = vmul.f32 %v2157, 1.442695
    %v2160 = vpow.pop %v2159
    %v2161 = vmul.f32 %v2158, 1.442695
    %v2162 = vpow.pop %v2161
    %v2163 = vadd.f32 %v2160, 1.0
    %v2164 = vadd.f32 %v2162, 1.0
    %v2165 = vrcp.pop %v2163
    %v2166 = vmul.f32 1.0, %v2165
    %v2167 = vrcp.pop %v2164
    %v2168 = vmul.f32 1.0, %v2167
    %v2171 = vrot.slane %v2155, 3
    %v2172 = vrot.slane %v2156, 3
    %v2175 = vtanh.pop %v2171
    %v2176 = vtanh.pop %v2172
    %v2179 = vrot.slane %v2166, 1
    %v2180 = vrot.slane %v2168, 1
    %v2183 = vmul.f32 %v2179, %v2009
    %v2184 = vmul.f32 %v2180, %v2010
    %v2185 = vmul.f32 %v2166, %v2175
    %v2186 = vmul.f32 %v2168, %v2176
    %v2187 = vadd.f32 %v2183, %v2185
    %v2188 = vadd.f32 %v2184, %v2186
    %v2189 = vtanh.pop %v2187
    %v2190 = vtanh.pop %v2188
    %v2191 = vrot.slane %v2166, 2
    %v2192 = vrot.slane %v2168, 2
    %v2195 = vmul.f32 %v2191, %v2189
    %v2196 = vmul.f32 %v2192, %v2190
    %2197 = vst [vmem:[#allocation4 + $0xa] sm:$0x1] %v2195
    %2198 = vst [vmem:[#allocation4 + $0x1a] sm:$0x1] %v2196
    %s2199 = scalar_lea.vmem %s0, 35
    %v2200 = vld [vmem:[%s2199] ss:$8 sm:$0xf]
    %s2201 = scalar_lea.vmem %s0, 99
    %v2202 = vld [vmem:[%s2201] ss:$8 sm:$0xf]
    %v2203 = vpack.c.bf16 %v2195, %v2195
    %v2204 = vpack.c.bf16 %v2196, %v2196
    %v2207 = vunpack.c.l.b16 %v2203
    %v2208 = vunpack.c.l.b16 %v2204
    %v2209 = vrot.slane %v2208, 7
    %v2210 = vsel %vm429, %v2209, %v2207
    %v2211 = vpack.c.b16 %v2210, %v2210
    %2213 = vmatprep.subr.bf16.mxu0 %v194
    %2214 = vmatpush1.bf16.msra.mxu0 %v193
    %2215 = vmatprep.subr.bf16.mxu0 %v190
    %2216 = vmatpush1.bf16.msra.mxu0 %v189
    %2217 = vmatprep.subr.bf16.mxu0 %v186
    %2218 = vmatpush1.bf16.msra.mxu0 %v185
    %2219 = vmatprep.subr.bf16.mxu0 %v182
    %2220 = vmatpush1.bf16.msra.mxu0 %v181
    %2221 = vmatprep.subr.bf16.mxu0 %v178
    %2222 = vmatpush1.bf16.msra.mxu0 %v177
    %2223 = vmatprep.subr.bf16.mxu0 %v174
    %2224 = vmatpush1.bf16.msra.mxu0 %v173
    %2225 = vmatprep.subr.bf16.mxu0 %v170
    %2226 = vmatpush1.bf16.msra.mxu0 %v169
    %2227 = vmatprep.subr.bf16.mxu0 %v166
    %2228 = vmatpush1.bf16.msra.mxu0 %v165
    %2229 = vmatprep.subr.bf16.mxu0 0
    %2230 = vmatpush2.bf16.msra.mxu0 0
    %2231 = vmatprep.subr.bf16.mxu0 0
    %2232 = vmatpush2.bf16.msra.mxu0 0
    %2233 = vmatprep.subr.bf16.mxu0 0
    %2234 = vmatpush2.bf16.msra.mxu0 0
    %2235 = vmatprep.subr.bf16.mxu0 0
    %2236 = vmatpush2.bf16.msra.mxu0 0
    %2237 = vmatprep.subr.bf16.mxu0 0
    %2238 = vmatpush2.bf16.msra.mxu0 0
    %2239 = vmatprep.subr.bf16.mxu0 0
    %2240 = vmatpush2.bf16.msra.mxu0 0
    %2241 = vmatprep.subr.bf16.mxu0 0
    %2242 = vmatpush2.bf16.msra.mxu0 0
    %2243 = vmatprep.subr.bf16.mxu0 0
    %2244 = vmatpush2.bf16.msra.mxu0 0
    %2245 = vmatprep.mubr.bf16.mxu0 0
    %2246 = vmatmul.mubr.bf16.gmra.mxu0 %v2211
    %v2247 = vpop.f32.mrf.mxu0
    %v2248 = vadd.f32 0.0, %v2247
    %v2249 = vpop.f32.mrf.mxu0
    %v2250 = vadd.f32 0.0, %v2249
    %v2251 = vpop.f32.mrf.mxu0
    %v2252 = vpop.f32.mrf.mxu0
    %2253 = vdwg.mxu0
    %2254 = vmatprep.subr.bf16.mxu0 %v196
    %2255 = vmatpush1.bf16.msra.mxu0 %v195
    %2256 = vmatprep.subr.bf16.mxu0 %v192
    %2257 = vmatpush1.bf16.msra.mxu0 %v191
    %2258 = vmatprep.subr.bf16.mxu0 %v188
    %2259 = vmatpush1.bf16.msra.mxu0 %v187
    %2260 = vmatprep.subr.bf16.mxu0 %v184
    %2261 = vmatpush1.bf16.msra.mxu0 %v183
    %2262 = vmatprep.subr.bf16.mxu0 %v180
    %2263 = vmatpush1.bf16.msra.mxu0 %v179
    %2264 = vmatprep.subr.bf16.mxu0 %v176
    %2265 = vmatpush1.bf16.msra.mxu0 %v175
    %2266 = vmatprep.subr.bf16.mxu0 %v172
    %2267 = vmatpush1.bf16.msra.mxu0 %v171
    %2268 = vmatprep.subr.bf16.mxu0 %v168
    %2269 = vmatpush1.bf16.msra.mxu0 %v167
    %2270 = vmatprep.subr.bf16.mxu0 0
    %2271 = vmatpush2.bf16.msra.mxu0 0
    %2272 = vmatprep.subr.bf16.mxu0 0
    %2273 = vmatpush2.bf16.msra.mxu0 0
    %2274 = vmatprep.subr.bf16.mxu0 0
    %2275 = vmatpush2.bf16.msra.mxu0 0
    %2276 = vmatprep.subr.bf16.mxu0 0
    %2277 = vmatpush2.bf16.msra.mxu0 0
    %2278 = vmatprep.subr.bf16.mxu0 0
    %2279 = vmatpush2.bf16.msra.mxu0 0
    %2280 = vmatprep.subr.bf16.mxu0 0
    %2281 = vmatpush2.bf16.msra.mxu0 0
    %2282 = vmatprep.subr.bf16.mxu0 0
    %2283 = vmatpush2.bf16.msra.mxu0 0
    %2284 = vmatprep.subr.bf16.mxu0 0
    %2285 = vmatpush2.bf16.msra.mxu0 0
    %2286 = vmatprep.mubr.bf16.mxu0 0
    %2287 = vmatmul.mubr.bf16.gmra.mxu0 %v2211
    %v2288 = vpop.f32.mrf.mxu0
    %v2289 = vadd.f32 0.0, %v2288
    %v2290 = vpop.f32.mrf.mxu0
    %v2291 = vadd.f32 0.0, %v2290
    %v2292 = vpop.f32.mrf.mxu0
    %v2293 = vpop.f32.mrf.mxu0
    %2294 = vdwg.mxu0
    %v2299 = vcombine.low %v2248, %v2250
    %v2300 = vcombine.low %v2289, %v2291
    %v2302 = vunpack.c.l.s4 1966171168
    %v2303 = vunpack.c.0.s8 %v2302
    %v2304 = vlaneseq
    %v2305 = vshrl.u32 %v2304, 7
    %v2306 = vsub.s32 %v2303, %v2305
    %v2307 = vrot.slane %v2299, %v2306
    %v2309 = vunpack.c.l.s4 1966171168
    %v2310 = vunpack.c.0.s8 %v2309
    %v2311 = vlaneseq
    %v2312 = vshrl.u32 %v2311, 7
    %v2313 = vsub.s32 %v2310, %v2312
    %v2314 = vrot.slane %v2300, %v2313
    %v2315 = vcombine.low %v2307, %v2314
    %v2316 = vcombine.high %v2307, %v2314
    %v2318 = vunpack.c.l.s4 1966171168
    %v2319 = vunpack.c.0.s8 %v2318
    %v2320 = vlaneseq
    %v2321 = vshrl.u32 %v2320, 7
    %v2322 = vsub.s32 %v2319, %v2321
    %v2323 = vrot.slane %v2315, %v2322
    %v2325 = vunpack.c.l.s4 1966171168
    %v2326 = vunpack.c.0.s8 %v2325
    %v2327 = vlaneseq
    %v2328 = vshrl.u32 %v2327, 7
    %v2329 = vsub.s32 %v2326, %v2328
    %v2330 = vrot.slane %v2316, %v2329
    %v2333 = vadd.f32 %v2200, %v2323
    %v2334 = vadd.f32 %v2202, %v2330
    %v2335 = vxor.u32 %v2333, 2147483648
    %v2336 = vxor.u32 %v2334, 2147483648
    %v2337 = vmul.f32 %v2335, 1.442695
    %v2338 = vpow.pop %v2337
    %v2339 = vmul.f32 %v2336, 1.442695
    %v2340 = vpow.pop %v2339
    %v2341 = vadd.f32 %v2338, 1.0
    %v2342 = vadd.f32 %v2340, 1.0
    %v2343 = vrcp.pop %v2341
    %v2344 = vmul.f32 1.0, %v2343
    %v2345 = vrcp.pop %v2342
    %v2346 = vmul.f32 1.0, %v2345
    %v2349 = vrot.slane %v2333, 3
    %v2350 = vrot.slane %v2334, 3
    %v2353 = vtanh.pop %v2349
    %v2354 = vtanh.pop %v2350
    %v2357 = vrot.slane %v2344, 1
    %v2358 = vrot.slane %v2346, 1
    %v2361 = vmul.f32 %v2357, %v2187
    %v2362 = vmul.f32 %v2358, %v2188
    %v2363 = vmul.f32 %v2344, %v2353
    %v2364 = vmul.f32 %v2346, %v2354
    %v2365 = vadd.f32 %v2361, %v2363
    %v2366 = vadd.f32 %v2362, %v2364
    %v2367 = vtanh.pop %v2365
    %v2368 = vtanh.pop %v2366
    %v2369 = vrot.slane %v2344, 2
    %v2370 = vrot.slane %v2346, 2
    %v2373 = vmul.f32 %v2369, %v2367
    %v2374 = vmul.f32 %v2370, %v2368
    %2375 = vst [vmem:[#allocation4 + $0xb] sm:$0x1] %v2373
    %2376 = vst [vmem:[#allocation4 + $0x1b] sm:$0x1] %v2374
    %s2377 = scalar_lea.vmem %s0, 36
    %v2378 = vld [vmem:[%s2377] ss:$8 sm:$0xf]
    %s2379 = scalar_lea.vmem %s0, 100
    %v2380 = vld [vmem:[%s2379] ss:$8 sm:$0xf]
    %v2381 = vpack.c.bf16 %v2373, %v2373
    %v2382 = vpack.c.bf16 %v2374, %v2374
    %v2385 = vunpack.c.l.b16 %v2381
    %v2386 = vunpack.c.l.b16 %v2382
    %v2387 = vrot.slane %v2386, 7
    %v2388 = vsel %vm429, %v2387, %v2385
    %v2389 = vpack.c.b16 %v2388, %v2388
    %2391 = vmatprep.subr.bf16.mxu0 %v194
    %2392 = vmatpush1.bf16.msra.mxu0 %v193
    %2393 = vmatprep.subr.bf16.mxu0 %v190
    %2394 = vmatpush1.bf16.msra.mxu0 %v189
    %2395 = vmatprep.subr.bf16.mxu0 %v186
    %2396 = vmatpush1.bf16.msra.mxu0 %v185
    %2397 = vmatprep.subr.bf16.mxu0 %v182
    %2398 = vmatpush1.bf16.msra.mxu0 %v181
    %2399 = vmatprep.subr.bf16.mxu0 %v178
    %2400 = vmatpush1.bf16.msra.mxu0 %v177
    %2401 = vmatprep.subr.bf16.mxu0 %v174
    %2402 = vmatpush1.bf16.msra.mxu0 %v173
    %2403 = vmatprep.subr.bf16.mxu0 %v170
    %2404 = vmatpush1.bf16.msra.mxu0 %v169
    %2405 = vmatprep.subr.bf16.mxu0 %v166
    %2406 = vmatpush1.bf16.msra.mxu0 %v165
    %2407 = vmatprep.subr.bf16.mxu0 0
    %2408 = vmatpush2.bf16.msra.mxu0 0
    %2409 = vmatprep.subr.bf16.mxu0 0
    %2410 = vmatpush2.bf16.msra.mxu0 0
    %2411 = vmatprep.subr.bf16.mxu0 0
    %2412 = vmatpush2.bf16.msra.mxu0 0
    %2413 = vmatprep.subr.bf16.mxu0 0
    %2414 = vmatpush2.bf16.msra.mxu0 0
    %2415 = vmatprep.subr.bf16.mxu0 0
    %2416 = vmatpush2.bf16.msra.mxu0 0
    %2417 = vmatprep.subr.bf16.mxu0 0
    %2418 = vmatpush2.bf16.msra.mxu0 0
    %2419 = vmatprep.subr.bf16.mxu0 0
    %2420 = vmatpush2.bf16.msra.mxu0 0
    %2421 = vmatprep.subr.bf16.mxu0 0
    %2422 = vmatpush2.bf16.msra.mxu0 0
    %2423 = vmatprep.mubr.bf16.mxu0 0
    %2424 = vmatmul.mubr.bf16.gmra.mxu0 %v2389
    %v2425 = vpop.f32.mrf.mxu0
    %v2426 = vadd.f32 0.0, %v2425
    %v2427 = vpop.f32.mrf.mxu0
    %v2428 = vadd.f32 0.0, %v2427
    %v2429 = vpop.f32.mrf.mxu0
    %v2430 = vpop.f32.mrf.mxu0
    %2431 = vdwg.mxu0
    %2432 = vmatprep.subr.bf16.mxu0 %v196
    %2433 = vmatpush1.bf16.msra.mxu0 %v195
    %2434 = vmatprep.subr.bf16.mxu0 %v192
    %2435 = vmatpush1.bf16.msra.mxu0 %v191
    %2436 = vmatprep.subr.bf16.mxu0 %v188
    %2437 = vmatpush1.bf16.msra.mxu0 %v187
    %2438 = vmatprep.subr.bf16.mxu0 %v184
    %2439 = vmatpush1.bf16.msra.mxu0 %v183
    %2440 = vmatprep.subr.bf16.mxu0 %v180
    %2441 = vmatpush1.bf16.msra.mxu0 %v179
    %2442 = vmatprep.subr.bf16.mxu0 %v176
    %2443 = vmatpush1.bf16.msra.mxu0 %v175
    %2444 = vmatprep.subr.bf16.mxu0 %v172
    %2445 = vmatpush1.bf16.msra.mxu0 %v171
    %2446 = vmatprep.subr.bf16.mxu0 %v168
    %2447 = vmatpush1.bf16.msra.mxu0 %v167
    %2448 = vmatprep.subr.bf16.mxu0 0
    %2449 = vmatpush2.bf16.msra.mxu0 0
    %2450 = vmatprep.subr.bf16.mxu0 0
    %2451 = vmatpush2.bf16.msra.mxu0 0
    %2452 = vmatprep.subr.bf16.mxu0 0
    %2453 = vmatpush2.bf16.msra.mxu0 0
    %2454 = vmatprep.subr.bf16.mxu0 0
    %2455 = vmatpush2.bf16.msra.mxu0 0
    %2456 = vmatprep.subr.bf16.mxu0 0
    %2457 = vmatpush2.bf16.msra.mxu0 0
    %2458 = vmatprep.subr.bf16.mxu0 0
    %2459 = vmatpush2.bf16.msra.mxu0 0
    %2460 = vmatprep.subr.bf16.mxu0 0
    %2461 = vmatpush2.bf16.msra.mxu0 0
    %2462 = vmatprep.subr.bf16.mxu0 0
    %2463 = vmatpush2.bf16.msra.mxu0 0
    %2464 = vmatprep.mubr.bf16.mxu0 0
    %2465 = vmatmul.mubr.bf16.gmra.mxu0 %v2389
    %v2466 = vpop.f32.mrf.mxu0
    %v2467 = vadd.f32 0.0, %v2466
    %v2468 = vpop.f32.mrf.mxu0
    %v2469 = vadd.f32 0.0, %v2468
    %v2470 = vpop.f32.mrf.mxu0
    %v2471 = vpop.f32.mrf.mxu0
    %2472 = vdwg.mxu0
    %v2477 = vcombine.low %v2426, %v2428
    %v2478 = vcombine.low %v2467, %v2469
    %v2480 = vunpack.c.l.s4 1966171168
    %v2481 = vunpack.c.0.s8 %v2480
    %v2482 = vlaneseq
    %v2483 = vshrl.u32 %v2482, 7
    %v2484 = vsub.s32 %v2481, %v2483
    %v2485 = vrot.slane %v2477, %v2484
    %v2487 = vunpack.c.l.s4 1966171168
    %v2488 = vunpack.c.0.s8 %v2487
    %v2489 = vlaneseq
    %v2490 = vshrl.u32 %v2489, 7
    %v2491 = vsub.s32 %v2488, %v2490
    %v2492 = vrot.slane %v2478, %v2491
    %v2493 = vcombine.low %v2485, %v2492
    %v2494 = vcombine.high %v2485, %v2492
    %v2496 = vunpack.c.l.s4 1966171168
    %v2497 = vunpack.c.0.s8 %v2496
    %v2498 = vlaneseq
    %v2499 = vshrl.u32 %v2498, 7
    %v2500 = vsub.s32 %v2497, %v2499
    %v2501 = vrot.slane %v2493, %v2500
    %v2503 = vunpack.c.l.s4 1966171168
    %v2504 = vunpack.c.0.s8 %v2503
    %v2505 = vlaneseq
    %v2506 = vshrl.u32 %v2505, 7
    %v2507 = vsub.s32 %v2504, %v2506
    %v2508 = vrot.slane %v2494, %v2507
    %v2511 = vadd.f32 %v2378, %v2501
    %v2512 = vadd.f32 %v2380, %v2508
    %v2513 = vxor.u32 %v2511, 2147483648
    %v2514 = vxor.u32 %v2512, 2147483648
    %v2515 = vmul.f32 %v2513, 1.442695
    %v2516 = vpow.pop %v2515
    %v2517 = vmul.f32 %v2514, 1.442695
    %v2518 = vpow.pop %v2517
    %v2519 = vadd.f32 %v2516, 1.0
    %v2520 = vadd.f32 %v2518, 1.0
    %v2521 = vrcp.pop %v2519
    %v2522 = vmul.f32 1.0, %v2521
    %v2523 = vrcp.pop %v2520
    %v2524 = vmul.f32 1.0, %v2523
    %v2527 = vrot.slane %v2511, 3
    %v2528 = vrot.slane %v2512, 3
    %v2531 = vtanh.pop %v2527
    %v2532 = vtanh.pop %v2528
    %v2535 = vrot.slane %v2522, 1
    %v2536 = vrot.slane %v2524, 1
    %v2539 = vmul.f32 %v2535, %v2365
    %v2540 = vmul.f32 %v2536, %v2366
    %v2541 = vmul.f32 %v2522, %v2531
    %v2542 = vmul.f32 %v2524, %v2532
    %v2543 = vadd.f32 %v2539, %v2541
    %v2544 = vadd.f32 %v2540, %v2542
    %v2545 = vtanh.pop %v2543
    %v2546 = vtanh.pop %v2544
    %v2547 = vrot.slane %v2522, 2
    %v2548 = vrot.slane %v2524, 2
    %v2551 = vmul.f32 %v2547, %v2545
    %v2552 = vmul.f32 %v2548, %v2546
    %2553 = vst [vmem:[#allocation4 + $0xc] sm:$0x1] %v2551
    %2554 = vst [vmem:[#allocation4 + $0x1c] sm:$0x1] %v2552
    %s2555 = scalar_lea.vmem %s0, 37
    %v2556 = vld [vmem:[%s2555] ss:$8 sm:$0xf]
    %s2557 = scalar_lea.vmem %s0, 101
    %v2558 = vld [vmem:[%s2557] ss:$8 sm:$0xf]
    %v2559 = vpack.c.bf16 %v2551, %v2551
    %v2560 = vpack.c.bf16 %v2552, %v2552
    %v2563 = vunpack.c.l.b16 %v2559
    %v2564 = vunpack.c.l.b16 %v2560
    %v2565 = vrot.slane %v2564, 7
    %v2566 = vsel %vm429, %v2565, %v2563
    %v2567 = vpack.c.b16 %v2566, %v2566
    %2569 = vmatprep.subr.bf16.mxu0 %v194
    %2570 = vmatpush1.bf16.msra.mxu0 %v193
    %2571 = vmatprep.subr.bf16.mxu0 %v190
    %2572 = vmatpush1.bf16.msra.mxu0 %v189
    %2573 = vmatprep.subr.bf16.mxu0 %v186
    %2574 = vmatpush1.bf16.msra.mxu0 %v185
    %2575 = vmatprep.subr.bf16.mxu0 %v182
    %2576 = vmatpush1.bf16.msra.mxu0 %v181
    %2577 = vmatprep.subr.bf16.mxu0 %v178
    %2578 = vmatpush1.bf16.msra.mxu0 %v177
    %2579 = vmatprep.subr.bf16.mxu0 %v174
    %2580 = vmatpush1.bf16.msra.mxu0 %v173
    %2581 = vmatprep.subr.bf16.mxu0 %v170
    %2582 = vmatpush1.bf16.msra.mxu0 %v169
    %2583 = vmatprep.subr.bf16.mxu0 %v166
    %2584 = vmatpush1.bf16.msra.mxu0 %v165
    %2585 = vmatprep.subr.bf16.mxu0 0
    %2586 = vmatpush2.bf16.msra.mxu0 0
    %2587 = vmatprep.subr.bf16.mxu0 0
    %2588 = vmatpush2.bf16.msra.mxu0 0
    %2589 = vmatprep.subr.bf16.mxu0 0
    %2590 = vmatpush2.bf16.msra.mxu0 0
    %2591 = vmatprep.subr.bf16.mxu0 0
    %2592 = vmatpush2.bf16.msra.mxu0 0
    %2593 = vmatprep.subr.bf16.mxu0 0
    %2594 = vmatpush2.bf16.msra.mxu0 0
    %2595 = vmatprep.subr.bf16.mxu0 0
    %2596 = vmatpush2.bf16.msra.mxu0 0
    %2597 = vmatprep.subr.bf16.mxu0 0
    %2598 = vmatpush2.bf16.msra.mxu0 0
    %2599 = vmatprep.subr.bf16.mxu0 0
    %2600 = vmatpush2.bf16.msra.mxu0 0
    %2601 = vmatprep.mubr.bf16.mxu0 0
    %2602 = vmatmul.mubr.bf16.gmra.mxu0 %v2567
    %v2603 = vpop.f32.mrf.mxu0
    %v2604 = vadd.f32 0.0, %v2603
    %v2605 = vpop.f32.mrf.mxu0
    %v2606 = vadd.f32 0.0, %v2605
    %v2607 = vpop.f32.mrf.mxu0
    %v2608 = vpop.f32.mrf.mxu0
    %2609 = vdwg.mxu0
    %2610 = vmatprep.subr.bf16.mxu0 %v196
    %2611 = vmatpush1.bf16.msra.mxu0 %v195
    %2612 = vmatprep.subr.bf16.mxu0 %v192
    %2613 = vmatpush1.bf16.msra.mxu0 %v191
    %2614 = vmatprep.subr.bf16.mxu0 %v188
    %2615 = vmatpush1.bf16.msra.mxu0 %v187
    %2616 = vmatprep.subr.bf16.mxu0 %v184
    %2617 = vmatpush1.bf16.msra.mxu0 %v183
    %2618 = vmatprep.subr.bf16.mxu0 %v180
    %2619 = vmatpush1.bf16.msra.mxu0 %v179
    %2620 = vmatprep.subr.bf16.mxu0 %v176
    %2621 = vmatpush1.bf16.msra.mxu0 %v175
    %2622 = vmatprep.subr.bf16.mxu0 %v172
    %2623 = vmatpush1.bf16.msra.mxu0 %v171
    %2624 = vmatprep.subr.bf16.mxu0 %v168
    %2625 = vmatpush1.bf16.msra.mxu0 %v167
    %2626 = vmatprep.subr.bf16.mxu0 0
    %2627 = vmatpush2.bf16.msra.mxu0 0
    %2628 = vmatprep.subr.bf16.mxu0 0
    %2629 = vmatpush2.bf16.msra.mxu0 0
    %2630 = vmatprep.subr.bf16.mxu0 0
    %2631 = vmatpush2.bf16.msra.mxu0 0
    %2632 = vmatprep.subr.bf16.mxu0 0
    %2633 = vmatpush2.bf16.msra.mxu0 0
    %2634 = vmatprep.subr.bf16.mxu0 0
    %2635 = vmatpush2.bf16.msra.mxu0 0
    %2636 = vmatprep.subr.bf16.mxu0 0
    %2637 = vmatpush2.bf16.msra.mxu0 0
    %2638 = vmatprep.subr.bf16.mxu0 0
    %2639 = vmatpush2.bf16.msra.mxu0 0
    %2640 = vmatprep.subr.bf16.mxu0 0
    %2641 = vmatpush2.bf16.msra.mxu0 0
    %2642 = vmatprep.mubr.bf16.mxu0 0
    %2643 = vmatmul.mubr.bf16.gmra.mxu0 %v2567
    %v2644 = vpop.f32.mrf.mxu0
    %v2645 = vadd.f32 0.0, %v2644
    %v2646 = vpop.f32.mrf.mxu0
    %v2647 = vadd.f32 0.0, %v2646
    %v2648 = vpop.f32.mrf.mxu0
    %v2649 = vpop.f32.mrf.mxu0
    %2650 = vdwg.mxu0
    %v2655 = vcombine.low %v2604, %v2606
    %v2656 = vcombine.low %v2645, %v2647
    %v2658 = vunpack.c.l.s4 1966171168
    %v2659 = vunpack.c.0.s8 %v2658
    %v2660 = vlaneseq
    %v2661 = vshrl.u32 %v2660, 7
    %v2662 = vsub.s32 %v2659, %v2661
    %v2663 = vrot.slane %v2655, %v2662
    %v2665 = vunpack.c.l.s4 1966171168
    %v2666 = vunpack.c.0.s8 %v2665
    %v2667 = vlaneseq
    %v2668 = vshrl.u32 %v2667, 7
    %v2669 = vsub.s32 %v2666, %v2668
    %v2670 = vrot.slane %v2656, %v2669
    %v2671 = vcombine.low %v2663, %v2670
    %v2672 = vcombine.high %v2663, %v2670
    %v2674 = vunpack.c.l.s4 1966171168
    %v2675 = vunpack.c.0.s8 %v2674
    %v2676 = vlaneseq
    %v2677 = vshrl.u32 %v2676, 7
    %v2678 = vsub.s32 %v2675, %v2677
    %v2679 = vrot.slane %v2671, %v2678
    %v2681 = vunpack.c.l.s4 1966171168
    %v2682 = vunpack.c.0.s8 %v2681
    %v2683 = vlaneseq
    %v2684 = vshrl.u32 %v2683, 7
    %v2685 = vsub.s32 %v2682, %v2684
    %v2686 = vrot.slane %v2672, %v2685
    %v2689 = vadd.f32 %v2556, %v2679
    %v2690 = vadd.f32 %v2558, %v2686
    %v2691 = vxor.u32 %v2689, 2147483648
    %v2692 = vxor.u32 %v2690, 2147483648
    %v2693 = vmul.f32 %v2691, 1.442695
    %v2694 = vpow.pop %v2693
    %v2695 = vmul.f32 %v2692, 1.442695
    %v2696 = vpow.pop %v2695
    %v2697 = vadd.f32 %v2694, 1.0
    %v2698 = vadd.f32 %v2696, 1.0
    %v2699 = vrcp.pop %v2697
    %v2700 = vmul.f32 1.0, %v2699
    %v2701 = vrcp.pop %v2698
    %v2702 = vmul.f32 1.0, %v2701
    %v2705 = vrot.slane %v2689, 3
    %v2706 = vrot.slane %v2690, 3
    %v2709 = vtanh.pop %v2705
    %v2710 = vtanh.pop %v2706
    %v2713 = vrot.slane %v2700, 1
    %v2714 = vrot.slane %v2702, 1
    %v2717 = vmul.f32 %v2713, %v2543
    %v2718 = vmul.f32 %v2714, %v2544
    %v2719 = vmul.f32 %v2700, %v2709
    %v2720 = vmul.f32 %v2702, %v2710
    %v2721 = vadd.f32 %v2717, %v2719
    %v2722 = vadd.f32 %v2718, %v2720
    %v2723 = vtanh.pop %v2721
    %v2724 = vtanh.pop %v2722
    %v2725 = vrot.slane %v2700, 2
    %v2726 = vrot.slane %v2702, 2
    %v2729 = vmul.f32 %v2725, %v2723
    %v2730 = vmul.f32 %v2726, %v2724
    %2731 = vst [vmem:[#allocation4 + $0xd] sm:$0x1] %v2729
    %2732 = vst [vmem:[#allocation4 + $0x1d] sm:$0x1] %v2730
    %s2733 = scalar_lea.vmem %s0, 38
    %v2734 = vld [vmem:[%s2733] ss:$8 sm:$0xf]
    %s2735 = scalar_lea.vmem %s0, 102
    %v2736 = vld [vmem:[%s2735] ss:$8 sm:$0xf]
    %v2737 = vpack.c.bf16 %v2729, %v2729
    %v2738 = vpack.c.bf16 %v2730, %v2730
    %v2741 = vunpack.c.l.b16 %v2737
    %v2742 = vunpack.c.l.b16 %v2738
    %v2743 = vrot.slane %v2742, 7
    %v2744 = vsel %vm429, %v2743, %v2741
    %v2745 = vpack.c.b16 %v2744, %v2744
    %2747 = vmatprep.subr.bf16.mxu0 %v194
    %2748 = vmatpush1.bf16.msra.mxu0 %v193
    %2749 = vmatprep.subr.bf16.mxu0 %v190
    %2750 = vmatpush1.bf16.msra.mxu0 %v189
    %2751 = vmatprep.subr.bf16.mxu0 %v186
    %2752 = vmatpush1.bf16.msra.mxu0 %v185
    %2753 = vmatprep.subr.bf16.mxu0 %v182
    %2754 = vmatpush1.bf16.msra.mxu0 %v181
    %2755 = vmatprep.subr.bf16.mxu0 %v178
    %2756 = vmatpush1.bf16.msra.mxu0 %v177
    %2757 = vmatprep.subr.bf16.mxu0 %v174
    %2758 = vmatpush1.bf16.msra.mxu0 %v173
    %2759 = vmatprep.subr.bf16.mxu0 %v170
    %2760 = vmatpush1.bf16.msra.mxu0 %v169
    %2761 = vmatprep.subr.bf16.mxu0 %v166
    %2762 = vmatpush1.bf16.msra.mxu0 %v165
    %2763 = vmatprep.subr.bf16.mxu0 0
    %2764 = vmatpush2.bf16.msra.mxu0 0
    %2765 = vmatprep.subr.bf16.mxu0 0
    %2766 = vmatpush2.bf16.msra.mxu0 0
    %2767 = vmatprep.subr.bf16.mxu0 0
    %2768 = vmatpush2.bf16.msra.mxu0 0
    %2769 = vmatprep.subr.bf16.mxu0 0
    %2770 = vmatpush2.bf16.msra.mxu0 0
    %2771 = vmatprep.subr.bf16.mxu0 0
    %2772 = vmatpush2.bf16.msra.mxu0 0
    %2773 = vmatprep.subr.bf16.mxu0 0
    %2774 = vmatpush2.bf16.msra.mxu0 0
    %2775 = vmatprep.subr.bf16.mxu0 0
    %2776 = vmatpush2.bf16.msra.mxu0 0
    %2777 = vmatprep.subr.bf16.mxu0 0
    %2778 = vmatpush2.bf16.msra.mxu0 0
    %2779 = vmatprep.mubr.bf16.mxu0 0
    %2780 = vmatmul.mubr.bf16.gmra.mxu0 %v2745
    %v2781 = vpop.f32.mrf.mxu0
    %v2782 = vadd.f32 0.0, %v2781
    %v2783 = vpop.f32.mrf.mxu0
    %v2784 = vadd.f32 0.0, %v2783
    %v2785 = vpop.f32.mrf.mxu0
    %v2786 = vpop.f32.mrf.mxu0
    %2787 = vdwg.mxu0
    %2788 = vmatprep.subr.bf16.mxu0 %v196
    %2789 = vmatpush1.bf16.msra.mxu0 %v195
    %2790 = vmatprep.subr.bf16.mxu0 %v192
    %2791 = vmatpush1.bf16.msra.mxu0 %v191
    %2792 = vmatprep.subr.bf16.mxu0 %v188
    %2793 = vmatpush1.bf16.msra.mxu0 %v187
    %2794 = vmatprep.subr.bf16.mxu0 %v184
    %2795 = vmatpush1.bf16.msra.mxu0 %v183
    %2796 = vmatprep.subr.bf16.mxu0 %v180
    %2797 = vmatpush1.bf16.msra.mxu0 %v179
    %2798 = vmatprep.subr.bf16.mxu0 %v176
    %2799 = vmatpush1.bf16.msra.mxu0 %v175
    %2800 = vmatprep.subr.bf16.mxu0 %v172
    %2801 = vmatpush1.bf16.msra.mxu0 %v171
    %2802 = vmatprep.subr.bf16.mxu0 %v168
    %2803 = vmatpush1.bf16.msra.mxu0 %v167
    %2804 = vmatprep.subr.bf16.mxu0 0
    %2805 = vmatpush2.bf16.msra.mxu0 0
    %2806 = vmatprep.subr.bf16.mxu0 0
    %2807 = vmatpush2.bf16.msra.mxu0 0
    %2808 = vmatprep.subr.bf16.mxu0 0
    %2809 = vmatpush2.bf16.msra.mxu0 0
    %2810 = vmatprep.subr.bf16.mxu0 0
    %2811 = vmatpush2.bf16.msra.mxu0 0
    %2812 = vmatprep.subr.bf16.mxu0 0
    %2813 = vmatpush2.bf16.msra.mxu0 0
    %2814 = vmatprep.subr.bf16.mxu0 0
    %2815 = vmatpush2.bf16.msra.mxu0 0
    %2816 = vmatprep.subr.bf16.mxu0 0
    %2817 = vmatpush2.bf16.msra.mxu0 0
    %2818 = vmatprep.subr.bf16.mxu0 0
    %2819 = vmatpush2.bf16.msra.mxu0 0
    %2820 = vmatprep.mubr.bf16.mxu0 0
    %2821 = vmatmul.mubr.bf16.gmra.mxu0 %v2745
    %v2822 = vpop.f32.mrf.mxu0
    %v2823 = vadd.f32 0.0, %v2822
    %v2824 = vpop.f32.mrf.mxu0
    %v2825 = vadd.f32 0.0, %v2824
    %v2826 = vpop.f32.mrf.mxu0
    %v2827 = vpop.f32.mrf.mxu0
    %2828 = vdwg.mxu0
    %v2833 = vcombine.low %v2782, %v2784
    %v2834 = vcombine.low %v2823, %v2825
    %v2836 = vunpack.c.l.s4 1966171168
    %v2837 = vunpack.c.0.s8 %v2836
    %v2838 = vlaneseq
    %v2839 = vshrl.u32 %v2838, 7
    %v2840 = vsub.s32 %v2837, %v2839
    %v2841 = vrot.slane %v2833, %v2840
    %v2843 = vunpack.c.l.s4 1966171168
    %v2844 = vunpack.c.0.s8 %v2843
    %v2845 = vlaneseq
    %v2846 = vshrl.u32 %v2845, 7
    %v2847 = vsub.s32 %v2844, %v2846
    %v2848 = vrot.slane %v2834, %v2847
    %v2849 = vcombine.low %v2841, %v2848
    %v2850 = vcombine.high %v2841, %v2848
    %v2852 = vunpack.c.l.s4 1966171168
    %v2853 = vunpack.c.0.s8 %v2852
    %v2854 = vlaneseq
    %v2855 = vshrl.u32 %v2854, 7
    %v2856 = vsub.s32 %v2853, %v2855
    %v2857 = vrot.slane %v2849, %v2856
    %v2859 = vunpack.c.l.s4 1966171168
    %v2860 = vunpack.c.0.s8 %v2859
    %v2861 = vlaneseq
    %v2862 = vshrl.u32 %v2861, 7
    %v2863 = vsub.s32 %v2860, %v2862
    %v2864 = vrot.slane %v2850, %v2863
    %v2867 = vadd.f32 %v2734, %v2857
    %v2868 = vadd.f32 %v2736, %v2864
    %v2869 = vxor.u32 %v2867, 2147483648
    %v2870 = vxor.u32 %v2868, 2147483648
    %v2871 = vmul.f32 %v2869, 1.442695
    %v2872 = vpow.pop %v2871
    %v2873 = vmul.f32 %v2870, 1.442695
    %v2874 = vpow.pop %v2873
    %v2875 = vadd.f32 %v2872, 1.0
    %v2876 = vadd.f32 %v2874, 1.0
    %v2877 = vrcp.pop %v2875
    %v2878 = vmul.f32 1.0, %v2877
    %v2879 = vrcp.pop %v2876
    %v2880 = vmul.f32 1.0, %v2879
    %v2883 = vrot.slane %v2867, 3
    %v2884 = vrot.slane %v2868, 3
    %v2887 = vtanh.pop %v2883
    %v2888 = vtanh.pop %v2884
    %v2891 = vrot.slane %v2878, 1
    %v2892 = vrot.slane %v2880, 1
    %v2895 = vmul.f32 %v2891, %v2721
    %v2896 = vmul.f32 %v2892, %v2722
    %v2897 = vmul.f32 %v2878, %v2887
    %v2898 = vmul.f32 %v2880, %v2888
    %v2899 = vadd.f32 %v2895, %v2897
    %v2900 = vadd.f32 %v2896, %v2898
    %v2901 = vtanh.pop %v2899
    %v2902 = vtanh.pop %v2900
    %v2903 = vrot.slane %v2878, 2
    %v2904 = vrot.slane %v2880, 2
    %v2907 = vmul.f32 %v2903, %v2901
    %v2908 = vmul.f32 %v2904, %v2902
    %2909 = vst [vmem:[#allocation4 + $0xe] sm:$0x1] %v2907
    %2910 = vst [vmem:[#allocation4 + $0x1e] sm:$0x1] %v2908
    %s2911 = scalar_lea.vmem %s0, 39
    %v2912 = vld [vmem:[%s2911] ss:$8 sm:$0xf]
    %s2913 = scalar_lea.vmem %s0, 103
    %v2914 = vld [vmem:[%s2913] ss:$8 sm:$0xf]
    %v2915 = vpack.c.bf16 %v2907, %v2907
    %v2916 = vpack.c.bf16 %v2908, %v2908
    %v2919 = vunpack.c.l.b16 %v2915
    %v2920 = vunpack.c.l.b16 %v2916
    %v2921 = vrot.slane %v2920, 7
    %v2922 = vsel %vm429, %v2921, %v2919
    %v2923 = vpack.c.b16 %v2922, %v2922
    %2925 = vmatprep.subr.bf16.mxu0 %v194
    %2926 = vmatpush1.bf16.msra.mxu0 %v193
    %2927 = vmatprep.subr.bf16.mxu0 %v190
    %2928 = vmatpush1.bf16.msra.mxu0 %v189
    %2929 = vmatprep.subr.bf16.mxu0 %v186
    %2930 = vmatpush1.bf16.msra.mxu0 %v185
    %2931 = vmatprep.subr.bf16.mxu0 %v182
    %2932 = vmatpush1.bf16.msra.mxu0 %v181
    %2933 = vmatprep.subr.bf16.mxu0 %v178
    %2934 = vmatpush1.bf16.msra.mxu0 %v177
    %2935 = vmatprep.subr.bf16.mxu0 %v174
    %2936 = vmatpush1.bf16.msra.mxu0 %v173
    %2937 = vmatprep.subr.bf16.mxu0 %v170
    %2938 = vmatpush1.bf16.msra.mxu0 %v169
    %2939 = vmatprep.subr.bf16.mxu0 %v166
    %2940 = vmatpush1.bf16.msra.mxu0 %v165
    %2941 = vmatprep.subr.bf16.mxu0 0
    %2942 = vmatpush2.bf16.msra.mxu0 0
    %2943 = vmatprep.subr.bf16.mxu0 0
    %2944 = vmatpush2.bf16.msra.mxu0 0
    %2945 = vmatprep.subr.bf16.mxu0 0
    %2946 = vmatpush2.bf16.msra.mxu0 0
    %2947 = vmatprep.subr.bf16.mxu0 0
    %2948 = vmatpush2.bf16.msra.mxu0 0
    %2949 = vmatprep.subr.bf16.mxu0 0
    %2950 = vmatpush2.bf16.msra.mxu0 0
    %2951 = vmatprep.subr.bf16.mxu0 0
    %2952 = vmatpush2.bf16.msra.mxu0 0
    %2953 = vmatprep.subr.bf16.mxu0 0
    %2954 = vmatpush2.bf16.msra.mxu0 0
    %2955 = vmatprep.subr.bf16.mxu0 0
    %2956 = vmatpush2.bf16.msra.mxu0 0
    %2957 = vmatprep.mubr.bf16.mxu0 0
    %2958 = vmatmul.mubr.bf16.gmra.mxu0 %v2923
    %v2959 = vpop.f32.mrf.mxu0
    %v2960 = vadd.f32 0.0, %v2959
    %v2961 = vpop.f32.mrf.mxu0
    %v2962 = vadd.f32 0.0, %v2961
    %v2963 = vpop.f32.mrf.mxu0
    %v2964 = vpop.f32.mrf.mxu0
    %2965 = vdwg.mxu0
    %2966 = vmatprep.subr.bf16.mxu0 %v196
    %2967 = vmatpush1.bf16.msra.mxu0 %v195
    %2968 = vmatprep.subr.bf16.mxu0 %v192
    %2969 = vmatpush1.bf16.msra.mxu0 %v191
    %2970 = vmatprep.subr.bf16.mxu0 %v188
    %2971 = vmatpush1.bf16.msra.mxu0 %v187
    %2972 = vmatprep.subr.bf16.mxu0 %v184
    %2973 = vmatpush1.bf16.msra.mxu0 %v183
    %2974 = vmatprep.subr.bf16.mxu0 %v180
    %2975 = vmatpush1.bf16.msra.mxu0 %v179
    %2976 = vmatprep.subr.bf16.mxu0 %v176
    %2977 = vmatpush1.bf16.msra.mxu0 %v175
    %2978 = vmatprep.subr.bf16.mxu0 %v172
    %2979 = vmatpush1.bf16.msra.mxu0 %v171
    %2980 = vmatprep.subr.bf16.mxu0 %v168
    %2981 = vmatpush1.bf16.msra.mxu0 %v167
    %2982 = vmatprep.subr.bf16.mxu0 0
    %2983 = vmatpush2.bf16.msra.mxu0 0
    %2984 = vmatprep.subr.bf16.mxu0 0
    %2985 = vmatpush2.bf16.msra.mxu0 0
    %2986 = vmatprep.subr.bf16.mxu0 0
    %2987 = vmatpush2.bf16.msra.mxu0 0
    %2988 = vmatprep.subr.bf16.mxu0 0
    %2989 = vmatpush2.bf16.msra.mxu0 0
    %2990 = vmatprep.subr.bf16.mxu0 0
    %2991 = vmatpush2.bf16.msra.mxu0 0
    %2992 = vmatprep.subr.bf16.mxu0 0
    %2993 = vmatpush2.bf16.msra.mxu0 0
    %2994 = vmatprep.subr.bf16.mxu0 0
    %2995 = vmatpush2.bf16.msra.mxu0 0
    %2996 = vmatprep.subr.bf16.mxu0 0
    %2997 = vmatpush2.bf16.msra.mxu0 0
    %2998 = vmatprep.mubr.bf16.mxu0 0
    %2999 = vmatmul.mubr.bf16.gmra.mxu0 %v2923
    %v3000 = vpop.f32.mrf.mxu0
    %v3001 = vadd.f32 0.0, %v3000
    %v3002 = vpop.f32.mrf.mxu0
    %v3003 = vadd.f32 0.0, %v3002
    %v3004 = vpop.f32.mrf.mxu0
    %v3005 = vpop.f32.mrf.mxu0
    %3006 = vdwg.mxu0
    %v3011 = vcombine.low %v2960, %v2962
    %v3012 = vcombine.low %v3001, %v3003
    %v3014 = vunpack.c.l.s4 1966171168
    %v3015 = vunpack.c.0.s8 %v3014
    %v3016 = vlaneseq
    %v3017 = vshrl.u32 %v3016, 7
    %v3018 = vsub.s32 %v3015, %v3017
    %v3019 = vrot.slane %v3011, %v3018
    %v3021 = vunpack.c.l.s4 1966171168
    %v3022 = vunpack.c.0.s8 %v3021
    %v3023 = vlaneseq
    %v3024 = vshrl.u32 %v3023, 7
    %v3025 = vsub.s32 %v3022, %v3024
    %v3026 = vrot.slane %v3012, %v3025
    %v3027 = vcombine.low %v3019, %v3026
    %v3028 = vcombine.high %v3019, %v3026
    %v3030 = vunpack.c.l.s4 1966171168
    %v3031 = vunpack.c.0.s8 %v3030
    %v3032 = vlaneseq
    %v3033 = vshrl.u32 %v3032, 7
    %v3034 = vsub.s32 %v3031, %v3033
    %v3035 = vrot.slane %v3027, %v3034
    %v3037 = vunpack.c.l.s4 1966171168
    %v3038 = vunpack.c.0.s8 %v3037
    %v3039 = vlaneseq
    %v3040 = vshrl.u32 %v3039, 7
    %v3041 = vsub.s32 %v3038, %v3040
    %v3042 = vrot.slane %v3028, %v3041
    %v3045 = vadd.f32 %v2912, %v3035
    %v3046 = vadd.f32 %v2914, %v3042
    %v3047 = vxor.u32 %v3045, 2147483648
    %v3048 = vxor.u32 %v3046, 2147483648
    %v3049 = vmul.f32 %v3047, 1.442695
    %v3050 = vpow.pop %v3049
    %v3051 = vmul.f32 %v3048, 1.442695
    %v3052 = vpow.pop %v3051
    %v3053 = vadd.f32 %v3050, 1.0
    %v3054 = vadd.f32 %v3052, 1.0
    %v3055 = vrcp.pop %v3053
    %v3056 = vmul.f32 1.0, %v3055
    %v3057 = vrcp.pop %v3054
    %v3058 = vmul.f32 1.0, %v3057
    %v3061 = vrot.slane %v3045, 3
    %v3062 = vrot.slane %v3046, 3
    %v3065 = vtanh.pop %v3061
    %v3066 = vtanh.pop %v3062
    %v3069 = vrot.slane %v3056, 1
    %v3070 = vrot.slane %v3058, 1
    %v3073 = vmul.f32 %v3069, %v2899
    %v3074 = vmul.f32 %v3070, %v2900
    %v3075 = vmul.f32 %v3056, %v3065
    %v3076 = vmul.f32 %v3058, %v3066
    %v3077 = vadd.f32 %v3073, %v3075
    %v3078 = vadd.f32 %v3074, %v3076
    %v3079 = vtanh.pop %v3077
    %v3080 = vtanh.pop %v3078
    %v3081 = vrot.slane %v3056, 2
    %v3082 = vrot.slane %v3058, 2
    %v3085 = vmul.f32 %v3081, %v3079
    %v3086 = vmul.f32 %v3082, %v3080
    %3087 = vst [vmem:[#allocation4 + $0xf] sm:$0x1] %v3085
    %3088 = vst [vmem:[#allocation4 + $0x1f] sm:$0x1] %v3086
    %v3091 = vcombine.low %v3085, %v3086
    %v3093 = vunpack.c.l.s4 1966171168
    %v3094 = vunpack.c.0.s8 %v3093
    %v3095 = vlaneseq
    %v3096 = vshrl.u32 %v3095, 7
    %v3097 = vsub.s32 %v3094, %v3096
    %v3098 = vrot.slane %v3091, %v3097
    %v3100 = vunpack.c.l.s4 1966171168
    %v3101 = vunpack.c.0.s8 %v3100
    %v3102 = vlaneseq
    %v3103 = vshrl.u32 %v3102, 7
    %v3104 = vsub.s32 %v3101, %v3103
    %v3105 = vrot.slane %v3098, %v3104
    %3107 = vst [vmem:[#allocation2] sm:$0x3] %v3105
    %v3110 = vcombine.low %v3077, %v3078
    %v3112 = vunpack.c.l.s4 1966171168
    %v3113 = vunpack.c.0.s8 %v3112
    %v3114 = vlaneseq
    %v3115 = vshrl.u32 %v3114, 7
    %v3116 = vsub.s32 %v3113, %v3115
    %v3117 = vrot.slane %v3110, %v3116
    %v3119 = vunpack.c.l.s4 1966171168
    %v3120 = vunpack.c.0.s8 %v3119
    %v3121 = vlaneseq
    %v3122 = vshrl.u32 %v3121, 7
    %v3123 = vsub.s32 %v3120, %v3122
    %v3124 = vrot.slane %v3117, %v3123
    %3126 = vst [vmem:[#allocation3] sm:$0x3] %v3124
    %v3127 = vld [vmem:[#allocation4] sm:$0xff]
    %v3128 = vld [vmem:[#allocation4 + $0x8] sm:$0xff]
    %v3129 = vld [vmem:[#allocation4 + $0x10] sm:$0xff]
    %v3130 = vld [vmem:[#allocation4 + $0x18] sm:$0xff]
    %v3131 = vpack.c.bf16 %v3128, %v3127
    %v3132 = vpack.c.bf16 %v3130, %v3129
    %v3135 = vunpack.c.l.b16 %v3131
    %v3136 = vunpack.c.h.b16 %v3131
    %v3137 = vunpack.c.l.b16 %v3132
    %v3138 = vunpack.c.h.b16 %v3132
    %v3139 = vpack.c.b16 %v3135, %v3135
    %v3140 = vpack.c.b16 %v3136, %v3136
    %v3141 = vpack.c.b16 %v3137, %v3137
    %v3142 = vpack.c.b16 %v3138, %v3138
    %3147 = vst [vmem:[%s4] sm:$0xf] %v3139
    %3148 = vst [vmem:[%s4 + $0x4] sm:$0xf] %v3140
    %3149 = vst [vmem:[%s4 + $0x8] sm:$0xf] %v3141
    %3150 = vst [vmem:[%s4 + $0xc] sm:$0xf] %v3142
    // Predicated region
    $region22: #{rnnlm_forward.4} parent=1 // pred_check
      %p3151 = pneg %p23
    $region23: #{rnnlm_forward.4} parent=1 // pred_check_branch
      %3153 = sbr.rel (%p3151) target = $region25
    $region24: #{rnnlm_forward.4} parent=1 // pred_region
      %3154 = vst [vmem:[#allocation5] sm:$0x3] %v3105
      %3155 = vst [vmem:[#allocation7] sm:$0x3] %v3124
    $region25: #{rnnlm_forward.4} parent=1 // pred_fallthru
      _
    // Predicated region
    $region26: #{rnnlm_forward.4} parent=1 // pred_check
      _
    $region27: #{rnnlm_forward.4} parent=1 // pred_check_branch
      %3157 = sbr.rel (0) target = $region29
    $region28: #{rnnlm_forward.4} parent=1 // pred_region
      _
    $region29: #{rnnlm_forward.4} parent=1 // pred_fallthru
      _
    // Predicated region
    $region30: #{rnnlm_forward.4} parent=1 // pred_check
      _
    $region31: #{rnnlm_forward.4} parent=1 // pred_check_branch
      %3159 = sbr.rel (0) target = $region33
    $region32: #{rnnlm_forward.4} parent=1 // pred_region
      %s3161 = ssub.s32 32, 32
      %3162 = vsyncadd [#allocation6], %s3161
      %s3164 = sshll.u32 [#allocation5], 4
      %s3165 = int_to_ptr.vmem [resolvable:$true] %s3164
      %3167 = dma.vmem_to_hbm [thread:$0]  %s3165, 32, %s5, [#allocation6]
    $region33: #{rnnlm_forward.4} parent=1 // pred_fallthru
      _
    // Predicated region
    $region34: #{rnnlm_forward.4} parent=1 // pred_check
      _
    $region35: #{rnnlm_forward.4} parent=1 // pred_check_branch
      %3169 = sbr.rel (0) target = $region37
    $region36: #{rnnlm_forward.4} parent=1 // pred_region
      %s3171 = ssub.s32 32, 32
      %3172 = vsyncadd [#allocation8], %s3171
      %s3174 = sshll.u32 [#allocation7], 4
      %s3175 = int_to_ptr.vmem [resolvable:$true] %s3174
      %3177 = dma.vmem_to_hbm [thread:$0]  %s3175, 32, %s6, [#allocation8]
    $region37: #{rnnlm_forward.4} parent=1 // pred_fallthru
      _
    // Predicated region
    $region38: #{rnnlm_forward.4} parent=1 // pred_check
      _
    $region39: #{rnnlm_forward.4} parent=1 // pred_check_branch
      %3179 = sbr.rel (0) target = $region41
    $region40: #{rnnlm_forward.4} parent=1 // pred_region
      _
    $region41: #{rnnlm_forward.4} parent=1 // pred_fallthru
      _
    // Predicated region
    $region42: #{rnnlm_forward.4} parent=1 // pred_check
      _
    $region43: #{rnnlm_forward.4} parent=1 // pred_check_branch
      %3181 = sbr.rel (0) target = $region45
    $region44: #{rnnlm_forward.4} parent=1 // pred_region
      %3182 = dma.done [#allocation6], 32
    $region45: #{rnnlm_forward.4} parent=1 // pred_fallthru
      _
    // Predicated region
    $region46: #{rnnlm_forward.4} parent=1 // pred_check
      _
    $region47: #{rnnlm_forward.4} parent=1 // pred_check_branch
      %3184 = sbr.rel (0) target = $region49
    $region48: #{rnnlm_forward.4} parent=1 // pred_region
      %3185 = dma.done [#allocation8], 32
    $region49: #{rnnlm_forward.4} parent=1 // pred_fallthru
      _
    %3186 = vsyncpa [#allocation6], 1
    %3187 = vsyncpa [#allocation8], 1

</llo_original>
